<compile_context>
chip_gen: v5e
topology: v5e:2x2
jax: 0.10.0
libtpu: 0.0.40
codegen_flags: <defaults>
</compile_context>

<pallas_src>
import functools
import math

import jax
import jax.numpy as jnp
from jax.experimental import pallas as pl
from jax.experimental.pallas import tpu as pltpu


# ----------------------------------------------------------------------------
# In-kernel helper: multi-head attention (+ q residual) and the ReLU-FF residual
# The 1/sqrt(size) scale is already folded into k (wrapper-side weight prep).
# ----------------------------------------------------------------------------
def _mab_attn_ff(q2d, k2d, v2d, wo, bo, *, bt, lq, lk, size, n_heads):
    """q2d: (bt*lq, size), k2d/v2d: (bt*lk, size) -> (bt*lq, size)."""
    hs = size // n_heads

    head_outs = []
    for h in range(n_heads):  # small, static trip count (lane slices only)
        lo = h * hs
        qh = q2d[:, lo:lo + hs].reshape(bt, lq, hs)
        kh = k2d[:, lo:lo + hs].reshape(bt, lk, hs)
        vh = v2d[:, lo:lo + hs].reshape(bt, lk, hs)
        # NOTE(v6e/v7x): for size >= 128 cast qh/kh/vh (and the probabilities)
        # to bf16 here (keeping preferred_element_type=f32); at size=32 it is
        # noise, so it is not done.
        s = jnp.einsum("bqd,bkd->bqk", qh, kh,
                       preferred_element_type=jnp.float32)
        m = jnp.max(s, axis=-1, keepdims=True)
        p = jnp.exp(s - m)
        denom = jnp.sum(p, axis=-1, keepdims=True)
        a = p * pl.reciprocal(denom)                  # exact reciprocal
        oh = qh + jnp.einsum("bqk,bkd->bqd", a, vh,
                             preferred_element_type=jnp.float32)
        head_outs.append(oh.reshape(bt * lq, hs))

    h2d = jnp.concatenate(head_outs, axis=-1)          # (bt*lq, size)
    fc = jnp.dot(h2d, wo, preferred_element_type=jnp.float32) + bo
    return h2d + jnp.maximum(fc, 0.0)


# ----------------------------------------------------------------------------
# Fused ISAB kernel: one grid step == bt batch elements, both MABs.
# ----------------------------------------------------------------------------
def isab_kernel(x_ref, q0_ref, wx_ref, bx_ref, wh_ref, bh_ref,
                wo0_ref, bo0_ref, wo1_ref, bo1_ref, o_ref,
                *, bt, set_len, n_induce, size, n_heads):
    x2d = x_ref[...]                                   # (bt*set_len, input_size)

    # Fused X-side projection: one wide matmul -> [ k0 | v0 | q1 ]
    xp = jnp.dot(x2d, wx_ref[...], preferred_element_type=jnp.float32) + bx_ref[...]
    k0 = xp[:, 0 * size:1 * size]                      # scale already folded in
    v0 = xp[:, 1 * size:2 * size]
    q1 = xp[:, 2 * size:3 * size]

    # MAB0: Q = precomputed inducing projections (broadcast over bt), KV = X
    q0 = q0_ref[...]                                   # (n_induce, size)
    q0b = jnp.broadcast_to(q0[None], (bt, n_induce, size)).reshape(bt * n_induce, size)
    hmat = _mab_attn_ff(q0b, k0, v0, wo0_ref[...], bo0_ref[...],
                        bt=bt, lq=n_induce, lk=set_len, size=size, n_heads=n_heads)
    # `hmat` (ISAB's H) stays in VMEM/registers: both MABs fused, no HBM trip.

    # Fused H-side projection: [ k1 | v1 ]
    hp = jnp.dot(hmat, wh_ref[...], preferred_element_type=jnp.float32) + bh_ref[...]
    k1 = hp[:, :size]
    v1 = hp[:, size:]

    # MAB1: Q = X (projected above), KV = H
    out2d = _mab_attn_ff(q1, k1, v1, wo1_ref[...], bo1_ref[...],
                         bt=bt, lq=set_len, lk=n_induce, size=size, n_heads=n_heads)

    # Lane-dense store: pack the block's bt batch elements along the lane axis
    # so the output block is (set_len, bt*size). The wrapper undoes the packing.
    out3 = out2d.reshape(bt, set_len, size)
    o_ref[...] = jnp.concatenate([out3[i] for i in range(bt)],
                                 axis=-1).astype(o_ref.dtype)


# ----------------------------------------------------------------------------
# VMEM footprint estimate (f32) for one grid step with block batch `bt`.
# ----------------------------------------------------------------------------
def _vmem_bytes_estimate(bt, set_len, input_size, size, n_induce):
    f32 = 4
    rows_x = bt * set_len
    rows_i = bt * n_induce
    x_blk = 2 * rows_x * input_size * f32              # double-buffered X block
    out_blk = 2 * set_len * bt * size * f32            # double-buffered output block
    interm = (rows_x * 3 * size                        # fused x-projection
              + rows_i * 2 * size                      # q0 broadcast + hmat
              + rows_i * 2 * size                      # fused h-projection
              + rows_x * 2 * size                      # q1 + out2d
              + 2 * bt * n_induce * set_len) * f32     # live attention scores/probs
    weights = (input_size * 3 * size + size * 2 * size + 2 * size * size
               + n_induce * size + 8 * size) * f32
    return x_blk + out_blk + interm + weights


_VMEM_PICK_BUDGET = 24 * 2**20   # conservative: fits v7x's 32 MiB scoped default


# ----------------------------------------------------------------------------
# Generation-aware batch-block picker.
#   * single TC (v5e/v6e): the grid is a serial loop -> fewest, biggest steps.
#   * v7x (2 TCs): prefer an even grid extent so both cores get work.
# ----------------------------------------------------------------------------
def _num_tensorcores():
    try:
        kind = jax.devices()[0].device_kind.lower()
        if "v7" in kind:
            return 2
    except Exception:
        pass
    return 1


def _pick_block_batch(batch, set_len, input_size, size, n_induce, n_cores):
    candidates = []
    for bt in range(1, batch + 1):
        if batch % bt:
            continue
        full = bt == batch
        if not full and ((bt * size) % 128 or (bt * set_len) % 8):
            continue  # keep BlockSpec dims (8,128)-aligned when not full-extent
        candidates.append(bt)

    fitting = [bt for bt in candidates
               if _vmem_bytes_estimate(bt, set_len, input_size, size, n_induce)
               <= _VMEM_PICK_BUDGET]
    if not fitting:
        # TODO(synk): needs the set_len-tiling grid axis; fall back to smallest.
        fitting = [min(candidates,
                       key=lambda bt: _vmem_bytes_estimate(
                           bt, set_len, input_size, size, n_induce))]

    def score(bt):
        grid = batch // bt
        lane_dense = (bt * size) % 128 == 0            # unmasked vst
        if n_cores > 1:
            feeds_cores = grid >= n_cores and grid % n_cores == 0
        else:
            feeds_cores = True                         # single TC: irrelevant
        return (lane_dense, feeds_cores, bt)           # then amortize per-step cost
    return max(fitting, key=score)


# ----------------------------------------------------------------------------
# Wrapper
# ----------------------------------------------------------------------------
def isab_forward(X, isab_params, *, output_size, n_heads):
    inducing, mab0_params, mab1_params = isab_params
    batch, set_len, input_size = X.shape
    size = output_size
    n_induce = inducing.shape[-2]
    scale = 1.0 / math.sqrt(size)  # PyTorch scales scores by sqrt(size)

    n_cores = _num_tensorcores()
    bt = _pick_block_batch(batch, set_len, input_size, size, n_induce, n_cores)
    grid = batch // bt
    # Note: if (bt*size) % 128 != 0 (only possible when bt == batch and
    # batch*size < 128) the output falls back to masked partial stores.

    wq0, bq0, wk0, bk0, wv0, bv0, wo0, bo0 = mab0_params
    wq1, bq1, wk1, bk1, wv1, bv1, wo1, bo1 = mab1_params

    # One-time weight prep (wrapper-side, per call under jit):
    #   * transpose PyTorch (out,in) -> (in,out)
    #   * fold 1/sqrt(size) into the K projections only (q reused in residual)
    #   * fuse the X-side projections [Wk0|Wv0|Wq1] and H-side [Wk1|Wv1]
    w_x = jnp.concatenate([wk0.T * scale, wv0.T, wq1.T], axis=1)   # (in, 3*size)
    b_x = jnp.concatenate([bk0 * scale, bv0, bq1], axis=1)         # (1, 3*size)
    w_h = jnp.concatenate([wk1.T * scale, wv1.T], axis=1)          # (size, 2*size)
    b_h = jnp.concatenate([bk1 * scale, bv1], axis=1)              # (1, 2*size)
    wo0_t, wo1_t = wo0.T, wo1.T

    # Hoisted, batch-independent inducing-query projection (done once, not per step).
    ind2d = inducing.reshape(n_induce, size)
    q0 = ind2d @ wq0.T + bq0                                       # (n_induce, size)

    x2d = X.reshape(batch * set_len, input_size)

    kernel = functools.partial(isab_kernel, bt=bt, set_len=set_len,
                               n_induce=n_induce, size=size, n_heads=n_heads)

    def resident(a):  # full-array block, same block every step (stays in VMEM)
        nd = a.ndim
        return pl.BlockSpec(a.shape, lambda b, _nd=nd: (0,) * _nd)

    in_specs = ([pl.BlockSpec((bt * set_len, input_size), lambda b: (b, 0))]
                + [resident(p) for p in
                   (q0, w_x, b_x, w_h, b_h, wo0_t, bo0, wo1_t, bo1)])
    out_spec = pl.BlockSpec((set_len, bt * size), lambda b: (0, b))

    # Advisory cost estimate for XLA's scheduler.
    mm_flops = 2 * batch * set_len * input_size * 3 * size         # fused X-proj
    mm_flops += 2 * batch * n_induce * size * 2 * size             # fused H-proj
    mm_flops += 2 * batch * n_induce * size * size                 # fc_o0
    mm_flops += 2 * batch * set_len * size * size                  # fc_o1
    mm_flops += 8 * batch * n_induce * set_len * size              # both attentions
    transcendentals = 2 * batch * n_heads * n_induce * set_len
    n_param_elems = sum(int(p.size) for p in
                        (q0, w_x, b_x, w_h, b_h, wo0_t, bo0, wo1_t, bo1))
    bytes_accessed = 4 * (batch * set_len * (input_size + size) + n_param_elems)

    footprint = _vmem_bytes_estimate(bt, set_len, input_size, size, n_induce)
    vmem_limit = int(min(48 * 2**20, max(32 * 2**20, footprint * 5 // 4)))

    out_wide = pl.pallas_call(
        kernel,
        out_shape=jax.ShapeDtypeStruct((set_len, batch * size), jnp.float32),
        grid=(grid,),
        in_specs=in_specs,
        out_specs=out_spec,
        compiler_params=pltpu.CompilerParams(
            dimension_semantics=("parallel",),
            vmem_limit_bytes=vmem_limit),
        cost_estimate=pl.CostEstimate(flops=int(mm_flops),
                                      transcendentals=int(transcendentals),
                                      bytes_accessed=int(bytes_accessed)),
    )(x2d, q0, w_x, b_x, w_h, b_h, wo0_t, bo0, wo1_t, bo1)

    # Undo the lane packing: (set_len, batch*size) -> (batch, set_len, size).
    return out_wide.reshape(set_len, batch, size).transpose(1, 0, 2)


# ----------------------------------------------------------------------------
# Parameter construction (matches the PyTorch module's shapes/conventions)
# ----------------------------------------------------------------------------
def make_linear_params(key, in_features, out_features):
    kw, kb = jax.random.split(key)
    bound = 1.0 / math.sqrt(in_features)
    w = jax.random.uniform(kw, (out_features, in_features), jnp.float32, -bound, bound)
    b = jax.random.uniform(kb, (1, out_features), jnp.float32, -bound, bound)
    return w, b


def make_mab_params(key, size_Q, size_KV, size):
    keys = jax.random.split(key, 4)
    wq, bq = make_linear_params(keys[0], size_Q, size)
    wk, bk = make_linear_params(keys[1], size_KV, size)
    wv, bv = make_linear_params(keys[2], size_KV, size)
    wo, bo = make_linear_params(keys[3], size, size)
    return (wq, bq, wk, bk, wv, bv, wo, bo)


def make_isab_params(key, input_size, output_size, n_induce):
    k_ind, k_m0, k_m1 = jax.random.split(key, 3)
    limit = math.sqrt(6.0 / (n_induce + output_size))     # xavier_uniform_
    inducing = jax.random.uniform(
        k_ind, (1, n_induce, output_size), jnp.float32, -limit, limit)
    mab0 = make_mab_params(k_m0, output_size, input_size, output_size)  # Q=induce, KV=X
    mab1 = make_mab_params(k_m1, input_size, output_size, output_size)  # Q=X, KV=H
    return inducing, mab0, mab1


# ----------------------------------------------------------------------------
# Pure-JAX reference (mirrors the PyTorch module) for correctness checking
# ----------------------------------------------------------------------------
def mab_ref(query, key_value, params, *, size, n_heads):
    wq, bq, wk, bk, wv, bv, wo, bo = params
    q = query @ wq.T + bq
    k = key_value @ wk.T + bk
    v = key_value @ wv.T + bv
    split = lambda t: jnp.concatenate(jnp.split(t, n_heads, axis=2), axis=0)
    Q_, K_, V_ = split(q), split(k), split(v)
    A = jax.nn.softmax(jnp.einsum('bqd,bkd->bqk', Q_, K_) / math.sqrt(size), axis=2)
    out = Q_ + jnp.einsum('bqk,bkd->bqd', A, V_)
    out = jnp.concatenate(jnp.split(out, n_heads, axis=0), axis=2)
    return out + jax.nn.relu(out @ wo.T + bo)


def isab_ref(X, isab_params, *, output_size, n_heads):
    inducing, mab0_params, mab1_params = isab_params
    B = X.shape[0]
    ind_rep = jnp.broadcast_to(inducing, (B,) + inducing.shape[1:])
    H = mab_ref(ind_rep, X, mab0_params, size=output_size, n_heads=n_heads)
    return mab_ref(X, H, mab1_params, size=output_size, n_heads=n_heads)


# ----------------------------------------------------------------------------
if __name__ == "__main__":
    batch = 8
    set_len = 8
    input_size = 16
    output_size = 32
    n_heads = 4
    n_induce = 8

    key = jax.random.PRNGKey(0)
    k_params, k_x = jax.random.split(key)

    isab_params = make_isab_params(k_params, input_size, output_size, n_induce)
    X = jax.random.normal(k_x, (batch, set_len, input_size), jnp.float32)

    fwd = jax.jit(functools.partial(isab_forward,
                                    output_size=output_size, n_heads=n_heads))
    out = jax.block_until_ready(fwd(X, isab_params))

    ref = isab_ref(X, isab_params, output_size=output_size, n_heads=n_heads)
    assert out.shape == (batch, set_len, output_size), out.shape
    # Exact softmax reciprocal now used; remaining differences vs. the XLA
    # reference come only from TPU matmul pass precision, so the tolerance is
    # tightened from 2e-2 to 5e-3 (real bugs produce O(0.1..1) discrepancies).
    assert jnp.allclose(out, ref, atol=5e-3, rtol=5e-3), \
        "Pallas output mismatch vs reference"

    print("KERNEL_OK")
</pallas_src>

<mosaic_0001>
module attributes {stable_mosaic.version = 11 : i64} {
  func.func @isab_kernel(%arg0: i32, %arg1: memref<64x16xf32, #tpu.memory_space<vmem>>, %arg2: memref<8x32xf32, #tpu.memory_space<vmem>>, %arg3: memref<16x96xf32, #tpu.memory_space<vmem>>, %arg4: memref<1x96xf32, #tpu.memory_space<vmem>>, %arg5: memref<32x64xf32, #tpu.memory_space<vmem>>, %arg6: memref<1x64xf32, #tpu.memory_space<vmem>>, %arg7: memref<32x32xf32, #tpu.memory_space<vmem>>, %arg8: memref<1x32xf32, #tpu.memory_space<vmem>>, %arg9: memref<32x32xf32, #tpu.memory_space<vmem>>, %arg10: memref<1x32xf32, #tpu.memory_space<vmem>>, %arg11: memref<8x256xf32, #tpu.memory_space<vmem>>) attributes {dimension_semantics = [#tpu.dimension_semantics<parallel>], iteration_bounds = array<i64: 1>, scalar_prefetch = 0 : i64, scratch_operands = 0 : i64, tpu.core_type = #tpu.core_type<tc>, window_params = [{transform_indices = @transform_0, window_bounds = array<i64: 64, 16>}, {pipeline_mode = #tpu.pipeline_mode<synchronous>, transform_indices = @transform_1, window_bounds = array<i64: 8, 32>}, {pipeline_mode = #tpu.pipeline_mode<synchronous>, transform_indices = @transform_2, window_bounds = array<i64: 16, 96>}, {pipeline_mode = #tpu.pipeline_mode<synchronous>, transform_indices = @transform_3, window_bounds = array<i64: 1, 96>}, {pipeline_mode = #tpu.pipeline_mode<synchronous>, transform_indices = @transform_4, window_bounds = array<i64: 32, 64>}, {pipeline_mode = #tpu.pipeline_mode<synchronous>, transform_indices = @transform_5, window_bounds = array<i64: 1, 64>}, {pipeline_mode = #tpu.pipeline_mode<synchronous>, transform_indices = @transform_6, window_bounds = array<i64: 32, 32>}, {pipeline_mode = #tpu.pipeline_mode<synchronous>, transform_indices = @transform_7, window_bounds = array<i64: 1, 32>}, {pipeline_mode = #tpu.pipeline_mode<synchronous>, transform_indices = @transform_8, window_bounds = array<i64: 32, 32>}, {pipeline_mode = #tpu.pipeline_mode<synchronous>, transform_indices = @transform_9, window_bounds = array<i64: 1, 32>}, {transform_indices = @transform_10, window_bounds = array<i64: 8, 256>}]} {
    %c0 = arith.constant 0 : index
    %c0_0 = arith.constant 0 : index
    %0 = vector.load %arg1[%c0, %c0_0] : memref<64x16xf32, #tpu.memory_space<vmem>>, vector<64x16xf32>
    %c0_1 = arith.constant 0 : index
    %c0_2 = arith.constant 0 : index
    %1 = vector.load %arg3[%c0_1, %c0_2] : memref<16x96xf32, #tpu.memory_space<vmem>>, vector<16x96xf32>
    %cst = arith.constant dense<0.000000e+00> : vector<64x96xf32>
    %2 = tpu.matmul %0, %1, %cst {dimension_numbers = #tpu.dot_dimension_numbers<[1], [0], [0], [1], [0, 0, 1, 1], [], []>} : vector<64x16xf32>, vector<16x96xf32>, vector<64x96xf32> -> vector<64x96xf32>
    %c0_3 = arith.constant 0 : index
    %c0_4 = arith.constant 0 : index
    %3 = vector.load %arg4[%c0_3, %c0_4] : memref<1x96xf32, #tpu.memory_space<vmem>>, vector<1x96xf32>
    %4 = vector.broadcast %3 : vector<1x96xf32> to vector<64x96xf32>
    %5 = arith.addf %2, %4 : vector<64x96xf32>
    %6 = vector.extract_strided_slice %5 {offsets = [0, 0], sizes = [64, 32], strides = [1, 1]} : vector<64x96xf32> to vector<64x32xf32>
    %7 = vector.extract_strided_slice %5 {offsets = [0, 32], sizes = [64, 32], strides = [1, 1]} : vector<64x96xf32> to vector<64x32xf32>
    %8 = vector.extract_strided_slice %5 {offsets = [0, 64], sizes = [64, 32], strides = [1, 1]} : vector<64x96xf32> to vector<64x32xf32>
    %c0_5 = arith.constant 0 : index
    %c0_6 = arith.constant 0 : index
    %9 = vector.load %arg2[%c0_5, %c0_6] : memref<8x32xf32, #tpu.memory_space<vmem>>, vector<8x32xf32>
    %10 = vector.shape_cast %9 : vector<8x32xf32> to vector<1x8x32xf32>
    %11 = vector.shape_cast %10 : vector<1x8x32xf32> to vector<1x8x32xf32>
    %12 = vector.broadcast %11 : vector<1x8x32xf32> to vector<8x8x32xf32>
    %13 = vector.shape_cast %12 : vector<8x8x32xf32> to vector<64x32xf32>
    %c0_7 = arith.constant 0 : index
    %c0_8 = arith.constant 0 : index
    %14 = vector.load %arg7[%c0_7, %c0_8] : memref<32x32xf32, #tpu.memory_space<vmem>>, vector<32x32xf32>
    %c0_9 = arith.constant 0 : index
    %c0_10 = arith.constant 0 : index
    %15 = vector.load %arg8[%c0_9, %c0_10] : memref<1x32xf32, #tpu.memory_space<vmem>>, vector<1x32xf32>
    %16 = vector.extract_strided_slice %13 {offsets = [0, 0], sizes = [64, 8], strides = [1, 1]} : vector<64x32xf32> to vector<64x8xf32>
    %17 = vector.shape_cast %16 : vector<64x8xf32> to vector<8x8x8xf32>
    %18 = vector.extract_strided_slice %6 {offsets = [0, 0], sizes = [64, 8], strides = [1, 1]} : vector<64x32xf32> to vector<64x8xf32>
    %19 = vector.shape_cast %18 : vector<64x8xf32> to vector<8x8x8xf32>
    %20 = vector.extract_strided_slice %7 {offsets = [0, 0], sizes = [64, 8], strides = [1, 1]} : vector<64x32xf32> to vector<64x8xf32>
    %21 = vector.shape_cast %20 : vector<64x8xf32> to vector<8x8x8xf32>
    "tpu.trace_start"() <{level = 10 : i32, message = "bqd,bkd->bqk"}> : () -> ()
    %cst_11 = arith.constant dense<0.000000e+00> : vector<8x8x8xf32>
    %22 = tpu.matmul %17, %19, %cst_11 {dimension_numbers = #tpu.dot_dimension_numbers<[2], [2], [1], [1], [0, 0, 0, 1, 1, 1], [0], [0]>} : vector<8x8x8xf32>, vector<8x8x8xf32>, vector<8x8x8xf32> -> vector<8x8x8xf32>
    "tpu.trace_stop"() : () -> ()
    %cst_12 = arith.constant dense<0xFF800000> : vector<8x8xf32>
    %23 = vector.multi_reduction <maximumf>, %22, %cst_12 [2] : vector<8x8x8xf32> to vector<8x8xf32>
    %24 = vector.shape_cast %23 : vector<8x8xf32> to vector<8x8x1xf32>
    %25 = vector.broadcast %24 : vector<8x8x1xf32> to vector<8x8x8xf32>
    %26 = arith.subf %22, %25 : vector<8x8x8xf32>
    %27 = math.exp %26 : vector<8x8x8xf32>
    %cst_13 = arith.constant dense<0.000000e+00> : vector<8x8xf32>
    %28 = vector.multi_reduction <add>, %27, %cst_13 [2] : vector<8x8x8xf32> to vector<8x8xf32>
    %29 = vector.shape_cast %28 : vector<8x8xf32> to vector<8x8x1xf32>
    %30 = tpu.reciprocal %29 : vector<8x8x1xf32> -> vector<8x8x1xf32>
    %31 = vector.broadcast %30 : vector<8x8x1xf32> to vector<8x8x8xf32>
    %32 = arith.mulf %27, %31 : vector<8x8x8xf32>
    "tpu.trace_start"() <{level = 10 : i32, message = "bqk,bkd->bqd"}> : () -> ()
    %cst_14 = arith.constant dense<0.000000e+00> : vector<8x8x8xf32>
    %33 = tpu.matmul %32, %21, %cst_14 {dimension_numbers = #tpu.dot_dimension_numbers<[2], [1], [1], [2], [0, 0, 0, 1, 1, 2], [0], [0]>} : vector<8x8x8xf32>, vector<8x8x8xf32>, vector<8x8x8xf32> -> vector<8x8x8xf32>
    "tpu.trace_stop"() : () -> ()
    %34 = arith.addf %17, %33 : vector<8x8x8xf32>
    %35 = vector.shape_cast %34 : vector<8x8x8xf32> to vector<64x8xf32>
    %36 = vector.extract_strided_slice %13 {offsets = [0, 8], sizes = [64, 8], strides = [1, 1]} : vector<64x32xf32> to vector<64x8xf32>
    %37 = vector.shape_cast %36 : vector<64x8xf32> to vector<8x8x8xf32>
    %38 = vector.extract_strided_slice %6 {offsets = [0, 8], sizes = [64, 8], strides = [1, 1]} : vector<64x32xf32> to vector<64x8xf32>
    %39 = vector.shape_cast %38 : vector<64x8xf32> to vector<8x8x8xf32>
    %40 = vector.extract_strided_slice %7 {offsets = [0, 8], sizes = [64, 8], strides = [1, 1]} : vector<64x32xf32> to vector<64x8xf32>
    %41 = vector.shape_cast %40 : vector<64x8xf32> to vector<8x8x8xf32>
    "tpu.trace_start"() <{level = 10 : i32, message = "bqd,bkd->bqk"}> : () -> ()
    %cst_15 = arith.constant dense<0.000000e+00> : vector<8x8x8xf32>
    %42 = tpu.matmul %37, %39, %cst_15 {dimension_numbers = #tpu.dot_dimension_numbers<[2], [2], [1], [1], [0, 0, 0, 1, 1, 1], [0], [0]>} : vector<8x8x8xf32>, vector<8x8x8xf32>, vector<8x8x8xf32> -> vector<8x8x8xf32>
    "tpu.trace_stop"() : () -> ()
    %cst_16 = arith.constant dense<0xFF800000> : vector<8x8xf32>
    %43 = vector.multi_reduction <maximumf>, %42, %cst_16 [2] : vector<8x8x8xf32> to vector<8x8xf32>
    %44 = vector.shape_cast %43 : vector<8x8xf32> to vector<8x8x1xf32>
    %45 = vector.broadcast %44 : vector<8x8x1xf32> to vector<8x8x8xf32>
    %46 = arith.subf %42, %45 : vector<8x8x8xf32>
    %47 = math.exp %46 : vector<8x8x8xf32>
    %cst_17 = arith.constant dense<0.000000e+00> : vector<8x8xf32>
    %48 = vector.multi_reduction <add>, %47, %cst_17 [2] : vector<8x8x8xf32> to vector<8x8xf32>
    %49 = vector.shape_cast %48 : vector<8x8xf32> to vector<8x8x1xf32>
    %50 = tpu.reciprocal %49 : vector<8x8x1xf32> -> vector<8x8x1xf32>
    %51 = vector.broadcast %50 : vector<8x8x1xf32> to vector<8x8x8xf32>
    %52 = arith.mulf %47, %51 : vector<8x8x8xf32>
    "tpu.trace_start"() <{level = 10 : i32, message = "bqk,bkd->bqd"}> : () -> ()
    %cst_18 = arith.constant dense<0.000000e+00> : vector<8x8x8xf32>
    %53 = tpu.matmul %52, %41, %cst_18 {dimension_numbers = #tpu.dot_dimension_numbers<[2], [1], [1], [2], [0, 0, 0, 1, 1, 2], [0], [0]>} : vector<8x8x8xf32>, vector<8x8x8xf32>, vector<8x8x8xf32> -> vector<8x8x8xf32>
    "tpu.trace_stop"() : () -> ()
    %54 = arith.addf %37, %53 : vector<8x8x8xf32>
    %55 = vector.shape_cast %54 : vector<8x8x8xf32> to vector<64x8xf32>
    %56 = vector.extract_strided_slice %13 {offsets = [0, 16], sizes = [64, 8], strides = [1, 1]} : vector<64x32xf32> to vector<64x8xf32>
    %57 = vector.shape_cast %56 : vector<64x8xf32> to vector<8x8x8xf32>
    %58 = vector.extract_strided_slice %6 {offsets = [0, 16], sizes = [64, 8], strides = [1, 1]} : vector<64x32xf32> to vector<64x8xf32>
    %59 = vector.shape_cast %58 : vector<64x8xf32> to vector<8x8x8xf32>
    %60 = vector.extract_strided_slice %7 {offsets = [0, 16], sizes = [64, 8], strides = [1, 1]} : vector<64x32xf32> to vector<64x8xf32>
    %61 = vector.shape_cast %60 : vector<64x8xf32> to vector<8x8x8xf32>
    "tpu.trace_start"() <{level = 10 : i32, message = "bqd,bkd->bqk"}> : () -> ()
    %cst_19 = arith.constant dense<0.000000e+00> : vector<8x8x8xf32>
    %62 = tpu.matmul %57, %59, %cst_19 {dimension_numbers = #tpu.dot_dimension_numbers<[2], [2], [1], [1], [0, 0, 0, 1, 1, 1], [0], [0]>} : vector<8x8x8xf32>, vector<8x8x8xf32>, vector<8x8x8xf32> -> vector<8x8x8xf32>
    "tpu.trace_stop"() : () -> ()
    %cst_20 = arith.constant dense<0xFF800000> : vector<8x8xf32>
    %63 = vector.multi_reduction <maximumf>, %62, %cst_20 [2] : vector<8x8x8xf32> to vector<8x8xf32>
    %64 = vector.shape_cast %63 : vector<8x8xf32> to vector<8x8x1xf32>
    %65 = vector.broadcast %64 : vector<8x8x1xf32> to vector<8x8x8xf32>
    %66 = arith.subf %62, %65 : vector<8x8x8xf32>
    %67 = math.exp %66 : vector<8x8x8xf32>
    %cst_21 = arith.constant dense<0.000000e+00> : vector<8x8xf32>
    %68 = vector.multi_reduction <add>, %67, %cst_21 [2] : vector<8x8x8xf32> to vector<8x8xf32>
    %69 = vector.shape_cast %68 : vector<8x8xf32> to vector<8x8x1xf32>
    %70 = tpu.reciprocal %69 : vector<8x8x1xf32> -> vector<8x8x1xf32>
    %71 = vector.broadcast %70 : vector<8x8x1xf32> to vector<8x8x8xf32>
    %72 = arith.mulf %67, %71 : vector<8x8x8xf32>
    "tpu.trace_start"() <{level = 10 : i32, message = "bqk,bkd->bqd"}> : () -> ()
    %cst_22 = arith.constant dense<0.000000e+00> : vector<8x8x8xf32>
    %73 = tpu.matmul %72, %61, %cst_22 {dimension_numbers = #tpu.dot_dimension_numbers<[2], [1], [1], [2], [0, 0, 0, 1, 1, 2], [0], [0]>} : vector<8x8x8xf32>, vector<8x8x8xf32>, vector<8x8x8xf32> -> vector<8x8x8xf32>
    "tpu.trace_stop"() : () -> ()
    %74 = arith.addf %57, %73 : vector<8x8x8xf32>
    %75 = vector.shape_cast %74 : vector<8x8x8xf32> to vector<64x8xf32>
    %76 = vector.extract_strided_slice %13 {offsets = [0, 24], sizes = [64, 8], strides = [1, 1]} : vector<64x32xf32> to vector<64x8xf32>
    %77 = vector.shape_cast %76 : vector<64x8xf32> to vector<8x8x8xf32>
    %78 = vector.extract_strided_slice %6 {offsets = [0, 24], sizes = [64, 8], strides = [1, 1]} : vector<64x32xf32> to vector<64x8xf32>
    %79 = vector.shape_cast %78 : vector<64x8xf32> to vector<8x8x8xf32>
    %80 = vector.extract_strided_slice %7 {offsets = [0, 24], sizes = [64, 8], strides = [1, 1]} : vector<64x32xf32> to vector<64x8xf32>
    %81 = vector.shape_cast %80 : vector<64x8xf32> to vector<8x8x8xf32>
    "tpu.trace_start"() <{level = 10 : i32, message = "bqd,bkd->bqk"}> : () -> ()
    %cst_23 = arith.constant dense<0.000000e+00> : vector<8x8x8xf32>
    %82 = tpu.matmul %77, %79, %cst_23 {dimension_numbers = #tpu.dot_dimension_numbers<[2], [2], [1], [1], [0, 0, 0, 1, 1, 1], [0], [0]>} : vector<8x8x8xf32>, vector<8x8x8xf32>, vector<8x8x8xf32> -> vector<8x8x8xf32>
    "tpu.trace_stop"() : () -> ()
    %cst_24 = arith.constant dense<0xFF800000> : vector<8x8xf32>
    %83 = vector.multi_reduction <maximumf>, %82, %cst_24 [2] : vector<8x8x8xf32> to vector<8x8xf32>
    %84 = vector.shape_cast %83 : vector<8x8xf32> to vector<8x8x1xf32>
    %85 = vector.broadcast %84 : vector<8x8x1xf32> to vector<8x8x8xf32>
    %86 = arith.subf %82, %85 : vector<8x8x8xf32>
    %87 = math.exp %86 : vector<8x8x8xf32>
    %cst_25 = arith.constant dense<0.000000e+00> : vector<8x8xf32>
    %88 = vector.multi_reduction <add>, %87, %cst_25 [2] : vector<8x8x8xf32> to vector<8x8xf32>
    %89 = vector.shape_cast %88 : vector<8x8xf32> to vector<8x8x1xf32>
    %90 = tpu.reciprocal %89 : vector<8x8x1xf32> -> vector<8x8x1xf32>
    %91 = vector.broadcast %90 : vector<8x8x1xf32> to vector<8x8x8xf32>
    %92 = arith.mulf %87, %91 : vector<8x8x8xf32>
    "tpu.trace_start"() <{level = 10 : i32, message = "bqk,bkd->bqd"}> : () -> ()
    %cst_26 = arith.constant dense<0.000000e+00> : vector<8x8x8xf32>
    %93 = tpu.matmul %92, %81, %cst_26 {dimension_numbers = #tpu.dot_dimension_numbers<[2], [1], [1], [2], [0, 0, 0, 1, 1, 2], [0], [0]>} : vector<8x8x8xf32>, vector<8x8x8xf32>, vector<8x8x8xf32> -> vector<8x8x8xf32>
    "tpu.trace_stop"() : () -> ()
    %94 = arith.addf %77, %93 : vector<8x8x8xf32>
    %95 = vector.shape_cast %94 : vector<8x8x8xf32> to vector<64x8xf32>
    %96 = tpu.concatenate %35, %55, %75, %95 in 1 : vector<64x8xf32>, vector<64x8xf32>, vector<64x8xf32>, vector<64x8xf32> -> vector<64x32xf32>
    %cst_27 = arith.constant dense<0.000000e+00> : vector<64x32xf32>
    %97 = tpu.matmul %96, %14, %cst_27 {dimension_numbers = #tpu.dot_dimension_numbers<[1], [0], [0], [1], [0, 0, 1, 1], [], []>} : vector<64x32xf32>, vector<32x32xf32>, vector<64x32xf32> -> vector<64x32xf32>
    %98 = vector.broadcast %15 : vector<1x32xf32> to vector<64x32xf32>
    %99 = arith.addf %97, %98 : vector<64x32xf32>
    %cst_28 = arith.constant 0.000000e+00 : f32
    %100 = vector.broadcast %cst_28 : f32 to vector<64x32xf32>
    %101 = arith.maximumf %99, %100 : vector<64x32xf32>
    %102 = arith.addf %96, %101 : vector<64x32xf32>
    %c0_29 = arith.constant 0 : index
    %c0_30 = arith.constant 0 : index
    %103 = vector.load %arg5[%c0_29, %c0_30] : memref<32x64xf32, #tpu.memory_space<vmem>>, vector<32x64xf32>
    %cst_31 = arith.constant dense<0.000000e+00> : vector<64x64xf32>
    %104 = tpu.matmul %102, %103, %cst_31 {dimension_numbers = #tpu.dot_dimension_numbers<[1], [0], [0], [1], [0, 0, 1, 1], [], []>} : vector<64x32xf32>, vector<32x64xf32>, vector<64x64xf32> -> vector<64x64xf32>
    %c0_32 = arith.constant 0 : index
    %c0_33 = arith.constant 0 : index
    %105 = vector.load %arg6[%c0_32, %c0_33] : memref<1x64xf32, #tpu.memory_space<vmem>>, vector<1x64xf32>
    %106 = vector.broadcast %105 : vector<1x64xf32> to vector<64x64xf32>
    %107 = arith.addf %104, %106 : vector<64x64xf32>
    %108 = vector.extract_strided_slice %107 {offsets = [0, 0], sizes = [64, 32], strides = [1, 1]} : vector<64x64xf32> to vector<64x32xf32>
    %109 = vector.extract_strided_slice %107 {offsets = [0, 32], sizes = [64, 32], strides = [1, 1]} : vector<64x64xf32> to vector<64x32xf32>
    %c0_34 = arith.constant 0 : index
    %c0_35 = arith.constant 0 : index
    %110 = vector.load %arg9[%c0_34, %c0_35] : memref<32x32xf32, #tpu.memory_space<vmem>>, vector<32x32xf32>
    %c0_36 = arith.constant 0 : index
    %c0_37 = arith.constant 0 : index
    %111 = vector.load %arg10[%c0_36, %c0_37] : memref<1x32xf32, #tpu.memory_space<vmem>>, vector<1x32xf32>
    %112 = vector.extract_strided_slice %8 {offsets = [0, 0], sizes = [64, 8], strides = [1, 1]} : vector<64x32xf32> to vector<64x8xf32>
    %113 = vector.shape_cast %112 : vector<64x8xf32> to vector<8x8x8xf32>
    %114 = vector.extract_strided_slice %108 {offsets = [0, 0], sizes = [64, 8], strides = [1, 1]} : vector<64x32xf32> to vector<64x8xf32>
    %115 = vector.shape_cast %114 : vector<64x8xf32> to vector<8x8x8xf32>
    %116 = vector.extract_strided_slice %109 {offsets = [0, 0], sizes = [64, 8], strides = [1, 1]} : vector<64x32xf32> to vector<64x8xf32>
    %117 = vector.shape_cast %116 : vector<64x8xf32> to vector<8x8x8xf32>
    "tpu.trace_start"() <{level = 10 : i32, message = "bqd,bkd->bqk"}> : () -> ()
    %cst_38 = arith.constant dense<0.000000e+00> : vector<8x8x8xf32>
    %118 = tpu.matmul %113, %115, %cst_38 {dimension_numbers = #tpu.dot_dimension_numbers<[2], [2], [1], [1], [0, 0, 0, 1, 1, 1], [0], [0]>} : vector<8x8x8xf32>, vector<8x8x8xf32>, vector<8x8x8xf32> -> vector<8x8x8xf32>
    "tpu.trace_stop"() : () -> ()
    %cst_39 = arith.constant dense<0xFF800000> : vector<8x8xf32>
    %119 = vector.multi_reduction <maximumf>, %118, %cst_39 [2] : vector<8x8x8xf32> to vector<8x8xf32>
    %120 = vector.shape_cast %119 : vector<8x8xf32> to vector<8x8x1xf32>
    %121 = vector.broadcast %120 : vector<8x8x1xf32> to vector<8x8x8xf32>
    %122 = arith.subf %118, %121 : vector<8x8x8xf32>
    %123 = math.exp %122 : vector<8x8x8xf32>
    %cst_40 = arith.constant dense<0.000000e+00> : vector<8x8xf32>
    %124 = vector.multi_reduction <add>, %123, %cst_40 [2] : vector<8x8x8xf32> to vector<8x8xf32>
    %125 = vector.shape_cast %124 : vector<8x8xf32> to vector<8x8x1xf32>
    %126 = tpu.reciprocal %125 : vector<8x8x1xf32> -> vector<8x8x1xf32>
    %127 = vector.broadcast %126 : vector<8x8x1xf32> to vector<8x8x8xf32>
    %128 = arith.mulf %123, %127 : vector<8x8x8xf32>
    "tpu.trace_start"() <{level = 10 : i32, message = "bqk,bkd->bqd"}> : () -> ()
    %cst_41 = arith.constant dense<0.000000e+00> : vector<8x8x8xf32>
    %129 = tpu.matmul %128, %117, %cst_41 {dimension_numbers = #tpu.dot_dimension_numbers<[2], [1], [1], [2], [0, 0, 0, 1, 1, 2], [0], [0]>} : vector<8x8x8xf32>, vector<8x8x8xf32>, vector<8x8x8xf32> -> vector<8x8x8xf32>
    "tpu.trace_stop"() : () -> ()
    %130 = arith.addf %113, %129 : vector<8x8x8xf32>
    %131 = vector.shape_cast %130 : vector<8x8x8xf32> to vector<64x8xf32>
    %132 = vector.extract_strided_slice %8 {offsets = [0, 8], sizes = [64, 8], strides = [1, 1]} : vector<64x32xf32> to vector<64x8xf32>
    %133 = vector.shape_cast %132 : vector<64x8xf32> to vector<8x8x8xf32>
    %134 = vector.extract_strided_slice %108 {offsets = [0, 8], sizes = [64, 8], strides = [1, 1]} : vector<64x32xf32> to vector<64x8xf32>
    %135 = vector.shape_cast %134 : vector<64x8xf32> to vector<8x8x8xf32>
    %136 = vector.extract_strided_slice %109 {offsets = [0, 8], sizes = [64, 8], strides = [1, 1]} : vector<64x32xf32> to vector<64x8xf32>
    %137 = vector.shape_cast %136 : vector<64x8xf32> to vector<8x8x8xf32>
    "tpu.trace_start"() <{level = 10 : i32, message = "bqd,bkd->bqk"}> : () -> ()
    %cst_42 = arith.constant dense<0.000000e+00> : vector<8x8x8xf32>
    %138 = tpu.matmul %133, %135, %cst_42 {dimension_numbers = #tpu.dot_dimension_numbers<[2], [2], [1], [1], [0, 0, 0, 1, 1, 1], [0], [0]>} : vector<8x8x8xf32>, vector<8x8x8xf32>, vector<8x8x8xf32> -> vector<8x8x8xf32>
    "tpu.trace_stop"() : () -> ()
    %cst_43 = arith.constant dense<0xFF800000> : vector<8x8xf32>
    %139 = vector.multi_reduction <maximumf>, %138, %cst_43 [2] : vector<8x8x8xf32> to vector<8x8xf32>
    %140 = vector.shape_cast %139 : vector<8x8xf32> to vector<8x8x1xf32>
    %141 = vector.broadcast %140 : vector<8x8x1xf32> to vector<8x8x8xf32>
    %142 = arith.subf %138, %141 : vector<8x8x8xf32>
    %143 = math.exp %142 : vector<8x8x8xf32>
    %cst_44 = arith.constant dense<0.000000e+00> : vector<8x8xf32>
    %144 = vector.multi_reduction <add>, %143, %cst_44 [2] : vector<8x8x8xf32> to vector<8x8xf32>
    %145 = vector.shape_cast %144 : vector<8x8xf32> to vector<8x8x1xf32>
    %146 = tpu.reciprocal %145 : vector<8x8x1xf32> -> vector<8x8x1xf32>
    %147 = vector.broadcast %146 : vector<8x8x1xf32> to vector<8x8x8xf32>
    %148 = arith.mulf %143, %147 : vector<8x8x8xf32>
    "tpu.trace_start"() <{level = 10 : i32, message = "bqk,bkd->bqd"}> : () -> ()
    %cst_45 = arith.constant dense<0.000000e+00> : vector<8x8x8xf32>
    %149 = tpu.matmul %148, %137, %cst_45 {dimension_numbers = #tpu.dot_dimension_numbers<[2], [1], [1], [2], [0, 0, 0, 1, 1, 2], [0], [0]>} : vector<8x8x8xf32>, vector<8x8x8xf32>, vector<8x8x8xf32> -> vector<8x8x8xf32>
    "tpu.trace_stop"() : () -> ()
    %150 = arith.addf %133, %149 : vector<8x8x8xf32>
    %151 = vector.shape_cast %150 : vector<8x8x8xf32> to vector<64x8xf32>
    %152 = vector.extract_strided_slice %8 {offsets = [0, 16], sizes = [64, 8], strides = [1, 1]} : vector<64x32xf32> to vector<64x8xf32>
    %153 = vector.shape_cast %152 : vector<64x8xf32> to vector<8x8x8xf32>
    %154 = vector.extract_strided_slice %108 {offsets = [0, 16], sizes = [64, 8], strides = [1, 1]} : vector<64x32xf32> to vector<64x8xf32>
    %155 = vector.shape_cast %154 : vector<64x8xf32> to vector<8x8x8xf32>
    %156 = vector.extract_strided_slice %109 {offsets = [0, 16], sizes = [64, 8], strides = [1, 1]} : vector<64x32xf32> to vector<64x8xf32>
    %157 = vector.shape_cast %156 : vector<64x8xf32> to vector<8x8x8xf32>
    "tpu.trace_start"() <{level = 10 : i32, message = "bqd,bkd->bqk"}> : () -> ()
    %cst_46 = arith.constant dense<0.000000e+00> : vector<8x8x8xf32>
    %158 = tpu.matmul %153, %155, %cst_46 {dimension_numbers = #tpu.dot_dimension_numbers<[2], [2], [1], [1], [0, 0, 0, 1, 1, 1], [0], [0]>} : vector<8x8x8xf32>, vector<8x8x8xf32>, vector<8x8x8xf32> -> vector<8x8x8xf32>
    "tpu.trace_stop"() : () -> ()
    %cst_47 = arith.constant dense<0xFF800000> : vector<8x8xf32>
    %159 = vector.multi_reduction <maximumf>, %158, %cst_47 [2] : vector<8x8x8xf32> to vector<8x8xf32>
    %160 = vector.shape_cast %159 : vector<8x8xf32> to vector<8x8x1xf32>
    %161 = vector.broadcast %160 : vector<8x8x1xf32> to vector<8x8x8xf32>
    %162 = arith.subf %158, %161 : vector<8x8x8xf32>
    %163 = math.exp %162 : vector<8x8x8xf32>
    %cst_48 = arith.constant dense<0.000000e+00> : vector<8x8xf32>
    %164 = vector.multi_reduction <add>, %163, %cst_48 [2] : vector<8x8x8xf32> to vector<8x8xf32>
    %165 = vector.shape_cast %164 : vector<8x8xf32> to vector<8x8x1xf32>
    %166 = tpu.reciprocal %165 : vector<8x8x1xf32> -> vector<8x8x1xf32>
    %167 = vector.broadcast %166 : vector<8x8x1xf32> to vector<8x8x8xf32>
    %168 = arith.mulf %163, %167 : vector<8x8x8xf32>
    "tpu.trace_start"() <{level = 10 : i32, message = "bqk,bkd->bqd"}> : () -> ()
    %cst_49 = arith.constant dense<0.000000e+00> : vector<8x8x8xf32>
    %169 = tpu.matmul %168, %157, %cst_49 {dimension_numbers = #tpu.dot_dimension_numbers<[2], [1], [1], [2], [0, 0, 0, 1, 1, 2], [0], [0]>} : vector<8x8x8xf32>, vector<8x8x8xf32>, vector<8x8x8xf32> -> vector<8x8x8xf32>
    "tpu.trace_stop"() : () -> ()
    %170 = arith.addf %153, %169 : vector<8x8x8xf32>
    %171 = vector.shape_cast %170 : vector<8x8x8xf32> to vector<64x8xf32>
    %172 = vector.extract_strided_slice %8 {offsets = [0, 24], sizes = [64, 8], strides = [1, 1]} : vector<64x32xf32> to vector<64x8xf32>
    %173 = vector.shape_cast %172 : vector<64x8xf32> to vector<8x8x8xf32>
    %174 = vector.extract_strided_slice %108 {offsets = [0, 24], sizes = [64, 8], strides = [1, 1]} : vector<64x32xf32> to vector<64x8xf32>
    %175 = vector.shape_cast %174 : vector<64x8xf32> to vector<8x8x8xf32>
    %176 = vector.extract_strided_slice %109 {offsets = [0, 24], sizes = [64, 8], strides = [1, 1]} : vector<64x32xf32> to vector<64x8xf32>
    %177 = vector.shape_cast %176 : vector<64x8xf32> to vector<8x8x8xf32>
    "tpu.trace_start"() <{level = 10 : i32, message = "bqd,bkd->bqk"}> : () -> ()
    %cst_50 = arith.constant dense<0.000000e+00> : vector<8x8x8xf32>
    %178 = tpu.matmul %173, %175, %cst_50 {dimension_numbers = #tpu.dot_dimension_numbers<[2], [2], [1], [1], [0, 0, 0, 1, 1, 1], [0], [0]>} : vector<8x8x8xf32>, vector<8x8x8xf32>, vector<8x8x8xf32> -> vector<8x8x8xf32>
    "tpu.trace_stop"() : () -> ()
    %cst_51 = arith.constant dense<0xFF800000> : vector<8x8xf32>
    %179 = vector.multi_reduction <maximumf>, %178, %cst_51 [2] : vector<8x8x8xf32> to vector<8x8xf32>
    %180 = vector.shape_cast %179 : vector<8x8xf32> to vector<8x8x1xf32>
    %181 = vector.broadcast %180 : vector<8x8x1xf32> to vector<8x8x8xf32>
    %182 = arith.subf %178, %181 : vector<8x8x8xf32>
    %183 = math.exp %182 : vector<8x8x8xf32>
    %cst_52 = arith.constant dense<0.000000e+00> : vector<8x8xf32>
    %184 = vector.multi_reduction <add>, %183, %cst_52 [2] : vector<8x8x8xf32> to vector<8x8xf32>
    %185 = vector.shape_cast %184 : vector<8x8xf32> to vector<8x8x1xf32>
    %186 = tpu.reciprocal %185 : vector<8x8x1xf32> -> vector<8x8x1xf32>
    %187 = vector.broadcast %186 : vector<8x8x1xf32> to vector<8x8x8xf32>
    %188 = arith.mulf %183, %187 : vector<8x8x8xf32>
    "tpu.trace_start"() <{level = 10 : i32, message = "bqk,bkd->bqd"}> : () -> ()
    %cst_53 = arith.constant dense<0.000000e+00> : vector<8x8x8xf32>
    %189 = tpu.matmul %188, %177, %cst_53 {dimension_numbers = #tpu.dot_dimension_numbers<[2], [1], [1], [2], [0, 0, 0, 1, 1, 2], [0], [0]>} : vector<8x8x8xf32>, vector<8x8x8xf32>, vector<8x8x8xf32> -> vector<8x8x8xf32>
    "tpu.trace_stop"() : () -> ()
    %190 = arith.addf %173, %189 : vector<8x8x8xf32>
    %191 = vector.shape_cast %190 : vector<8x8x8xf32> to vector<64x8xf32>
    %192 = tpu.concatenate %131, %151, %171, %191 in 1 : vector<64x8xf32>, vector<64x8xf32>, vector<64x8xf32>, vector<64x8xf32> -> vector<64x32xf32>
    %cst_54 = arith.constant dense<0.000000e+00> : vector<64x32xf32>
    %193 = tpu.matmul %192, %110, %cst_54 {dimension_numbers = #tpu.dot_dimension_numbers<[1], [0], [0], [1], [0, 0, 1, 1], [], []>} : vector<64x32xf32>, vector<32x32xf32>, vector<64x32xf32> -> vector<64x32xf32>
    %194 = vector.broadcast %111 : vector<1x32xf32> to vector<64x32xf32>
    %195 = arith.addf %193, %194 : vector<64x32xf32>
    %cst_55 = arith.constant 0.000000e+00 : f32
    %196 = vector.broadcast %cst_55 : f32 to vector<64x32xf32>
    %197 = arith.maximumf %195, %196 : vector<64x32xf32>
    %198 = arith.addf %192, %197 : vector<64x32xf32>
    %199 = vector.shape_cast %198 : vector<64x32xf32> to vector<8x8x32xf32>
    %200 = vector.extract_strided_slice %199 {offsets = [0, 0, 0], sizes = [1, 8, 32], strides = [1, 1, 1]} : vector<8x8x32xf32> to vector<1x8x32xf32>
    %201 = vector.shape_cast %200 : vector<1x8x32xf32> to vector<8x32xf32>
    %202 = vector.extract_strided_slice %199 {offsets = [1, 0, 0], sizes = [1, 8, 32], strides = [1, 1, 1]} : vector<8x8x32xf32> to vector<1x8x32xf32>
    %203 = vector.shape_cast %202 : vector<1x8x32xf32> to vector<8x32xf32>
    %204 = vector.extract_strided_slice %199 {offsets = [2, 0, 0], sizes = [1, 8, 32], strides = [1, 1, 1]} : vector<8x8x32xf32> to vector<1x8x32xf32>
    %205 = vector.shape_cast %204 : vector<1x8x32xf32> to vector<8x32xf32>
    %206 = vector.extract_strided_slice %199 {offsets = [3, 0, 0], sizes = [1, 8, 32], strides = [1, 1, 1]} : vector<8x8x32xf32> to vector<1x8x32xf32>
    %207 = vector.shape_cast %206 : vector<1x8x32xf32> to vector<8x32xf32>
    %208 = vector.extract_strided_slice %199 {offsets = [4, 0, 0], sizes = [1, 8, 32], strides = [1, 1, 1]} : vector<8x8x32xf32> to vector<1x8x32xf32>
    %209 = vector.shape_cast %208 : vector<1x8x32xf32> to vector<8x32xf32>
    %210 = vector.extract_strided_slice %199 {offsets = [5, 0, 0], sizes = [1, 8, 32], strides = [1, 1, 1]} : vector<8x8x32xf32> to vector<1x8x32xf32>
    %211 = vector.shape_cast %210 : vector<1x8x32xf32> to vector<8x32xf32>
    %212 = vector.extract_strided_slice %199 {offsets = [6, 0, 0], sizes = [1, 8, 32], strides = [1, 1, 1]} : vector<8x8x32xf32> to vector<1x8x32xf32>
    %213 = vector.shape_cast %212 : vector<1x8x32xf32> to vector<8x32xf32>
    %214 = vector.extract_strided_slice %199 {offsets = [7, 0, 0], sizes = [1, 8, 32], strides = [1, 1, 1]} : vector<8x8x32xf32> to vector<1x8x32xf32>
    %215 = vector.shape_cast %214 : vector<1x8x32xf32> to vector<8x32xf32>
    %216 = tpu.concatenate %201, %203, %205, %207, %209, %211, %213, %215 in 1 : vector<8x32xf32>, vector<8x32xf32>, vector<8x32xf32>, vector<8x32xf32>, vector<8x32xf32>, vector<8x32xf32>, vector<8x32xf32>, vector<8x32xf32> -> vector<8x256xf32>
    %c0_56 = arith.constant 0 : index
    %c0_57 = arith.constant 0 : index
    %217 = vector.load %arg11[%c0_56, %c0_57] : memref<8x256xf32, #tpu.memory_space<vmem>>, vector<8x256xf32>
    tpu.vector_store %arg11[%c0_56, %c0_57], %216 {strides = array<i32>} : memref<8x256xf32, #tpu.memory_space<vmem>>, vector<8x256xf32>,
    return
  }
  func.func @transform_0(%arg0: i32) -> (i32, i32) {
    %c0_i32 = arith.constant 0 : i32
    %c0_i32_0 = arith.constant 0 : i32
    return %arg0, %c0_i32 : i32, i32
  }
  func.func @transform_1(%arg0: i32) -> (i32, i32) {
    %c0_i32 = arith.constant 0 : i32
    %c0_i32_0 = arith.constant 0 : i32
    %c0_i32_1 = arith.constant 0 : i32
    return %c0_i32, %c0_i32_0 : i32, i32
  }
  func.func @transform_2(%arg0: i32) -> (i32, i32) {
    %c0_i32 = arith.constant 0 : i32
    %c0_i32_0 = arith.constant 0 : i32
    %c0_i32_1 = arith.constant 0 : i32
    return %c0_i32, %c0_i32_0 : i32, i32
  }
  func.func @transform_3(%arg0: i32) -> (i32, i32) {
    %c0_i32 = arith.constant 0 : i32
    %c0_i32_0 = arith.constant 0 : i32
    %c0_i32_1 = arith.constant 0 : i32
    return %c0_i32, %c0_i32_0 : i32, i32
  }
  func.func @transform_4(%arg0: i32) -> (i32, i32) {
    %c0_i32 = arith.constant 0 : i32
    %c0_i32_0 = arith.constant 0 : i32
    %c0_i32_1 = arith.constant 0 : i32
    return %c0_i32, %c0_i32_0 : i32, i32
  }
  func.func @transform_5(%arg0: i32) -> (i32, i32) {
    %c0_i32 = arith.constant 0 : i32
    %c0_i32_0 = arith.constant 0 : i32
    %c0_i32_1 = arith.constant 0 : i32
    return %c0_i32, %c0_i32_0 : i32, i32
  }
  func.func @transform_6(%arg0: i32) -> (i32, i32) {
    %c0_i32 = arith.constant 0 : i32
    %c0_i32_0 = arith.constant 0 : i32
    %c0_i32_1 = arith.constant 0 : i32
    return %c0_i32, %c0_i32_0 : i32, i32
  }
  func.func @transform_7(%arg0: i32) -> (i32, i32) {
    %c0_i32 = arith.constant 0 : i32
    %c0_i32_0 = arith.constant 0 : i32
    %c0_i32_1 = arith.constant 0 : i32
    return %c0_i32, %c0_i32_0 : i32, i32
  }
  func.func @transform_8(%arg0: i32) -> (i32, i32) {
    %c0_i32 = arith.constant 0 : i32
    %c0_i32_0 = arith.constant 0 : i32
    %c0_i32_1 = arith.constant 0 : i32
    return %c0_i32, %c0_i32_0 : i32, i32
  }
  func.func @transform_9(%arg0: i32) -> (i32, i32) {
    %c0_i32 = arith.constant 0 : i32
    %c0_i32_0 = arith.constant 0 : i32
    %c0_i32_1 = arith.constant 0 : i32
    return %c0_i32, %c0_i32_0 : i32, i32
  }
  func.func @transform_10(%arg0: i32) -> (i32, i32) {
    %c0_i32 = arith.constant 0 : i32
    %c0_i32_0 = arith.constant 0 : i32
    return %c0_i32, %arg0 : i32, i32
  }
}

</mosaic_0001>

<llo_original>
// kernel: isab_forward.1
$region0: #{isab_forward.1}
  #allocation0 [shape = 'u32[]', space=smem, size = 0x4, offset = 0x4, fixed_abs, tag = 'smem constant byte address 0x4 - core index']
  #allocation1 [shape = 'u32[72,128]{1,0:T(1,128)}', space=vmem, size = 0x9000, scoped, tag = 'internal scratch']
  %s0 = inlined_call_operand.vmem [shape: f32[64,16], index: 0, kind: input, shape index: {}]
  %s1 = inlined_call_operand.vmem [shape: f32[8,32], index: 1, kind: input, shape index: {}]
  %s2 = inlined_call_operand.vmem [shape: f32[16,96], index: 2, kind: input, shape index: {}]
  %s3 = inlined_call_operand.vmem [shape: f32[1,96], index: 3, kind: input, shape index: {}]
  %s4 = inlined_call_operand.vmem [shape: f32[32,64], index: 4, kind: input, shape index: {}]
  %s5 = inlined_call_operand.vmem [shape: f32[1,64], index: 5, kind: input, shape index: {}]
  %s6 = inlined_call_operand.vmem [shape: f32[32,32], index: 6, kind: input, shape index: {}]
  %s7 = inlined_call_operand.vmem [shape: f32[1,32], index: 7, kind: input, shape index: {}]
  %s8 = inlined_call_operand.vmem [shape: f32[32,32], index: 8, kind: input, shape index: {}]
  %s9 = inlined_call_operand.vmem [shape: f32[1,32], index: 9, kind: input, shape index: {}]
  %s10 = inlined_call_operand.vmem [shape: f32[8,256], index: 10, kind: output, shape index: {}]
  %s11 = sld [smem:[#allocation0]]
  $region50: #{isab_forward.1} parent=0
    _
  %s13 = ssub.s32 1, %s11
  %s14 = scalar_select 0, %s13, %s11
  // Predicated region
  $region2: #{isab_forward.1} parent=0 // pred_check
    _
  $region3: #{isab_forward.1} parent=0 // pred_check_branch
    %16 = sbr.rel (0) target = $region5
  $region4: #{isab_forward.1} parent=0 // pred_region
    _
  $region5: #{isab_forward.1} parent=0 // pred_fallthru
    _
  // Predicated region
  $region6: #{isab_forward.1} parent=0 // pred_check
    _
  $region7: #{isab_forward.1} parent=0 // pred_check_branch
    %18 = sbr.rel (0) target = $region9
  $region8: #{isab_forward.1} parent=0 // pred_region
    _
  $region9: #{isab_forward.1} parent=0 // pred_fallthru
    _
  // Predicated region
  $region10: #{isab_forward.1} parent=0 // pred_check
    _
  $region11: #{isab_forward.1} parent=0 // pred_check_branch
    %20 = sbr.rel (0) target = $region13
  $region12: #{isab_forward.1} parent=0 // pred_region
    _
  $region13: #{isab_forward.1} parent=0 // pred_fallthru
    _
  // Predicated region
  $region14: #{isab_forward.1} parent=0 // pred_check
    _
  $region15: #{isab_forward.1} parent=0 // pred_check_branch
    %22 = sbr.rel (0) target = $region17
  $region16: #{isab_forward.1} parent=0 // pred_region
    _
  $region17: #{isab_forward.1} parent=0 // pred_fallthru
    _
  // Predicated region
  $region18: #{isab_forward.1} parent=0 // pred_check
    _
  $region19: #{isab_forward.1} parent=0 // pred_check_branch
    %24 = sbr.rel (0) target = $region21
  $region20: #{isab_forward.1} parent=0 // pred_region
    _
  $region21: #{isab_forward.1} parent=0 // pred_fallthru
    _
  // Predicated region
  $region22: #{isab_forward.1} parent=0 // pred_check
    _
  $region23: #{isab_forward.1} parent=0 // pred_check_branch
    %26 = sbr.rel (0) target = $region25
  $region24: #{isab_forward.1} parent=0 // pred_region
    _
  $region25: #{isab_forward.1} parent=0 // pred_fallthru
    _
  // Predicated region
  $region26: #{isab_forward.1} parent=0 // pred_check
    _
  $region27: #{isab_forward.1} parent=0 // pred_check_branch
    %28 = sbr.rel (0) target = $region29
  $region28: #{isab_forward.1} parent=0 // pred_region
    _
  $region29: #{isab_forward.1} parent=0 // pred_fallthru
    _
  // Predicated region
  $region30: #{isab_forward.1} parent=0 // pred_check
    _
  $region31: #{isab_forward.1} parent=0 // pred_check_branch
    %30 = sbr.rel (0) target = $region33
  $region32: #{isab_forward.1} parent=0 // pred_region
    _
  $region33: #{isab_forward.1} parent=0 // pred_fallthru
    _
  // Predicated region
  $region34: #{isab_forward.1} parent=0 // pred_check
    _
  $region35: #{isab_forward.1} parent=0 // pred_check_branch
    %32 = sbr.rel (0) target = $region37
  $region36: #{isab_forward.1} parent=0 // pred_region
    _
  $region37: #{isab_forward.1} parent=0 // pred_fallthru
    _
  // Predicated region
  $region38: #{isab_forward.1} parent=0 // pred_check
    _
  $region39: #{isab_forward.1} parent=0 // pred_check_branch
    %34 = sbr.rel (0) target = $region41
  $region40: #{isab_forward.1} parent=0 // pred_region
    _
  $region41: #{isab_forward.1} parent=0 // pred_fallthru
    _
  %v35 = vld [vmem:[%s0] sm:$0xff]
  %v36 = vld [vmem:[%s0 + $0x8] sm:$0xff]
  %v37 = vld [vmem:[%s0 + $0x10] sm:$0xff]
  %v38 = vld [vmem:[%s0 + $0x18] sm:$0xff]
  %v39 = vld [vmem:[%s0 + $0x20] sm:$0xff]
  %v40 = vld [vmem:[%s0 + $0x28] sm:$0xff]
  %v41 = vld [vmem:[%s0 + $0x30] sm:$0xff]
  %v42 = vld [vmem:[%s0 + $0x38] sm:$0xff]
  %v43 = vld [vmem:[%s2] sm:$0xff]
  %v44 = vld [vmem:[%s2 + $0x8] sm:$0xff]
  %v45 = vld [vmem:[%s3] sm:$0x1]
  %v47 = vperm.slane %v45, 0
  %vm49 = vcmask 130048
  %v51 = vsel %vm49, %v35, 0
  %v54 = vsel %vm49, %v36, 0
  %v57 = vsel %vm49, %v37, 0
  %v60 = vsel %vm49, %v38, 0
  %v63 = vsel %vm49, %v39, 0
  %v66 = vsel %vm49, %v40, 0
  %v69 = vsel %vm49, %v41, 0
  %v72 = vsel %vm49, %v42, 0
  %74 = vmatpush.msra.mxu0 0.0
  %75 = vmatpush.msra.mxu0 0.0
  %76 = vmatpush.msra.mxu0 0.0
  %77 = vmatpush.msra.mxu0 0.0
  %78 = vmatpush.msra.mxu0 0.0
  %79 = vmatpush.msra.mxu0 0.0
  %80 = vmatpush.msra.mxu0 0.0
  %81 = vmatpush.msra.mxu0 0.0
  %82 = vmatpush.msra.mxu0 0.0
  %83 = vmatpush.msra.mxu0 0.0
  %84 = vmatpush.msra.mxu0 0.0
  %85 = vmatpush.msra.mxu0 0.0
  %86 = vmatpush.msra.mxu0 0.0
  %87 = vmatpush.msra.mxu0 0.0
  %88 = vmatpush.msra.mxu0 %v44
  %89 = vmatpush.msra.mxu0 %v43
  %90 = vmatmul.f32.gmra.mxu0 %v51
  %v91 = vpop.f32.mrf.mxu0
  %v92 = vadd.f32 %v47, %v91
  %93 = vmatmul.f32.gmra.mxu0 %v54
  %v94 = vpop.f32.mrf.mxu0
  %v95 = vadd.f32 %v47, %v94
  %96 = vmatmul.f32.gmra.mxu0 %v57
  %v97 = vpop.f32.mrf.mxu0
  %v98 = vadd.f32 %v47, %v97
  %99 = vmatmul.f32.gmra.mxu0 %v60
  %v100 = vpop.f32.mrf.mxu0
  %v101 = vadd.f32 %v47, %v100
  %102 = vmatmul.f32.gmra.mxu0 %v63
  %v103 = vpop.f32.mrf.mxu0
  %v104 = vadd.f32 %v47, %v103
  %105 = vmatmul.f32.gmra.mxu0 %v66
  %v106 = vpop.f32.mrf.mxu0
  %v107 = vadd.f32 %v47, %v106
  %108 = vmatmul.f32.gmra.mxu0 %v69
  %v109 = vpop.f32.mrf.mxu0
  %v110 = vadd.f32 %v47, %v109
  %111 = vmatmul.f32.gmra.mxu0 %v72
  %v112 = vpop.f32.mrf.mxu0
  %v113 = vadd.f32 %v47, %v112
  %114 = vdwg.mxu0
  %v115 = vld [vmem:[%s1] sm:$0xff]
  %v116 = vld [vmem:[%s6] sm:$0xff]
  %v117 = vld [vmem:[%s6 + $0x8] sm:$0xff]
  %v118 = vld [vmem:[%s6 + $0x10] sm:$0xff]
  %v119 = vld [vmem:[%s6 + $0x18] sm:$0xff]
  %v120 = vld [vmem:[%s7] sm:$0x1]
  %vm121 = vcmask 64512
  %v123 = vsel %vm121, %v115, 0
  %v126 = vsel %vm121, %v92, 0
  %128 = vmatpush.xpose.msra.mxu0 0.0
  %129 = vmatpush.xpose.msra.mxu0 0.0
  %130 = vmatpush.xpose.msra.mxu0 0.0
  %131 = vmatpush.xpose.msra.mxu0 0.0
  %132 = vmatpush.xpose.msra.mxu0 0.0
  %133 = vmatpush.xpose.msra.mxu0 0.0
  %134 = vmatpush.xpose.msra.mxu0 0.0
  %135 = vmatpush.xpose.msra.mxu0 0.0
  %136 = vmatpush.xpose.msra.mxu0 0.0
  %137 = vmatpush.xpose.msra.mxu0 0.0
  %138 = vmatpush.xpose.msra.mxu0 0.0
  %139 = vmatpush.xpose.msra.mxu0 0.0
  %140 = vmatpush.xpose.msra.mxu0 0.0
  %141 = vmatpush.xpose.msra.mxu0 0.0
  %142 = vmatpush.xpose.msra.mxu0 0.0
  %143 = vmatpush.xpose.msra.mxu0 %v126
  %144 = vmatmul.f32.gmra.mxu0 %v123
  %v145 = vpop.f32.mrf.mxu0
  %v146 = vadd.f32 0.0, %v145
  %147 = vdwg.mxu0
  %v149 = vsel %vm121, %v95, 0
  %151 = vmatpush.xpose.msra.mxu0 0.0
  %152 = vmatpush.xpose.msra.mxu0 0.0
  %153 = vmatpush.xpose.msra.mxu0 0.0
  %154 = vmatpush.xpose.msra.mxu0 0.0
  %155 = vmatpush.xpose.msra.mxu0 0.0
  %156 = vmatpush.xpose.msra.mxu0 0.0
  %157 = vmatpush.xpose.msra.mxu0 0.0
  %158 = vmatpush.xpose.msra.mxu0 0.0
  %159 = vmatpush.xpose.msra.mxu0 0.0
  %160 = vmatpush.xpose.msra.mxu0 0.0
  %161 = vmatpush.xpose.msra.mxu0 0.0
  %162 = vmatpush.xpose.msra.mxu0 0.0
  %163 = vmatpush.xpose.msra.mxu0 0.0
  %164 = vmatpush.xpose.msra.mxu0 0.0
  %165 = vmatpush.xpose.msra.mxu0 0.0
  %166 = vmatpush.xpose.msra.mxu0 %v149
  %167 = vmatmul.f32.gmra.mxu0 %v123
  %v168 = vpop.f32.mrf.mxu0
  %v169 = vadd.f32 0.0, %v168
  %170 = vdwg.mxu0
  %v172 = vsel %vm121, %v98, 0
  %174 = vmatpush.xpose.msra.mxu0 0.0
  %175 = vmatpush.xpose.msra.mxu0 0.0
  %176 = vmatpush.xpose.msra.mxu0 0.0
  %177 = vmatpush.xpose.msra.mxu0 0.0
  %178 = vmatpush.xpose.msra.mxu0 0.0
  %179 = vmatpush.xpose.msra.mxu0 0.0
  %180 = vmatpush.xpose.msra.mxu0 0.0
  %181 = vmatpush.xpose.msra.mxu0 0.0
  %182 = vmatpush.xpose.msra.mxu0 0.0
  %183 = vmatpush.xpose.msra.mxu0 0.0
  %184 = vmatpush.xpose.msra.mxu0 0.0
  %185 = vmatpush.xpose.msra.mxu0 0.0
  %186 = vmatpush.xpose.msra.mxu0 0.0
  %187 = vmatpush.xpose.msra.mxu0 0.0
  %188 = vmatpush.xpose.msra.mxu0 0.0
  %189 = vmatpush.xpose.msra.mxu0 %v172
  %190 = vmatmul.f32.gmra.mxu0 %v123
  %v191 = vpop.f32.mrf.mxu0
  %v192 = vadd.f32 0.0, %v191
  %193 = vdwg.mxu0
  %v195 = vsel %vm121, %v101, 0
  %197 = vmatpush.xpose.msra.mxu0 0.0
  %198 = vmatpush.xpose.msra.mxu0 0.0
  %199 = vmatpush.xpose.msra.mxu0 0.0
  %200 = vmatpush.xpose.msra.mxu0 0.0
  %201 = vmatpush.xpose.msra.mxu0 0.0
  %202 = vmatpush.xpose.msra.mxu0 0.0
  %203 = vmatpush.xpose.msra.mxu0 0.0
  %204 = vmatpush.xpose.msra.mxu0 0.0
  %205 = vmatpush.xpose.msra.mxu0 0.0
  %206 = vmatpush.xpose.msra.mxu0 0.0
  %207 = vmatpush.xpose.msra.mxu0 0.0
  %208 = vmatpush.xpose.msra.mxu0 0.0
  %209 = vmatpush.xpose.msra.mxu0 0.0
  %210 = vmatpush.xpose.msra.mxu0 0.0
  %211 = vmatpush.xpose.msra.mxu0 0.0
  %212 = vmatpush.xpose.msra.mxu0 %v195
  %213 = vmatmul.f32.gmra.mxu0 %v123
  %v214 = vpop.f32.mrf.mxu0
  %v215 = vadd.f32 0.0, %v214
  %216 = vdwg.mxu0
  %v218 = vsel %vm121, %v104, 0
  %220 = vmatpush.xpose.msra.mxu0 0.0
  %221 = vmatpush.xpose.msra.mxu0 0.0
  %222 = vmatpush.xpose.msra.mxu0 0.0
  %223 = vmatpush.xpose.msra.mxu0 0.0
  %224 = vmatpush.xpose.msra.mxu0 0.0
  %225 = vmatpush.xpose.msra.mxu0 0.0
  %226 = vmatpush.xpose.msra.mxu0 0.0
  %227 = vmatpush.xpose.msra.mxu0 0.0
  %228 = vmatpush.xpose.msra.mxu0 0.0
  %229 = vmatpush.xpose.msra.mxu0 0.0
  %230 = vmatpush.xpose.msra.mxu0 0.0
  %231 = vmatpush.xpose.msra.mxu0 0.0
  %232 = vmatpush.xpose.msra.mxu0 0.0
  %233 = vmatpush.xpose.msra.mxu0 0.0
  %234 = vmatpush.xpose.msra.mxu0 0.0
  %235 = vmatpush.xpose.msra.mxu0 %v218
  %236 = vmatmul.f32.gmra.mxu0 %v123
  %v237 = vpop.f32.mrf.mxu0
  %v238 = vadd.f32 0.0, %v237
  %239 = vdwg.mxu0
  %v241 = vsel %vm121, %v107, 0
  %243 = vmatpush.xpose.msra.mxu0 0.0
  %244 = vmatpush.xpose.msra.mxu0 0.0
  %245 = vmatpush.xpose.msra.mxu0 0.0
  %246 = vmatpush.xpose.msra.mxu0 0.0
  %247 = vmatpush.xpose.msra.mxu0 0.0
  %248 = vmatpush.xpose.msra.mxu0 0.0
  %249 = vmatpush.xpose.msra.mxu0 0.0
  %250 = vmatpush.xpose.msra.mxu0 0.0
  %251 = vmatpush.xpose.msra.mxu0 0.0
  %252 = vmatpush.xpose.msra.mxu0 0.0
  %253 = vmatpush.xpose.msra.mxu0 0.0
  %254 = vmatpush.xpose.msra.mxu0 0.0
  %255 = vmatpush.xpose.msra.mxu0 0.0
  %256 = vmatpush.xpose.msra.mxu0 0.0
  %257 = vmatpush.xpose.msra.mxu0 0.0
  %258 = vmatpush.xpose.msra.mxu0 %v241
  %259 = vmatmul.f32.gmra.mxu0 %v123
  %v260 = vpop.f32.mrf.mxu0
  %v261 = vadd.f32 0.0, %v260
  %262 = vdwg.mxu0
  %v264 = vsel %vm121, %v110, 0
  %266 = vmatpush.xpose.msra.mxu0 0.0
  %267 = vmatpush.xpose.msra.mxu0 0.0
  %268 = vmatpush.xpose.msra.mxu0 0.0
  %269 = vmatpush.xpose.msra.mxu0 0.0
  %270 = vmatpush.xpose.msra.mxu0 0.0
  %271 = vmatpush.xpose.msra.mxu0 0.0
  %272 = vmatpush.xpose.msra.mxu0 0.0
  %273 = vmatpush.xpose.msra.mxu0 0.0
  %274 = vmatpush.xpose.msra.mxu0 0.0
  %275 = vmatpush.xpose.msra.mxu0 0.0
  %276 = vmatpush.xpose.msra.mxu0 0.0
  %277 = vmatpush.xpose.msra.mxu0 0.0
  %278 = vmatpush.xpose.msra.mxu0 0.0
  %279 = vmatpush.xpose.msra.mxu0 0.0
  %280 = vmatpush.xpose.msra.mxu0 0.0
  %281 = vmatpush.xpose.msra.mxu0 %v264
  %282 = vmatmul.f32.gmra.mxu0 %v123
  %v283 = vpop.f32.mrf.mxu0
  %v284 = vadd.f32 0.0, %v283
  %285 = vdwg.mxu0
  %v287 = vsel %vm121, %v113, 0
  %289 = vmatpush.xpose.msra.mxu0 0.0
  %290 = vmatpush.xpose.msra.mxu0 0.0
  %291 = vmatpush.xpose.msra.mxu0 0.0
  %292 = vmatpush.xpose.msra.mxu0 0.0
  %293 = vmatpush.xpose.msra.mxu0 0.0
  %294 = vmatpush.xpose.msra.mxu0 0.0
  %295 = vmatpush.xpose.msra.mxu0 0.0
  %296 = vmatpush.xpose.msra.mxu0 0.0
  %297 = vmatpush.xpose.msra.mxu0 0.0
  %298 = vmatpush.xpose.msra.mxu0 0.0
  %299 = vmatpush.xpose.msra.mxu0 0.0
  %300 = vmatpush.xpose.msra.mxu0 0.0
  %301 = vmatpush.xpose.msra.mxu0 0.0
  %302 = vmatpush.xpose.msra.mxu0 0.0
  %303 = vmatpush.xpose.msra.mxu0 0.0
  %304 = vmatpush.xpose.msra.mxu0 %v287
  %305 = vmatmul.f32.gmra.mxu0 %v123
  %v306 = vpop.f32.mrf.mxu0
  %v307 = vadd.f32 0.0, %v306
  %308 = vdwg.mxu0
  %v309 = vsel %vm121, %v146, -inf
  %310 = vmax.xlane.f32.xlu0 %v309
  %v311 = vpop.xlane.xlu0 %310
  %v312 = vsel %vm121, %v169, -inf
  %313 = vmax.xlane.f32.xlu0 %v312
  %v314 = vpop.xlane.xlu0 %313
  %v315 = vsel %vm121, %v192, -inf
  %316 = vmax.xlane.f32.xlu0 %v315
  %v317 = vpop.xlane.xlu0 %316
  %v318 = vsel %vm121, %v215, -inf
  %319 = vmax.xlane.f32.xlu0 %v318
  %v320 = vpop.xlane.xlu0 %319
  %v321 = vsel %vm121, %v238, -inf
  %322 = vmax.xlane.f32.xlu0 %v321
  %v323 = vpop.xlane.xlu0 %322
  %v324 = vsel %vm121, %v261, -inf
  %325 = vmax.xlane.f32.xlu0 %v324
  %v326 = vpop.xlane.xlu0 %325
  %v327 = vsel %vm121, %v284, -inf
  %328 = vmax.xlane.f32.xlu0 %v327
  %v329 = vpop.xlane.xlu0 %328
  %v330 = vsel %vm121, %v307, -inf
  %331 = vmax.xlane.f32.xlu0 %v330
  %v332 = vpop.xlane.xlu0 %331
  %v333 = vsub.f32 %v146, %v311
  %v334 = vsub.f32 %v169, %v314
  %v335 = vsub.f32 %v192, %v317
  %v336 = vsub.f32 %v215, %v320
  %v337 = vsub.f32 %v238, %v323
  %v338 = vsub.f32 %v261, %v326
  %v339 = vsub.f32 %v284, %v329
  %v340 = vsub.f32 %v307, %v332
  %v341 = vmul.f32 %v333, 1.442695
  %v342 = vpow.pop %v341
  %v343 = vmul.f32 %v334, 1.442695
  %v344 = vpow.pop %v343
  %v345 = vmul.f32 %v335, 1.442695
  %v346 = vpow.pop %v345
  %v347 = vmul.f32 %v336, 1.442695
  %v348 = vpow.pop %v347
  %v349 = vmul.f32 %v337, 1.442695
  %v350 = vpow.pop %v349
  %v351 = vmul.f32 %v338, 1.442695
  %v352 = vpow.pop %v351
  %v353 = vmul.f32 %v339, 1.442695
  %v354 = vpow.pop %v353
  %v355 = vmul.f32 %v340, 1.442695
  %v356 = vpow.pop %v355
  %v357 = vsel %vm121, %v342, 0.0
  %358 = vadd.xlane.f32.xlu0 %v357
  %v359 = vpop.xlane.xlu0 %358
  %v360 = vsel %vm121, %v344, 0.0
  %361 = vadd.xlane.f32.xlu0 %v360
  %v362 = vpop.xlane.xlu0 %361
  %v363 = vsel %vm121, %v346, 0.0
  %364 = vadd.xlane.f32.xlu0 %v363
  %v365 = vpop.xlane.xlu0 %364
  %v366 = vsel %vm121, %v348, 0.0
  %367 = vadd.xlane.f32.xlu0 %v366
  %v368 = vpop.xlane.xlu0 %367
  %v369 = vsel %vm121, %v350, 0.0
  %370 = vadd.xlane.f32.xlu0 %v369
  %v371 = vpop.xlane.xlu0 %370
  %v372 = vsel %vm121, %v352, 0.0
  %373 = vadd.xlane.f32.xlu0 %v372
  %v374 = vpop.xlane.xlu0 %373
  %v375 = vsel %vm121, %v354, 0.0
  %376 = vadd.xlane.f32.xlu0 %v375
  %v377 = vpop.xlane.xlu0 %376
  %v378 = vsel %vm121, %v356, 0.0
  %379 = vadd.xlane.f32.xlu0 %v378
  %v380 = vpop.xlane.xlu0 %379
  %v381 = vrcp.pop %v359
  %v382 = vmul.f32 %v359, %v381
  %v383 = vsub.f32 1.0, %v382
  %v384 = vmul.f32 %v381, %v383
  %v385 = vadd.f32 %v381, %v384
  %vm386 = vweird.f32 %v359
  %vm387 = vweird.f32 %v381
  %vm388 = vmor %vm386, %vm387
  %v389 = vsel %vm388, %v381, %v385
  %v390 = vand.u32 2147483647, %v359
  %vm391 = vcmp.eq.f32.partialorder %v390, 8.507059e+37
  %v392 = vand.u32 %v359, 2147483648
  %v393 = vor.u32 1.1754944e-38, %v392
  %v394 = vsel %vm391, %v393, %v389
  %v395 = vrcp.pop %v362
  %v396 = vmul.f32 %v362, %v395
  %v397 = vsub.f32 1.0, %v396
  %v398 = vmul.f32 %v395, %v397
  %v399 = vadd.f32 %v395, %v398
  %vm400 = vweird.f32 %v362
  %vm401 = vweird.f32 %v395
  %vm402 = vmor %vm400, %vm401
  %v403 = vsel %vm402, %v395, %v399
  %v404 = vand.u32 2147483647, %v362
  %vm405 = vcmp.eq.f32.partialorder %v404, 8.507059e+37
  %v406 = vand.u32 %v362, 2147483648
  %v407 = vor.u32 1.1754944e-38, %v406
  %v408 = vsel %vm405, %v407, %v403
  %v409 = vrcp.pop %v365
  %v410 = vmul.f32 %v365, %v409
  %v411 = vsub.f32 1.0, %v410
  %v412 = vmul.f32 %v409, %v411
  %v413 = vadd.f32 %v409, %v412
  %vm414 = vweird.f32 %v365
  %vm415 = vweird.f32 %v409
  %vm416 = vmor %vm414, %vm415
  %v417 = vsel %vm416, %v409, %v413
  %v418 = vand.u32 2147483647, %v365
  %vm419 = vcmp.eq.f32.partialorder %v418, 8.507059e+37
  %v420 = vand.u32 %v365, 2147483648
  %v421 = vor.u32 1.1754944e-38, %v420
  %v422 = vsel %vm419, %v421, %v417
  %v423 = vrcp.pop %v368
  %v424 = vmul.f32 %v368, %v423
  %v425 = vsub.f32 1.0, %v424
  %v426 = vmul.f32 %v423, %v425
  %v427 = vadd.f32 %v423, %v426
  %vm428 = vweird.f32 %v368
  %vm429 = vweird.f32 %v423
  %vm430 = vmor %vm428, %vm429
  %v431 = vsel %vm430, %v423, %v427
  %v432 = vand.u32 2147483647, %v368
  %vm433 = vcmp.eq.f32.partialorder %v432, 8.507059e+37
  %v434 = vand.u32 %v368, 2147483648
  %v435 = vor.u32 1.1754944e-38, %v434
  %v436 = vsel %vm433, %v435, %v431
  %v437 = vrcp.pop %v371
  %v438 = vmul.f32 %v371, %v437
  %v439 = vsub.f32 1.0, %v438
  %v440 = vmul.f32 %v437, %v439
  %v441 = vadd.f32 %v437, %v440
  %vm442 = vweird.f32 %v371
  %vm443 = vweird.f32 %v437
  %vm444 = vmor %vm442, %vm443
  %v445 = vsel %vm444, %v437, %v441
  %v446 = vand.u32 2147483647, %v371
  %vm447 = vcmp.eq.f32.partialorder %v446, 8.507059e+37
  %v448 = vand.u32 %v371, 2147483648
  %v449 = vor.u32 1.1754944e-38, %v448
  %v450 = vsel %vm447, %v449, %v445
  %v451 = vrcp.pop %v374
  %v452 = vmul.f32 %v374, %v451
  %v453 = vsub.f32 1.0, %v452
  %v454 = vmul.f32 %v451, %v453
  %v455 = vadd.f32 %v451, %v454
  %vm456 = vweird.f32 %v374
  %vm457 = vweird.f32 %v451
  %vm458 = vmor %vm456, %vm457
  %v459 = vsel %vm458, %v451, %v455
  %v460 = vand.u32 2147483647, %v374
  %vm461 = vcmp.eq.f32.partialorder %v460, 8.507059e+37
  %v462 = vand.u32 %v374, 2147483648
  %v463 = vor.u32 1.1754944e-38, %v462
  %v464 = vsel %vm461, %v463, %v459
  %v465 = vrcp.pop %v377
  %v466 = vmul.f32 %v377, %v465
  %v467 = vsub.f32 1.0, %v466
  %v468 = vmul.f32 %v465, %v467
  %v469 = vadd.f32 %v465, %v468
  %vm470 = vweird.f32 %v377
  %vm471 = vweird.f32 %v465
  %vm472 = vmor %vm470, %vm471
  %v473 = vsel %vm472, %v465, %v469
  %v474 = vand.u32 2147483647, %v377
  %vm475 = vcmp.eq.f32.partialorder %v474, 8.507059e+37
  %v476 = vand.u32 %v377, 2147483648
  %v477 = vor.u32 1.1754944e-38, %v476
  %v478 = vsel %vm475, %v477, %v473
  %v479 = vrcp.pop %v380
  %v480 = vmul.f32 %v380, %v479
  %v481 = vsub.f32 1.0, %v480
  %v482 = vmul.f32 %v479, %v481
  %v483 = vadd.f32 %v479, %v482
  %vm484 = vweird.f32 %v380
  %vm485 = vweird.f32 %v479
  %vm486 = vmor %vm484, %vm485
  %v487 = vsel %vm486, %v479, %v483
  %v488 = vand.u32 2147483647, %v380
  %vm489 = vcmp.eq.f32.partialorder %v488, 8.507059e+37
  %v490 = vand.u32 %v380, 2147483648
  %v491 = vor.u32 1.1754944e-38, %v490
  %v492 = vsel %vm489, %v491, %v487
  %v493 = vmul.f32 %v342, %v394
  %v494 = vmul.f32 %v344, %v408
  %v495 = vmul.f32 %v346, %v422
  %v496 = vmul.f32 %v348, %v436
  %v497 = vmul.f32 %v350, %v450
  %v498 = vmul.f32 %v352, %v464
  %v499 = vmul.f32 %v354, %v478
  %v500 = vmul.f32 %v356, %v492
  %501 = vrot.lane.b32.xlu0 %v92, 96
  %v502 = vpop.permute.xlu0 %501
  %v505 = vsel %vm121, %v493, 0
  %507 = vmatpush.msra.mxu0 0.0
  %508 = vmatpush.msra.mxu0 0.0
  %509 = vmatpush.msra.mxu0 0.0
  %510 = vmatpush.msra.mxu0 0.0
  %511 = vmatpush.msra.mxu0 0.0
  %512 = vmatpush.msra.mxu0 0.0
  %513 = vmatpush.msra.mxu0 0.0
  %514 = vmatpush.msra.mxu0 0.0
  %515 = vmatpush.msra.mxu0 0.0
  %516 = vmatpush.msra.mxu0 0.0
  %517 = vmatpush.msra.mxu0 0.0
  %518 = vmatpush.msra.mxu0 0.0
  %519 = vmatpush.msra.mxu0 0.0
  %520 = vmatpush.msra.mxu0 0.0
  %521 = vmatpush.msra.mxu0 0.0
  %522 = vmatpush.msra.mxu0 %v502
  %523 = vmatmul.f32.gmra.mxu0 %v505
  %v524 = vpop.f32.mrf.mxu0
  %v525 = vadd.f32 0.0, %v524
  %526 = vdwg.mxu0
  %527 = vrot.lane.b32.xlu0 %v95, 96
  %v528 = vpop.permute.xlu0 %527
  %v531 = vsel %vm121, %v494, 0
  %533 = vmatpush.msra.mxu0 0.0
  %534 = vmatpush.msra.mxu0 0.0
  %535 = vmatpush.msra.mxu0 0.0
  %536 = vmatpush.msra.mxu0 0.0
  %537 = vmatpush.msra.mxu0 0.0
  %538 = vmatpush.msra.mxu0 0.0
  %539 = vmatpush.msra.mxu0 0.0
  %540 = vmatpush.msra.mxu0 0.0
  %541 = vmatpush.msra.mxu0 0.0
  %542 = vmatpush.msra.mxu0 0.0
  %543 = vmatpush.msra.mxu0 0.0
  %544 = vmatpush.msra.mxu0 0.0
  %545 = vmatpush.msra.mxu0 0.0
  %546 = vmatpush.msra.mxu0 0.0
  %547 = vmatpush.msra.mxu0 0.0
  %548 = vmatpush.msra.mxu0 %v528
  %549 = vmatmul.f32.gmra.mxu0 %v531
  %v550 = vpop.f32.mrf.mxu0
  %v551 = vadd.f32 0.0, %v550
  %552 = vdwg.mxu0
  %553 = vrot.lane.b32.xlu0 %v98, 96
  %v554 = vpop.permute.xlu0 %553
  %v557 = vsel %vm121, %v495, 0
  %559 = vmatpush.msra.mxu0 0.0
  %560 = vmatpush.msra.mxu0 0.0
  %561 = vmatpush.msra.mxu0 0.0
  %562 = vmatpush.msra.mxu0 0.0
  %563 = vmatpush.msra.mxu0 0.0
  %564 = vmatpush.msra.mxu0 0.0
  %565 = vmatpush.msra.mxu0 0.0
  %566 = vmatpush.msra.mxu0 0.0
  %567 = vmatpush.msra.mxu0 0.0
  %568 = vmatpush.msra.mxu0 0.0
  %569 = vmatpush.msra.mxu0 0.0
  %570 = vmatpush.msra.mxu0 0.0
  %571 = vmatpush.msra.mxu0 0.0
  %572 = vmatpush.msra.mxu0 0.0
  %573 = vmatpush.msra.mxu0 0.0
  %574 = vmatpush.msra.mxu0 %v554
  %575 = vmatmul.f32.gmra.mxu0 %v557
  %v576 = vpop.f32.mrf.mxu0
  %v577 = vadd.f32 0.0, %v576
  %578 = vdwg.mxu0
  %579 = vrot.lane.b32.xlu0 %v101, 96
  %v580 = vpop.permute.xlu0 %579
  %v583 = vsel %vm121, %v496, 0
  %585 = vmatpush.msra.mxu0 0.0
  %586 = vmatpush.msra.mxu0 0.0
  %587 = vmatpush.msra.mxu0 0.0
  %588 = vmatpush.msra.mxu0 0.0
  %589 = vmatpush.msra.mxu0 0.0
  %590 = vmatpush.msra.mxu0 0.0
  %591 = vmatpush.msra.mxu0 0.0
  %592 = vmatpush.msra.mxu0 0.0
  %593 = vmatpush.msra.mxu0 0.0
  %594 = vmatpush.msra.mxu0 0.0
  %595 = vmatpush.msra.mxu0 0.0
  %596 = vmatpush.msra.mxu0 0.0
  %597 = vmatpush.msra.mxu0 0.0
  %598 = vmatpush.msra.mxu0 0.0
  %599 = vmatpush.msra.mxu0 0.0
  %600 = vmatpush.msra.mxu0 %v580
  %601 = vmatmul.f32.gmra.mxu0 %v583
  %v602 = vpop.f32.mrf.mxu0
  %v603 = vadd.f32 0.0, %v602
  %604 = vdwg.mxu0
  %605 = vrot.lane.b32.xlu0 %v104, 96
  %v606 = vpop.permute.xlu0 %605
  %v609 = vsel %vm121, %v497, 0
  %611 = vmatpush.msra.mxu0 0.0
  %612 = vmatpush.msra.mxu0 0.0
  %613 = vmatpush.msra.mxu0 0.0
  %614 = vmatpush.msra.mxu0 0.0
  %615 = vmatpush.msra.mxu0 0.0
  %616 = vmatpush.msra.mxu0 0.0
  %617 = vmatpush.msra.mxu0 0.0
  %618 = vmatpush.msra.mxu0 0.0
  %619 = vmatpush.msra.mxu0 0.0
  %620 = vmatpush.msra.mxu0 0.0
  %621 = vmatpush.msra.mxu0 0.0
  %622 = vmatpush.msra.mxu0 0.0
  %623 = vmatpush.msra.mxu0 0.0
  %624 = vmatpush.msra.mxu0 0.0
  %625 = vmatpush.msra.mxu0 0.0
  %626 = vmatpush.msra.mxu0 %v606
  %627 = vmatmul.f32.gmra.mxu0 %v609
  %v628 = vpop.f32.mrf.mxu0
  %v629 = vadd.f32 0.0, %v628
  %630 = vdwg.mxu0
  %631 = vrot.lane.b32.xlu0 %v107, 96
  %v632 = vpop.permute.xlu0 %631
  %v635 = vsel %vm121, %v498, 0
  %637 = vmatpush.msra.mxu0 0.0
  %638 = vmatpush.msra.mxu0 0.0
  %639 = vmatpush.msra.mxu0 0.0
  %640 = vmatpush.msra.mxu0 0.0
  %641 = vmatpush.msra.mxu0 0.0
  %642 = vmatpush.msra.mxu0 0.0
  %643 = vmatpush.msra.mxu0 0.0
  %644 = vmatpush.msra.mxu0 0.0
  %645 = vmatpush.msra.mxu0 0.0
  %646 = vmatpush.msra.mxu0 0.0
  %647 = vmatpush.msra.mxu0 0.0
  %648 = vmatpush.msra.mxu0 0.0
  %649 = vmatpush.msra.mxu0 0.0
  %650 = vmatpush.msra.mxu0 0.0
  %651 = vmatpush.msra.mxu0 0.0
  %652 = vmatpush.msra.mxu0 %v632
  %653 = vmatmul.f32.gmra.mxu0 %v635
  %v654 = vpop.f32.mrf.mxu0
  %v655 = vadd.f32 0.0, %v654
  %656 = vdwg.mxu0
  %657 = vrot.lane.b32.xlu0 %v110, 96
  %v658 = vpop.permute.xlu0 %657
  %v661 = vsel %vm121, %v499, 0
  %663 = vmatpush.msra.mxu0 0.0
  %664 = vmatpush.msra.mxu0 0.0
  %665 = vmatpush.msra.mxu0 0.0
  %666 = vmatpush.msra.mxu0 0.0
  %667 = vmatpush.msra.mxu0 0.0
  %668 = vmatpush.msra.mxu0 0.0
  %669 = vmatpush.msra.mxu0 0.0
  %670 = vmatpush.msra.mxu0 0.0
  %671 = vmatpush.msra.mxu0 0.0
  %672 = vmatpush.msra.mxu0 0.0
  %673 = vmatpush.msra.mxu0 0.0
  %674 = vmatpush.msra.mxu0 0.0
  %675 = vmatpush.msra.mxu0 0.0
  %676 = vmatpush.msra.mxu0 0.0
  %677 = vmatpush.msra.mxu0 0.0
  %678 = vmatpush.msra.mxu0 %v658
  %679 = vmatmul.f32.gmra.mxu0 %v661
  %v680 = vpop.f32.mrf.mxu0
  %v681 = vadd.f32 0.0, %v680
  %682 = vdwg.mxu0
  %683 = vrot.lane.b32.xlu0 %v113, 96
  %v684 = vpop.permute.xlu0 %683
  %v687 = vsel %vm121, %v500, 0
  %689 = vmatpush.msra.mxu0 0.0
  %690 = vmatpush.msra.mxu0 0.0
  %691 = vmatpush.msra.mxu0 0.0
  %692 = vmatpush.msra.mxu0 0.0
  %693 = vmatpush.msra.mxu0 0.0
  %694 = vmatpush.msra.mxu0 0.0
  %695 = vmatpush.msra.mxu0 0.0
  %696 = vmatpush.msra.mxu0 0.0
  %697 = vmatpush.msra.mxu0 0.0
  %698 = vmatpush.msra.mxu0 0.0
  %699 = vmatpush.msra.mxu0 0.0
  %700 = vmatpush.msra.mxu0 0.0
  %701 = vmatpush.msra.mxu0 0.0
  %702 = vmatpush.msra.mxu0 0.0
  %703 = vmatpush.msra.mxu0 0.0
  %704 = vmatpush.msra.mxu0 %v684
  %705 = vmatmul.f32.gmra.mxu0 %v687
  %v706 = vpop.f32.mrf.mxu0
  %v707 = vadd.f32 0.0, %v706
  %708 = vdwg.mxu0
  %v709 = vadd.f32 %v115, %v525
  %v710 = vadd.f32 %v115, %v551
  %v711 = vadd.f32 %v115, %v577
  %v712 = vadd.f32 %v115, %v603
  %v713 = vadd.f32 %v115, %v629
  %v714 = vadd.f32 %v115, %v655
  %v715 = vadd.f32 %v115, %v681
  %v716 = vadd.f32 %v115, %v707
  %717 = vrot.lane.b32.xlu0 %v115, 120
  %v718 = vpop.permute.xlu0 %717
  %719 = vrot.lane.b32.xlu0 %v92, 120
  %v720 = vpop.permute.xlu0 %719
  %v721 = vsel %vm121, %v718, 0
  %v723 = vsel %vm121, %v720, 0
  %725 = vmatpush.xpose.msra.mxu0 0.0
  %726 = vmatpush.xpose.msra.mxu0 0.0
  %727 = vmatpush.xpose.msra.mxu0 0.0
  %728 = vmatpush.xpose.msra.mxu0 0.0
  %729 = vmatpush.xpose.msra.mxu0 0.0
  %730 = vmatpush.xpose.msra.mxu0 0.0
  %731 = vmatpush.xpose.msra.mxu0 0.0
  %732 = vmatpush.xpose.msra.mxu0 0.0
  %733 = vmatpush.xpose.msra.mxu0 0.0
  %734 = vmatpush.xpose.msra.mxu0 0.0
  %735 = vmatpush.xpose.msra.mxu0 0.0
  %736 = vmatpush.xpose.msra.mxu0 0.0
  %737 = vmatpush.xpose.msra.mxu0 0.0
  %738 = vmatpush.xpose.msra.mxu0 0.0
  %739 = vmatpush.xpose.msra.mxu0 0.0
  %740 = vmatpush.xpose.msra.mxu0 %v723
  %741 = vmatmul.f32.gmra.mxu0 %v721
  %v742 = vpop.f32.mrf.mxu0
  %v743 = vadd.f32 0.0, %v742
  %744 = vdwg.mxu0
  %745 = vrot.lane.b32.xlu0 %v95, 120
  %v746 = vpop.permute.xlu0 %745
  %v747 = vsel %vm121, %v746, 0
  %749 = vmatpush.xpose.msra.mxu0 0.0
  %750 = vmatpush.xpose.msra.mxu0 0.0
  %751 = vmatpush.xpose.msra.mxu0 0.0
  %752 = vmatpush.xpose.msra.mxu0 0.0
  %753 = vmatpush.xpose.msra.mxu0 0.0
  %754 = vmatpush.xpose.msra.mxu0 0.0
  %755 = vmatpush.xpose.msra.mxu0 0.0
  %756 = vmatpush.xpose.msra.mxu0 0.0
  %757 = vmatpush.xpose.msra.mxu0 0.0
  %758 = vmatpush.xpose.msra.mxu0 0.0
  %759 = vmatpush.xpose.msra.mxu0 0.0
  %760 = vmatpush.xpose.msra.mxu0 0.0
  %761 = vmatpush.xpose.msra.mxu0 0.0
  %762 = vmatpush.xpose.msra.mxu0 0.0
  %763 = vmatpush.xpose.msra.mxu0 0.0
  %764 = vmatpush.xpose.msra.mxu0 %v747
  %765 = vmatmul.f32.gmra.mxu0 %v721
  %v766 = vpop.f32.mrf.mxu0
  %v767 = vadd.f32 0.0, %v766
  %768 = vdwg.mxu0
  %769 = vrot.lane.b32.xlu0 %v98, 120
  %v770 = vpop.permute.xlu0 %769
  %v771 = vsel %vm121, %v770, 0
  %773 = vmatpush.xpose.msra.mxu0 0.0
  %774 = vmatpush.xpose.msra.mxu0 0.0
  %775 = vmatpush.xpose.msra.mxu0 0.0
  %776 = vmatpush.xpose.msra.mxu0 0.0
  %777 = vmatpush.xpose.msra.mxu0 0.0
  %778 = vmatpush.xpose.msra.mxu0 0.0
  %779 = vmatpush.xpose.msra.mxu0 0.0
  %780 = vmatpush.xpose.msra.mxu0 0.0
  %781 = vmatpush.xpose.msra.mxu0 0.0
  %782 = vmatpush.xpose.msra.mxu0 0.0
  %783 = vmatpush.xpose.msra.mxu0 0.0
  %784 = vmatpush.xpose.msra.mxu0 0.0
  %785 = vmatpush.xpose.msra.mxu0 0.0
  %786 = vmatpush.xpose.msra.mxu0 0.0
  %787 = vmatpush.xpose.msra.mxu0 0.0
  %788 = vmatpush.xpose.msra.mxu0 %v771
  %789 = vmatmul.f32.gmra.mxu0 %v721
  %v790 = vpop.f32.mrf.mxu0
  %v791 = vadd.f32 0.0, %v790
  %792 = vdwg.mxu0
  %793 = vrot.lane.b32.xlu0 %v101, 120
  %v794 = vpop.permute.xlu0 %793
  %v795 = vsel %vm121, %v794, 0
  %797 = vmatpush.xpose.msra.mxu0 0.0
  %798 = vmatpush.xpose.msra.mxu0 0.0
  %799 = vmatpush.xpose.msra.mxu0 0.0
  %800 = vmatpush.xpose.msra.mxu0 0.0
  %801 = vmatpush.xpose.msra.mxu0 0.0
  %802 = vmatpush.xpose.msra.mxu0 0.0
  %803 = vmatpush.xpose.msra.mxu0 0.0
  %804 = vmatpush.xpose.msra.mxu0 0.0
  %805 = vmatpush.xpose.msra.mxu0 0.0
  %806 = vmatpush.xpose.msra.mxu0 0.0
  %807 = vmatpush.xpose.msra.mxu0 0.0
  %808 = vmatpush.xpose.msra.mxu0 0.0
  %809 = vmatpush.xpose.msra.mxu0 0.0
  %810 = vmatpush.xpose.msra.mxu0 0.0
  %811 = vmatpush.xpose.msra.mxu0 0.0
  %812 = vmatpush.xpose.msra.mxu0 %v795
  %813 = vmatmul.f32.gmra.mxu0 %v721
  %v814 = vpop.f32.mrf.mxu0
  %v815 = vadd.f32 0.0, %v814
  %816 = vdwg.mxu0
  %817 = vrot.lane.b32.xlu0 %v104, 120
  %v818 = vpop.permute.xlu0 %817
  %v819 = vsel %vm121, %v818, 0
  %821 = vmatpush.xpose.msra.mxu0 0.0
  %822 = vmatpush.xpose.msra.mxu0 0.0
  %823 = vmatpush.xpose.msra.mxu0 0.0
  %824 = vmatpush.xpose.msra.mxu0 0.0
  %825 = vmatpush.xpose.msra.mxu0 0.0
  %826 = vmatpush.xpose.msra.mxu0 0.0
  %827 = vmatpush.xpose.msra.mxu0 0.0
  %828 = vmatpush.xpose.msra.mxu0 0.0
  %829 = vmatpush.xpose.msra.mxu0 0.0
  %830 = vmatpush.xpose.msra.mxu0 0.0
  %831 = vmatpush.xpose.msra.mxu0 0.0
  %832 = vmatpush.xpose.msra.mxu0 0.0
  %833 = vmatpush.xpose.msra.mxu0 0.0
  %834 = vmatpush.xpose.msra.mxu0 0.0
  %835 = vmatpush.xpose.msra.mxu0 0.0
  %836 = vmatpush.xpose.msra.mxu0 %v819
  %837 = vmatmul.f32.gmra.mxu0 %v721
  %v838 = vpop.f32.mrf.mxu0
  %v839 = vadd.f32 0.0, %v838
  %840 = vdwg.mxu0
  %841 = vrot.lane.b32.xlu0 %v107, 120
  %v842 = vpop.permute.xlu0 %841
  %v843 = vsel %vm121, %v842, 0
  %845 = vmatpush.xpose.msra.mxu0 0.0
  %846 = vmatpush.xpose.msra.mxu0 0.0
  %847 = vmatpush.xpose.msra.mxu0 0.0
  %848 = vmatpush.xpose.msra.mxu0 0.0
  %849 = vmatpush.xpose.msra.mxu0 0.0
  %850 = vmatpush.xpose.msra.mxu0 0.0
  %851 = vmatpush.xpose.msra.mxu0 0.0
  %852 = vmatpush.xpose.msra.mxu0 0.0
  %853 = vmatpush.xpose.msra.mxu0 0.0
  %854 = vmatpush.xpose.msra.mxu0 0.0
  %855 = vmatpush.xpose.msra.mxu0 0.0
  %856 = vmatpush.xpose.msra.mxu0 0.0
  %857 = vmatpush.xpose.msra.mxu0 0.0
  %858 = vmatpush.xpose.msra.mxu0 0.0
  %859 = vmatpush.xpose.msra.mxu0 0.0
  %860 = vmatpush.xpose.msra.mxu0 %v843
  %861 = vmatmul.f32.gmra.mxu0 %v721
  %v862 = vpop.f32.mrf.mxu0
  %v863 = vadd.f32 0.0, %v862
  %864 = vdwg.mxu0
  %865 = vrot.lane.b32.xlu0 %v110, 120
  %v866 = vpop.permute.xlu0 %865
  %v867 = vsel %vm121, %v866, 0
  %869 = vmatpush.xpose.msra.mxu0 0.0
  %870 = vmatpush.xpose.msra.mxu0 0.0
  %871 = vmatpush.xpose.msra.mxu0 0.0
  %872 = vmatpush.xpose.msra.mxu0 0.0
  %873 = vmatpush.xpose.msra.mxu0 0.0
  %874 = vmatpush.xpose.msra.mxu0 0.0
  %875 = vmatpush.xpose.msra.mxu0 0.0
  %876 = vmatpush.xpose.msra.mxu0 0.0
  %877 = vmatpush.xpose.msra.mxu0 0.0
  %878 = vmatpush.xpose.msra.mxu0 0.0
  %879 = vmatpush.xpose.msra.mxu0 0.0
  %880 = vmatpush.xpose.msra.mxu0 0.0
  %881 = vmatpush.xpose.msra.mxu0 0.0
  %882 = vmatpush.xpose.msra.mxu0 0.0
  %883 = vmatpush.xpose.msra.mxu0 0.0
  %884 = vmatpush.xpose.msra.mxu0 %v867
  %885 = vmatmul.f32.gmra.mxu0 %v721
  %v886 = vpop.f32.mrf.mxu0
  %v887 = vadd.f32 0.0, %v886
  %888 = vdwg.mxu0
  %889 = vrot.lane.b32.xlu0 %v113, 120
  %v890 = vpop.permute.xlu0 %889
  %v891 = vsel %vm121, %v890, 0
  %893 = vmatpush.xpose.msra.mxu0 0.0
  %894 = vmatpush.xpose.msra.mxu0 0.0
  %895 = vmatpush.xpose.msra.mxu0 0.0
  %896 = vmatpush.xpose.msra.mxu0 0.0
  %897 = vmatpush.xpose.msra.mxu0 0.0
  %898 = vmatpush.xpose.msra.mxu0 0.0
  %899 = vmatpush.xpose.msra.mxu0 0.0
  %900 = vmatpush.xpose.msra.mxu0 0.0
  %901 = vmatpush.xpose.msra.mxu0 0.0
  %902 = vmatpush.xpose.msra.mxu0 0.0
  %903 = vmatpush.xpose.msra.mxu0 0.0
  %904 = vmatpush.xpose.msra.mxu0 0.0
  %905 = vmatpush.xpose.msra.mxu0 0.0
  %906 = vmatpush.xpose.msra.mxu0 0.0
  %907 = vmatpush.xpose.msra.mxu0 0.0
  %908 = vmatpush.xpose.msra.mxu0 %v891
  %909 = vmatmul.f32.gmra.mxu0 %v721
  %v910 = vpop.f32.mrf.mxu0
  %v911 = vadd.f32 0.0, %v910
  %912 = vdwg.mxu0
  %v913 = vsel %vm121, %v743, -inf
  %914 = vmax.xlane.f32.xlu0 %v913
  %v915 = vpop.xlane.xlu0 %914
  %v916 = vsel %vm121, %v767, -inf
  %917 = vmax.xlane.f32.xlu0 %v916
  %v918 = vpop.xlane.xlu0 %917
  %v919 = vsel %vm121, %v791, -inf
  %920 = vmax.xlane.f32.xlu0 %v919
  %v921 = vpop.xlane.xlu0 %920
  %v922 = vsel %vm121, %v815, -inf
  %923 = vmax.xlane.f32.xlu0 %v922
  %v924 = vpop.xlane.xlu0 %923
  %v925 = vsel %vm121, %v839, -inf
  %926 = vmax.xlane.f32.xlu0 %v925
  %v927 = vpop.xlane.xlu0 %926
  %v928 = vsel %vm121, %v863, -inf
  %929 = vmax.xlane.f32.xlu0 %v928
  %v930 = vpop.xlane.xlu0 %929
  %v931 = vsel %vm121, %v887, -inf
  %932 = vmax.xlane.f32.xlu0 %v931
  %v933 = vpop.xlane.xlu0 %932
  %v934 = vsel %vm121, %v911, -inf
  %935 = vmax.xlane.f32.xlu0 %v934
  %v936 = vpop.xlane.xlu0 %935
  %v937 = vsub.f32 %v743, %v915
  %v938 = vsub.f32 %v767, %v918
  %v939 = vsub.f32 %v791, %v921
  %v940 = vsub.f32 %v815, %v924
  %v941 = vsub.f32 %v839, %v927
  %v942 = vsub.f32 %v863, %v930
  %v943 = vsub.f32 %v887, %v933
  %v944 = vsub.f32 %v911, %v936
  %v945 = vmul.f32 %v937, 1.442695
  %v946 = vpow.pop %v945
  %v947 = vmul.f32 %v938, 1.442695
  %v948 = vpow.pop %v947
  %v949 = vmul.f32 %v939, 1.442695
  %v950 = vpow.pop %v949
  %v951 = vmul.f32 %v940, 1.442695
  %v952 = vpow.pop %v951
  %v953 = vmul.f32 %v941, 1.442695
  %v954 = vpow.pop %v953
  %v955 = vmul.f32 %v942, 1.442695
  %v956 = vpow.pop %v955
  %v957 = vmul.f32 %v943, 1.442695
  %v958 = vpow.pop %v957
  %v959 = vmul.f32 %v944, 1.442695
  %v960 = vpow.pop %v959
  %v961 = vsel %vm121, %v946, 0.0
  %962 = vadd.xlane.f32.xlu0 %v961
  %v963 = vpop.xlane.xlu0 %962
  %v964 = vsel %vm121, %v948, 0.0
  %965 = vadd.xlane.f32.xlu0 %v964
  %v966 = vpop.xlane.xlu0 %965
  %v967 = vsel %vm121, %v950, 0.0
  %968 = vadd.xlane.f32.xlu0 %v967
  %v969 = vpop.xlane.xlu0 %968
  %v970 = vsel %vm121, %v952, 0.0
  %971 = vadd.xlane.f32.xlu0 %v970
  %v972 = vpop.xlane.xlu0 %971
  %v973 = vsel %vm121, %v954, 0.0
  %974 = vadd.xlane.f32.xlu0 %v973
  %v975 = vpop.xlane.xlu0 %974
  %v976 = vsel %vm121, %v956, 0.0
  %977 = vadd.xlane.f32.xlu0 %v976
  %v978 = vpop.xlane.xlu0 %977
  %v979 = vsel %vm121, %v958, 0.0
  %980 = vadd.xlane.f32.xlu0 %v979
  %v981 = vpop.xlane.xlu0 %980
  %v982 = vsel %vm121, %v960, 0.0
  %983 = vadd.xlane.f32.xlu0 %v982
  %v984 = vpop.xlane.xlu0 %983
  %v985 = vrcp.pop %v963
  %v986 = vmul.f32 %v963, %v985
  %v987 = vsub.f32 1.0, %v986
  %v988 = vmul.f32 %v985, %v987
  %v989 = vadd.f32 %v985, %v988
  %vm990 = vweird.f32 %v963
  %vm991 = vweird.f32 %v985
  %vm992 = vmor %vm990, %vm991
  %v993 = vsel %vm992, %v985, %v989
  %v994 = vand.u32 2147483647, %v963
  %vm995 = vcmp.eq.f32.partialorder %v994, 8.507059e+37
  %v996 = vand.u32 %v963, 2147483648
  %v997 = vor.u32 1.1754944e-38, %v996
  %v998 = vsel %vm995, %v997, %v993
  %v999 = vrcp.pop %v966
  %v1000 = vmul.f32 %v966, %v999
  %v1001 = vsub.f32 1.0, %v1000
  %v1002 = vmul.f32 %v999, %v1001
  %v1003 = vadd.f32 %v999, %v1002
  %vm1004 = vweird.f32 %v966
  %vm1005 = vweird.f32 %v999
  %vm1006 = vmor %vm1004, %vm1005
  %v1007 = vsel %vm1006, %v999, %v1003
  %v1008 = vand.u32 2147483647, %v966
  %vm1009 = vcmp.eq.f32.partialorder %v1008, 8.507059e+37
  %v1010 = vand.u32 %v966, 2147483648
  %v1011 = vor.u32 1.1754944e-38, %v1010
  %v1012 = vsel %vm1009, %v1011, %v1007
  %v1013 = vrcp.pop %v969
  %v1014 = vmul.f32 %v969, %v1013
  %v1015 = vsub.f32 1.0, %v1014
  %v1016 = vmul.f32 %v1013, %v1015
  %v1017 = vadd.f32 %v1013, %v1016
  %vm1018 = vweird.f32 %v969
  %vm1019 = vweird.f32 %v1013
  %vm1020 = vmor %vm1018, %vm1019
  %v1021 = vsel %vm1020, %v1013, %v1017
  %v1022 = vand.u32 2147483647, %v969
  %vm1023 = vcmp.eq.f32.partialorder %v1022, 8.507059e+37
  %v1024 = vand.u32 %v969, 2147483648
  %v1025 = vor.u32 1.1754944e-38, %v1024
  %v1026 = vsel %vm1023, %v1025, %v1021
  %v1027 = vrcp.pop %v972
  %v1028 = vmul.f32 %v972, %v1027
  %v1029 = vsub.f32 1.0, %v1028
  %v1030 = vmul.f32 %v1027, %v1029
  %v1031 = vadd.f32 %v1027, %v1030
  %vm1032 = vweird.f32 %v972
  %vm1033 = vweird.f32 %v1027
  %vm1034 = vmor %vm1032, %vm1033
  %v1035 = vsel %vm1034, %v1027, %v1031
  %v1036 = vand.u32 2147483647, %v972
  %vm1037 = vcmp.eq.f32.partialorder %v1036, 8.507059e+37
  %v1038 = vand.u32 %v972, 2147483648
  %v1039 = vor.u32 1.1754944e-38, %v1038
  %v1040 = vsel %vm1037, %v1039, %v1035
  %v1041 = vrcp.pop %v975
  %v1042 = vmul.f32 %v975, %v1041
  %v1043 = vsub.f32 1.0, %v1042
  %v1044 = vmul.f32 %v1041, %v1043
  %v1045 = vadd.f32 %v1041, %v1044
  %vm1046 = vweird.f32 %v975
  %vm1047 = vweird.f32 %v1041
  %vm1048 = vmor %vm1046, %vm1047
  %v1049 = vsel %vm1048, %v1041, %v1045
  %v1050 = vand.u32 2147483647, %v975
  %vm1051 = vcmp.eq.f32.partialorder %v1050, 8.507059e+37
  %v1052 = vand.u32 %v975, 2147483648
  %v1053 = vor.u32 1.1754944e-38, %v1052
  %v1054 = vsel %vm1051, %v1053, %v1049
  %v1055 = vrcp.pop %v978
  %v1056 = vmul.f32 %v978, %v1055
  %v1057 = vsub.f32 1.0, %v1056
  %v1058 = vmul.f32 %v1055, %v1057
  %v1059 = vadd.f32 %v1055, %v1058
  %vm1060 = vweird.f32 %v978
  %vm1061 = vweird.f32 %v1055
  %vm1062 = vmor %vm1060, %vm1061
  %v1063 = vsel %vm1062, %v1055, %v1059
  %v1064 = vand.u32 2147483647, %v978
  %vm1065 = vcmp.eq.f32.partialorder %v1064, 8.507059e+37
  %v1066 = vand.u32 %v978, 2147483648
  %v1067 = vor.u32 1.1754944e-38, %v1066
  %v1068 = vsel %vm1065, %v1067, %v1063
  %v1069 = vrcp.pop %v981
  %v1070 = vmul.f32 %v981, %v1069
  %v1071 = vsub.f32 1.0, %v1070
  %v1072 = vmul.f32 %v1069, %v1071
  %v1073 = vadd.f32 %v1069, %v1072
  %vm1074 = vweird.f32 %v981
  %vm1075 = vweird.f32 %v1069
  %vm1076 = vmor %vm1074, %vm1075
  %v1077 = vsel %vm1076, %v1069, %v1073
  %v1078 = vand.u32 2147483647, %v981
  %vm1079 = vcmp.eq.f32.partialorder %v1078, 8.507059e+37
  %v1080 = vand.u32 %v981, 2147483648
  %v1081 = vor.u32 1.1754944e-38, %v1080
  %v1082 = vsel %vm1079, %v1081, %v1077
  %v1083 = vrcp.pop %v984
  %v1084 = vmul.f32 %v984, %v1083
  %v1085 = vsub.f32 1.0, %v1084
  %v1086 = vmul.f32 %v1083, %v1085
  %v1087 = vadd.f32 %v1083, %v1086
  %vm1088 = vweird.f32 %v984
  %vm1089 = vweird.f32 %v1083
  %vm1090 = vmor %vm1088, %vm1089
  %v1091 = vsel %vm1090, %v1083, %v1087
  %v1092 = vand.u32 2147483647, %v984
  %vm1093 = vcmp.eq.f32.partialorder %v1092, 8.507059e+37
  %v1094 = vand.u32 %v984, 2147483648
  %v1095 = vor.u32 1.1754944e-38, %v1094
  %v1096 = vsel %vm1093, %v1095, %v1091
  %v1097 = vmul.f32 %v946, %v998
  %v1098 = vmul.f32 %v948, %v1012
  %v1099 = vmul.f32 %v950, %v1026
  %v1100 = vmul.f32 %v952, %v1040
  %v1101 = vmul.f32 %v954, %v1054
  %v1102 = vmul.f32 %v956, %v1068
  %v1103 = vmul.f32 %v958, %v1082
  %v1104 = vmul.f32 %v960, %v1096
  %1105 = vrot.lane.b32.xlu0 %v92, 88
  %v1106 = vpop.permute.xlu0 %1105
  %v1109 = vsel %vm121, %v1097, 0
  %1111 = vmatpush.msra.mxu0 0.0
  %1112 = vmatpush.msra.mxu0 0.0
  %1113 = vmatpush.msra.mxu0 0.0
  %1114 = vmatpush.msra.mxu0 0.0
  %1115 = vmatpush.msra.mxu0 0.0
  %1116 = vmatpush.msra.mxu0 0.0
  %1117 = vmatpush.msra.mxu0 0.0
  %1118 = vmatpush.msra.mxu0 0.0
  %1119 = vmatpush.msra.mxu0 0.0
  %1120 = vmatpush.msra.mxu0 0.0
  %1121 = vmatpush.msra.mxu0 0.0
  %1122 = vmatpush.msra.mxu0 0.0
  %1123 = vmatpush.msra.mxu0 0.0
  %1124 = vmatpush.msra.mxu0 0.0
  %1125 = vmatpush.msra.mxu0 0.0
  %1126 = vmatpush.msra.mxu0 %v1106
  %1127 = vmatmul.f32.gmra.mxu0 %v1109
  %v1128 = vpop.f32.mrf.mxu0
  %v1129 = vadd.f32 0.0, %v1128
  %1130 = vdwg.mxu0
  %1131 = vrot.lane.b32.xlu0 %v95, 88
  %v1132 = vpop.permute.xlu0 %1131
  %v1135 = vsel %vm121, %v1098, 0
  %1137 = vmatpush.msra.mxu0 0.0
  %1138 = vmatpush.msra.mxu0 0.0
  %1139 = vmatpush.msra.mxu0 0.0
  %1140 = vmatpush.msra.mxu0 0.0
  %1141 = vmatpush.msra.mxu0 0.0
  %1142 = vmatpush.msra.mxu0 0.0
  %1143 = vmatpush.msra.mxu0 0.0
  %1144 = vmatpush.msra.mxu0 0.0
  %1145 = vmatpush.msra.mxu0 0.0
  %1146 = vmatpush.msra.mxu0 0.0
  %1147 = vmatpush.msra.mxu0 0.0
  %1148 = vmatpush.msra.mxu0 0.0
  %1149 = vmatpush.msra.mxu0 0.0
  %1150 = vmatpush.msra.mxu0 0.0
  %1151 = vmatpush.msra.mxu0 0.0
  %1152 = vmatpush.msra.mxu0 %v1132
  %1153 = vmatmul.f32.gmra.mxu0 %v1135
  %v1154 = vpop.f32.mrf.mxu0
  %v1155 = vadd.f32 0.0, %v1154
  %1156 = vdwg.mxu0
  %1157 = vrot.lane.b32.xlu0 %v98, 88
  %v1158 = vpop.permute.xlu0 %1157
  %v1161 = vsel %vm121, %v1099, 0
  %1163 = vmatpush.msra.mxu0 0.0
  %1164 = vmatpush.msra.mxu0 0.0
  %1165 = vmatpush.msra.mxu0 0.0
  %1166 = vmatpush.msra.mxu0 0.0
  %1167 = vmatpush.msra.mxu0 0.0
  %1168 = vmatpush.msra.mxu0 0.0
  %1169 = vmatpush.msra.mxu0 0.0
  %1170 = vmatpush.msra.mxu0 0.0
  %1171 = vmatpush.msra.mxu0 0.0
  %1172 = vmatpush.msra.mxu0 0.0
  %1173 = vmatpush.msra.mxu0 0.0
  %1174 = vmatpush.msra.mxu0 0.0
  %1175 = vmatpush.msra.mxu0 0.0
  %1176 = vmatpush.msra.mxu0 0.0
  %1177 = vmatpush.msra.mxu0 0.0
  %1178 = vmatpush.msra.mxu0 %v1158
  %1179 = vmatmul.f32.gmra.mxu0 %v1161
  %v1180 = vpop.f32.mrf.mxu0
  %v1181 = vadd.f32 0.0, %v1180
  %1182 = vdwg.mxu0
  %1183 = vrot.lane.b32.xlu0 %v101, 88
  %v1184 = vpop.permute.xlu0 %1183
  %v1187 = vsel %vm121, %v1100, 0
  %1189 = vmatpush.msra.mxu0 0.0
  %1190 = vmatpush.msra.mxu0 0.0
  %1191 = vmatpush.msra.mxu0 0.0
  %1192 = vmatpush.msra.mxu0 0.0
  %1193 = vmatpush.msra.mxu0 0.0
  %1194 = vmatpush.msra.mxu0 0.0
  %1195 = vmatpush.msra.mxu0 0.0
  %1196 = vmatpush.msra.mxu0 0.0
  %1197 = vmatpush.msra.mxu0 0.0
  %1198 = vmatpush.msra.mxu0 0.0
  %1199 = vmatpush.msra.mxu0 0.0
  %1200 = vmatpush.msra.mxu0 0.0
  %1201 = vmatpush.msra.mxu0 0.0
  %1202 = vmatpush.msra.mxu0 0.0
  %1203 = vmatpush.msra.mxu0 0.0
  %1204 = vmatpush.msra.mxu0 %v1184
  %1205 = vmatmul.f32.gmra.mxu0 %v1187
  %v1206 = vpop.f32.mrf.mxu0
  %v1207 = vadd.f32 0.0, %v1206
  %1208 = vdwg.mxu0
  %1209 = vrot.lane.b32.xlu0 %v104, 88
  %v1210 = vpop.permute.xlu0 %1209
  %v1213 = vsel %vm121, %v1101, 0
  %1215 = vmatpush.msra.mxu0 0.0
  %1216 = vmatpush.msra.mxu0 0.0
  %1217 = vmatpush.msra.mxu0 0.0
  %1218 = vmatpush.msra.mxu0 0.0
  %1219 = vmatpush.msra.mxu0 0.0
  %1220 = vmatpush.msra.mxu0 0.0
  %1221 = vmatpush.msra.mxu0 0.0
  %1222 = vmatpush.msra.mxu0 0.0
  %1223 = vmatpush.msra.mxu0 0.0
  %1224 = vmatpush.msra.mxu0 0.0
  %1225 = vmatpush.msra.mxu0 0.0
  %1226 = vmatpush.msra.mxu0 0.0
  %1227 = vmatpush.msra.mxu0 0.0
  %1228 = vmatpush.msra.mxu0 0.0
  %1229 = vmatpush.msra.mxu0 0.0
  %1230 = vmatpush.msra.mxu0 %v1210
  %1231 = vmatmul.f32.gmra.mxu0 %v1213
  %v1232 = vpop.f32.mrf.mxu0
  %v1233 = vadd.f32 0.0, %v1232
  %1234 = vdwg.mxu0
  %1235 = vrot.lane.b32.xlu0 %v107, 88
  %v1236 = vpop.permute.xlu0 %1235
  %v1239 = vsel %vm121, %v1102, 0
  %1241 = vmatpush.msra.mxu0 0.0
  %1242 = vmatpush.msra.mxu0 0.0
  %1243 = vmatpush.msra.mxu0 0.0
  %1244 = vmatpush.msra.mxu0 0.0
  %1245 = vmatpush.msra.mxu0 0.0
  %1246 = vmatpush.msra.mxu0 0.0
  %1247 = vmatpush.msra.mxu0 0.0
  %1248 = vmatpush.msra.mxu0 0.0
  %1249 = vmatpush.msra.mxu0 0.0
  %1250 = vmatpush.msra.mxu0 0.0
  %1251 = vmatpush.msra.mxu0 0.0
  %1252 = vmatpush.msra.mxu0 0.0
  %1253 = vmatpush.msra.mxu0 0.0
  %1254 = vmatpush.msra.mxu0 0.0
  %1255 = vmatpush.msra.mxu0 0.0
  %1256 = vmatpush.msra.mxu0 %v1236
  %1257 = vmatmul.f32.gmra.mxu0 %v1239
  %v1258 = vpop.f32.mrf.mxu0
  %v1259 = vadd.f32 0.0, %v1258
  %1260 = vdwg.mxu0
  %1261 = vrot.lane.b32.xlu0 %v110, 88
  %v1262 = vpop.permute.xlu0 %1261
  %v1265 = vsel %vm121, %v1103, 0
  %1267 = vmatpush.msra.mxu0 0.0
  %1268 = vmatpush.msra.mxu0 0.0
  %1269 = vmatpush.msra.mxu0 0.0
  %1270 = vmatpush.msra.mxu0 0.0
  %1271 = vmatpush.msra.mxu0 0.0
  %1272 = vmatpush.msra.mxu0 0.0
  %1273 = vmatpush.msra.mxu0 0.0
  %1274 = vmatpush.msra.mxu0 0.0
  %1275 = vmatpush.msra.mxu0 0.0
  %1276 = vmatpush.msra.mxu0 0.0
  %1277 = vmatpush.msra.mxu0 0.0
  %1278 = vmatpush.msra.mxu0 0.0
  %1279 = vmatpush.msra.mxu0 0.0
  %1280 = vmatpush.msra.mxu0 0.0
  %1281 = vmatpush.msra.mxu0 0.0
  %1282 = vmatpush.msra.mxu0 %v1262
  %1283 = vmatmul.f32.gmra.mxu0 %v1265
  %v1284 = vpop.f32.mrf.mxu0
  %v1285 = vadd.f32 0.0, %v1284
  %1286 = vdwg.mxu0
  %1287 = vrot.lane.b32.xlu0 %v113, 88
  %v1288 = vpop.permute.xlu0 %1287
  %v1291 = vsel %vm121, %v1104, 0
  %1293 = vmatpush.msra.mxu0 0.0
  %1294 = vmatpush.msra.mxu0 0.0
  %1295 = vmatpush.msra.mxu0 0.0
  %1296 = vmatpush.msra.mxu0 0.0
  %1297 = vmatpush.msra.mxu0 0.0
  %1298 = vmatpush.msra.mxu0 0.0
  %1299 = vmatpush.msra.mxu0 0.0
  %1300 = vmatpush.msra.mxu0 0.0
  %1301 = vmatpush.msra.mxu0 0.0
  %1302 = vmatpush.msra.mxu0 0.0
  %1303 = vmatpush.msra.mxu0 0.0
  %1304 = vmatpush.msra.mxu0 0.0
  %1305 = vmatpush.msra.mxu0 0.0
  %1306 = vmatpush.msra.mxu0 0.0
  %1307 = vmatpush.msra.mxu0 0.0
  %1308 = vmatpush.msra.mxu0 %v1288
  %1309 = vmatmul.f32.gmra.mxu0 %v1291
  %v1310 = vpop.f32.mrf.mxu0
  %v1311 = vadd.f32 0.0, %v1310
  %1312 = vdwg.mxu0
  %1321 = vrot.lane.b32.xlu0 %v1129, 8
  %v1322 = vpop.permute.xlu0 %1321
  %1323 = vrot.lane.b32.xlu0 %v1155, 8
  %v1324 = vpop.permute.xlu0 %1323
  %1325 = vrot.lane.b32.xlu0 %v1181, 8
  %v1326 = vpop.permute.xlu0 %1325
  %1327 = vrot.lane.b32.xlu0 %v1207, 8
  %v1328 = vpop.permute.xlu0 %1327
  %1329 = vrot.lane.b32.xlu0 %v1233, 8
  %v1330 = vpop.permute.xlu0 %1329
  %1331 = vrot.lane.b32.xlu0 %v1259, 8
  %v1332 = vpop.permute.xlu0 %1331
  %1333 = vrot.lane.b32.xlu0 %v1285, 8
  %v1334 = vpop.permute.xlu0 %1333
  %1335 = vrot.lane.b32.xlu0 %v1311, 8
  %v1336 = vpop.permute.xlu0 %1335
  %v1345 = vadd.f32 %v115, %v1322
  %v1346 = vadd.f32 %v115, %v1324
  %v1347 = vadd.f32 %v115, %v1326
  %v1348 = vadd.f32 %v115, %v1328
  %v1349 = vadd.f32 %v115, %v1330
  %v1350 = vadd.f32 %v115, %v1332
  %v1351 = vadd.f32 %v115, %v1334
  %v1352 = vadd.f32 %v115, %v1336
  %1353 = vrot.lane.b32.xlu0 %v115, 112
  %v1354 = vpop.permute.xlu0 %1353
  %1355 = vrot.lane.b32.xlu0 %v92, 112
  %v1356 = vpop.permute.xlu0 %1355
  %v1357 = vsel %vm121, %v1354, 0
  %v1359 = vsel %vm121, %v1356, 0
  %1361 = vmatpush.xpose.msra.mxu0 0.0
  %1362 = vmatpush.xpose.msra.mxu0 0.0
  %1363 = vmatpush.xpose.msra.mxu0 0.0
  %1364 = vmatpush.xpose.msra.mxu0 0.0
  %1365 = vmatpush.xpose.msra.mxu0 0.0
  %1366 = vmatpush.xpose.msra.mxu0 0.0
  %1367 = vmatpush.xpose.msra.mxu0 0.0
  %1368 = vmatpush.xpose.msra.mxu0 0.0
  %1369 = vmatpush.xpose.msra.mxu0 0.0
  %1370 = vmatpush.xpose.msra.mxu0 0.0
  %1371 = vmatpush.xpose.msra.mxu0 0.0
  %1372 = vmatpush.xpose.msra.mxu0 0.0
  %1373 = vmatpush.xpose.msra.mxu0 0.0
  %1374 = vmatpush.xpose.msra.mxu0 0.0
  %1375 = vmatpush.xpose.msra.mxu0 0.0
  %1376 = vmatpush.xpose.msra.mxu0 %v1359
  %1377 = vmatmul.f32.gmra.mxu0 %v1357
  %v1378 = vpop.f32.mrf.mxu0
  %v1379 = vadd.f32 0.0, %v1378
  %1380 = vdwg.mxu0
  %1381 = vrot.lane.b32.xlu0 %v95, 112
  %v1382 = vpop.permute.xlu0 %1381
  %v1383 = vsel %vm121, %v1382, 0
  %1385 = vmatpush.xpose.msra.mxu0 0.0
  %1386 = vmatpush.xpose.msra.mxu0 0.0
  %1387 = vmatpush.xpose.msra.mxu0 0.0
  %1388 = vmatpush.xpose.msra.mxu0 0.0
  %1389 = vmatpush.xpose.msra.mxu0 0.0
  %1390 = vmatpush.xpose.msra.mxu0 0.0
  %1391 = vmatpush.xpose.msra.mxu0 0.0
  %1392 = vmatpush.xpose.msra.mxu0 0.0
  %1393 = vmatpush.xpose.msra.mxu0 0.0
  %1394 = vmatpush.xpose.msra.mxu0 0.0
  %1395 = vmatpush.xpose.msra.mxu0 0.0
  %1396 = vmatpush.xpose.msra.mxu0 0.0
  %1397 = vmatpush.xpose.msra.mxu0 0.0
  %1398 = vmatpush.xpose.msra.mxu0 0.0
  %1399 = vmatpush.xpose.msra.mxu0 0.0
  %1400 = vmatpush.xpose.msra.mxu0 %v1383
  %1401 = vmatmul.f32.gmra.mxu0 %v1357
  %v1402 = vpop.f32.mrf.mxu0
  %v1403 = vadd.f32 0.0, %v1402
  %1404 = vdwg.mxu0
  %1405 = vrot.lane.b32.xlu0 %v98, 112
  %v1406 = vpop.permute.xlu0 %1405
  %v1407 = vsel %vm121, %v1406, 0
  %1409 = vmatpush.xpose.msra.mxu0 0.0
  %1410 = vmatpush.xpose.msra.mxu0 0.0
  %1411 = vmatpush.xpose.msra.mxu0 0.0
  %1412 = vmatpush.xpose.msra.mxu0 0.0
  %1413 = vmatpush.xpose.msra.mxu0 0.0
  %1414 = vmatpush.xpose.msra.mxu0 0.0
  %1415 = vmatpush.xpose.msra.mxu0 0.0
  %1416 = vmatpush.xpose.msra.mxu0 0.0
  %1417 = vmatpush.xpose.msra.mxu0 0.0
  %1418 = vmatpush.xpose.msra.mxu0 0.0
  %1419 = vmatpush.xpose.msra.mxu0 0.0
  %1420 = vmatpush.xpose.msra.mxu0 0.0
  %1421 = vmatpush.xpose.msra.mxu0 0.0
  %1422 = vmatpush.xpose.msra.mxu0 0.0
  %1423 = vmatpush.xpose.msra.mxu0 0.0
  %1424 = vmatpush.xpose.msra.mxu0 %v1407
  %1425 = vmatmul.f32.gmra.mxu0 %v1357
  %v1426 = vpop.f32.mrf.mxu0
  %v1427 = vadd.f32 0.0, %v1426
  %1428 = vdwg.mxu0
  %1429 = vrot.lane.b32.xlu0 %v101, 112
  %v1430 = vpop.permute.xlu0 %1429
  %v1431 = vsel %vm121, %v1430, 0
  %1433 = vmatpush.xpose.msra.mxu0 0.0
  %1434 = vmatpush.xpose.msra.mxu0 0.0
  %1435 = vmatpush.xpose.msra.mxu0 0.0
  %1436 = vmatpush.xpose.msra.mxu0 0.0
  %1437 = vmatpush.xpose.msra.mxu0 0.0
  %1438 = vmatpush.xpose.msra.mxu0 0.0
  %1439 = vmatpush.xpose.msra.mxu0 0.0
  %1440 = vmatpush.xpose.msra.mxu0 0.0
  %1441 = vmatpush.xpose.msra.mxu0 0.0
  %1442 = vmatpush.xpose.msra.mxu0 0.0
  %1443 = vmatpush.xpose.msra.mxu0 0.0
  %1444 = vmatpush.xpose.msra.mxu0 0.0
  %1445 = vmatpush.xpose.msra.mxu0 0.0
  %1446 = vmatpush.xpose.msra.mxu0 0.0
  %1447 = vmatpush.xpose.msra.mxu0 0.0
  %1448 = vmatpush.xpose.msra.mxu0 %v1431
  %1449 = vmatmul.f32.gmra.mxu0 %v1357
  %v1450 = vpop.f32.mrf.mxu0
  %v1451 = vadd.f32 0.0, %v1450
  %1452 = vdwg.mxu0
  %1453 = vrot.lane.b32.xlu0 %v104, 112
  %v1454 = vpop.permute.xlu0 %1453
  %v1455 = vsel %vm121, %v1454, 0
  %1457 = vmatpush.xpose.msra.mxu0 0.0
  %1458 = vmatpush.xpose.msra.mxu0 0.0
  %1459 = vmatpush.xpose.msra.mxu0 0.0
  %1460 = vmatpush.xpose.msra.mxu0 0.0
  %1461 = vmatpush.xpose.msra.mxu0 0.0
  %1462 = vmatpush.xpose.msra.mxu0 0.0
  %1463 = vmatpush.xpose.msra.mxu0 0.0
  %1464 = vmatpush.xpose.msra.mxu0 0.0
  %1465 = vmatpush.xpose.msra.mxu0 0.0
  %1466 = vmatpush.xpose.msra.mxu0 0.0
  %1467 = vmatpush.xpose.msra.mxu0 0.0
  %1468 = vmatpush.xpose.msra.mxu0 0.0
  %1469 = vmatpush.xpose.msra.mxu0 0.0
  %1470 = vmatpush.xpose.msra.mxu0 0.0
  %1471 = vmatpush.xpose.msra.mxu0 0.0
  %1472 = vmatpush.xpose.msra.mxu0 %v1455
  %1473 = vmatmul.f32.gmra.mxu0 %v1357
  %v1474 = vpop.f32.mrf.mxu0
  %v1475 = vadd.f32 0.0, %v1474
  %1476 = vdwg.mxu0
  %1477 = vrot.lane.b32.xlu0 %v107, 112
  %v1478 = vpop.permute.xlu0 %1477
  %v1479 = vsel %vm121, %v1478, 0
  %1481 = vmatpush.xpose.msra.mxu0 0.0
  %1482 = vmatpush.xpose.msra.mxu0 0.0
  %1483 = vmatpush.xpose.msra.mxu0 0.0
  %1484 = vmatpush.xpose.msra.mxu0 0.0
  %1485 = vmatpush.xpose.msra.mxu0 0.0
  %1486 = vmatpush.xpose.msra.mxu0 0.0
  %1487 = vmatpush.xpose.msra.mxu0 0.0
  %1488 = vmatpush.xpose.msra.mxu0 0.0
  %1489 = vmatpush.xpose.msra.mxu0 0.0
  %1490 = vmatpush.xpose.msra.mxu0 0.0
  %1491 = vmatpush.xpose.msra.mxu0 0.0
  %1492 = vmatpush.xpose.msra.mxu0 0.0
  %1493 = vmatpush.xpose.msra.mxu0 0.0
  %1494 = vmatpush.xpose.msra.mxu0 0.0
  %1495 = vmatpush.xpose.msra.mxu0 0.0
  %1496 = vmatpush.xpose.msra.mxu0 %v1479
  %1497 = vmatmul.f32.gmra.mxu0 %v1357
  %v1498 = vpop.f32.mrf.mxu0
  %v1499 = vadd.f32 0.0, %v1498
  %1500 = vdwg.mxu0
  %1501 = vrot.lane.b32.xlu0 %v110, 112
  %v1502 = vpop.permute.xlu0 %1501
  %v1503 = vsel %vm121, %v1502, 0
  %1505 = vmatpush.xpose.msra.mxu0 0.0
  %1506 = vmatpush.xpose.msra.mxu0 0.0
  %1507 = vmatpush.xpose.msra.mxu0 0.0
  %1508 = vmatpush.xpose.msra.mxu0 0.0
  %1509 = vmatpush.xpose.msra.mxu0 0.0
  %1510 = vmatpush.xpose.msra.mxu0 0.0
  %1511 = vmatpush.xpose.msra.mxu0 0.0
  %1512 = vmatpush.xpose.msra.mxu0 0.0
  %1513 = vmatpush.xpose.msra.mxu0 0.0
  %1514 = vmatpush.xpose.msra.mxu0 0.0
  %1515 = vmatpush.xpose.msra.mxu0 0.0
  %1516 = vmatpush.xpose.msra.mxu0 0.0
  %1517 = vmatpush.xpose.msra.mxu0 0.0
  %1518 = vmatpush.xpose.msra.mxu0 0.0
  %1519 = vmatpush.xpose.msra.mxu0 0.0
  %1520 = vmatpush.xpose.msra.mxu0 %v1503
  %1521 = vmatmul.f32.gmra.mxu0 %v1357
  %v1522 = vpop.f32.mrf.mxu0
  %v1523 = vadd.f32 0.0, %v1522
  %1524 = vdwg.mxu0
  %1525 = vrot.lane.b32.xlu0 %v113, 112
  %v1526 = vpop.permute.xlu0 %1525
  %v1527 = vsel %vm121, %v1526, 0
  %1529 = vmatpush.xpose.msra.mxu0 0.0
  %1530 = vmatpush.xpose.msra.mxu0 0.0
  %1531 = vmatpush.xpose.msra.mxu0 0.0
  %1532 = vmatpush.xpose.msra.mxu0 0.0
  %1533 = vmatpush.xpose.msra.mxu0 0.0
  %1534 = vmatpush.xpose.msra.mxu0 0.0
  %1535 = vmatpush.xpose.msra.mxu0 0.0
  %1536 = vmatpush.xpose.msra.mxu0 0.0
  %1537 = vmatpush.xpose.msra.mxu0 0.0
  %1538 = vmatpush.xpose.msra.mxu0 0.0
  %1539 = vmatpush.xpose.msra.mxu0 0.0
  %1540 = vmatpush.xpose.msra.mxu0 0.0
  %1541 = vmatpush.xpose.msra.mxu0 0.0
  %1542 = vmatpush.xpose.msra.mxu0 0.0
  %1543 = vmatpush.xpose.msra.mxu0 0.0
  %1544 = vmatpush.xpose.msra.mxu0 %v1527
  %1545 = vmatmul.f32.gmra.mxu0 %v1357
  %v1546 = vpop.f32.mrf.mxu0
  %v1547 = vadd.f32 0.0, %v1546
  %1548 = vdwg.mxu0
  %v1549 = vsel %vm121, %v1379, -inf
  %1550 = vmax.xlane.f32.xlu0 %v1549
  %v1551 = vpop.xlane.xlu0 %1550
  %v1552 = vsel %vm121, %v1403, -inf
  %1553 = vmax.xlane.f32.xlu0 %v1552
  %v1554 = vpop.xlane.xlu0 %1553
  %v1555 = vsel %vm121, %v1427, -inf
  %1556 = vmax.xlane.f32.xlu0 %v1555
  %v1557 = vpop.xlane.xlu0 %1556
  %v1558 = vsel %vm121, %v1451, -inf
  %1559 = vmax.xlane.f32.xlu0 %v1558
  %v1560 = vpop.xlane.xlu0 %1559
  %v1561 = vsel %vm121, %v1475, -inf
  %1562 = vmax.xlane.f32.xlu0 %v1561
  %v1563 = vpop.xlane.xlu0 %1562
  %v1564 = vsel %vm121, %v1499, -inf
  %1565 = vmax.xlane.f32.xlu0 %v1564
  %v1566 = vpop.xlane.xlu0 %1565
  %v1567 = vsel %vm121, %v1523, -inf
  %1568 = vmax.xlane.f32.xlu0 %v1567
  %v1569 = vpop.xlane.xlu0 %1568
  %v1570 = vsel %vm121, %v1547, -inf
  %1571 = vmax.xlane.f32.xlu0 %v1570
  %v1572 = vpop.xlane.xlu0 %1571
  %v1573 = vsub.f32 %v1379, %v1551
  %v1574 = vsub.f32 %v1403, %v1554
  %v1575 = vsub.f32 %v1427, %v1557
  %v1576 = vsub.f32 %v1451, %v1560
  %v1577 = vsub.f32 %v1475, %v1563
  %v1578 = vsub.f32 %v1499, %v1566
  %v1579 = vsub.f32 %v1523, %v1569
  %v1580 = vsub.f32 %v1547, %v1572
  %v1581 = vmul.f32 %v1573, 1.442695
  %v1582 = vpow.pop %v1581
  %v1583 = vmul.f32 %v1574, 1.442695
  %v1584 = vpow.pop %v1583
  %v1585 = vmul.f32 %v1575, 1.442695
  %v1586 = vpow.pop %v1585
  %v1587 = vmul.f32 %v1576, 1.442695
  %v1588 = vpow.pop %v1587
  %v1589 = vmul.f32 %v1577, 1.442695
  %v1590 = vpow.pop %v1589
  %v1591 = vmul.f32 %v1578, 1.442695
  %v1592 = vpow.pop %v1591
  %v1593 = vmul.f32 %v1579, 1.442695
  %v1594 = vpow.pop %v1593
  %v1595 = vmul.f32 %v1580, 1.442695
  %v1596 = vpow.pop %v1595
  %v1597 = vsel %vm121, %v1582, 0.0
  %1598 = vadd.xlane.f32.xlu0 %v1597
  %v1599 = vpop.xlane.xlu0 %1598
  %v1600 = vsel %vm121, %v1584, 0.0
  %1601 = vadd.xlane.f32.xlu0 %v1600
  %v1602 = vpop.xlane.xlu0 %1601
  %v1603 = vsel %vm121, %v1586, 0.0
  %1604 = vadd.xlane.f32.xlu0 %v1603
  %v1605 = vpop.xlane.xlu0 %1604
  %v1606 = vsel %vm121, %v1588, 0.0
  %1607 = vadd.xlane.f32.xlu0 %v1606
  %v1608 = vpop.xlane.xlu0 %1607
  %v1609 = vsel %vm121, %v1590, 0.0
  %1610 = vadd.xlane.f32.xlu0 %v1609
  %v1611 = vpop.xlane.xlu0 %1610
  %v1612 = vsel %vm121, %v1592, 0.0
  %1613 = vadd.xlane.f32.xlu0 %v1612
  %v1614 = vpop.xlane.xlu0 %1613
  %v1615 = vsel %vm121, %v1594, 0.0
  %1616 = vadd.xlane.f32.xlu0 %v1615
  %v1617 = vpop.xlane.xlu0 %1616
  %v1618 = vsel %vm121, %v1596, 0.0
  %1619 = vadd.xlane.f32.xlu0 %v1618
  %v1620 = vpop.xlane.xlu0 %1619
  %v1621 = vrcp.pop %v1599
  %v1622 = vmul.f32 %v1599, %v1621
  %v1623 = vsub.f32 1.0, %v1622
  %v1624 = vmul.f32 %v1621, %v1623
  %v1625 = vadd.f32 %v1621, %v1624
  %vm1626 = vweird.f32 %v1599
  %vm1627 = vweird.f32 %v1621
  %vm1628 = vmor %vm1626, %vm1627
  %v1629 = vsel %vm1628, %v1621, %v1625
  %v1630 = vand.u32 2147483647, %v1599
  %vm1631 = vcmp.eq.f32.partialorder %v1630, 8.507059e+37
  %v1632 = vand.u32 %v1599, 2147483648
  %v1633 = vor.u32 1.1754944e-38, %v1632
  %v1634 = vsel %vm1631, %v1633, %v1629
  %v1635 = vrcp.pop %v1602
  %v1636 = vmul.f32 %v1602, %v1635
  %v1637 = vsub.f32 1.0, %v1636
  %v1638 = vmul.f32 %v1635, %v1637
  %v1639 = vadd.f32 %v1635, %v1638
  %vm1640 = vweird.f32 %v1602
  %vm1641 = vweird.f32 %v1635
  %vm1642 = vmor %vm1640, %vm1641
  %v1643 = vsel %vm1642, %v1635, %v1639
  %v1644 = vand.u32 2147483647, %v1602
  %vm1645 = vcmp.eq.f32.partialorder %v1644, 8.507059e+37
  %v1646 = vand.u32 %v1602, 2147483648
  %v1647 = vor.u32 1.1754944e-38, %v1646
  %v1648 = vsel %vm1645, %v1647, %v1643
  %v1649 = vrcp.pop %v1605
  %v1650 = vmul.f32 %v1605, %v1649
  %v1651 = vsub.f32 1.0, %v1650
  %v1652 = vmul.f32 %v1649, %v1651
  %v1653 = vadd.f32 %v1649, %v1652
  %vm1654 = vweird.f32 %v1605
  %vm1655 = vweird.f32 %v1649
  %vm1656 = vmor %vm1654, %vm1655
  %v1657 = vsel %vm1656, %v1649, %v1653
  %v1658 = vand.u32 2147483647, %v1605
  %vm1659 = vcmp.eq.f32.partialorder %v1658, 8.507059e+37
  %v1660 = vand.u32 %v1605, 2147483648
  %v1661 = vor.u32 1.1754944e-38, %v1660
  %v1662 = vsel %vm1659, %v1661, %v1657
  %v1663 = vrcp.pop %v1608
  %v1664 = vmul.f32 %v1608, %v1663
  %v1665 = vsub.f32 1.0, %v1664
  %v1666 = vmul.f32 %v1663, %v1665
  %v1667 = vadd.f32 %v1663, %v1666
  %vm1668 = vweird.f32 %v1608
  %vm1669 = vweird.f32 %v1663
  %vm1670 = vmor %vm1668, %vm1669
  %v1671 = vsel %vm1670, %v1663, %v1667
  %v1672 = vand.u32 2147483647, %v1608
  %vm1673 = vcmp.eq.f32.partialorder %v1672, 8.507059e+37
  %v1674 = vand.u32 %v1608, 2147483648
  %v1675 = vor.u32 1.1754944e-38, %v1674
  %v1676 = vsel %vm1673, %v1675, %v1671
  %v1677 = vrcp.pop %v1611
  %v1678 = vmul.f32 %v1611, %v1677
  %v1679 = vsub.f32 1.0, %v1678
  %v1680 = vmul.f32 %v1677, %v1679
  %v1681 = vadd.f32 %v1677, %v1680
  %vm1682 = vweird.f32 %v1611
  %vm1683 = vweird.f32 %v1677
  %vm1684 = vmor %vm1682, %vm1683
  %v1685 = vsel %vm1684, %v1677, %v1681
  %v1686 = vand.u32 2147483647, %v1611
  %vm1687 = vcmp.eq.f32.partialorder %v1686, 8.507059e+37
  %v1688 = vand.u32 %v1611, 2147483648
  %v1689 = vor.u32 1.1754944e-38, %v1688
  %v1690 = vsel %vm1687, %v1689, %v1685
  %v1691 = vrcp.pop %v1614
  %v1692 = vmul.f32 %v1614, %v1691
  %v1693 = vsub.f32 1.0, %v1692
  %v1694 = vmul.f32 %v1691, %v1693
  %v1695 = vadd.f32 %v1691, %v1694
  %vm1696 = vweird.f32 %v1614
  %vm1697 = vweird.f32 %v1691
  %vm1698 = vmor %vm1696, %vm1697
  %v1699 = vsel %vm1698, %v1691, %v1695
  %v1700 = vand.u32 2147483647, %v1614
  %vm1701 = vcmp.eq.f32.partialorder %v1700, 8.507059e+37
  %v1702 = vand.u32 %v1614, 2147483648
  %v1703 = vor.u32 1.1754944e-38, %v1702
  %v1704 = vsel %vm1701, %v1703, %v1699
  %v1705 = vrcp.pop %v1617
  %v1706 = vmul.f32 %v1617, %v1705
  %v1707 = vsub.f32 1.0, %v1706
  %v1708 = vmul.f32 %v1705, %v1707
  %v1709 = vadd.f32 %v1705, %v1708
  %vm1710 = vweird.f32 %v1617
  %vm1711 = vweird.f32 %v1705
  %vm1712 = vmor %vm1710, %vm1711
  %v1713 = vsel %vm1712, %v1705, %v1709
  %v1714 = vand.u32 2147483647, %v1617
  %vm1715 = vcmp.eq.f32.partialorder %v1714, 8.507059e+37
  %v1716 = vand.u32 %v1617, 2147483648
  %v1717 = vor.u32 1.1754944e-38, %v1716
  %v1718 = vsel %vm1715, %v1717, %v1713
  %v1719 = vrcp.pop %v1620
  %v1720 = vmul.f32 %v1620, %v1719
  %v1721 = vsub.f32 1.0, %v1720
  %v1722 = vmul.f32 %v1719, %v1721
  %v1723 = vadd.f32 %v1719, %v1722
  %vm1724 = vweird.f32 %v1620
  %vm1725 = vweird.f32 %v1719
  %vm1726 = vmor %vm1724, %vm1725
  %v1727 = vsel %vm1726, %v1719, %v1723
  %v1728 = vand.u32 2147483647, %v1620
  %vm1729 = vcmp.eq.f32.partialorder %v1728, 8.507059e+37
  %v1730 = vand.u32 %v1620, 2147483648
  %v1731 = vor.u32 1.1754944e-38, %v1730
  %v1732 = vsel %vm1729, %v1731, %v1727
  %v1733 = vmul.f32 %v1582, %v1634
  %v1734 = vmul.f32 %v1584, %v1648
  %v1735 = vmul.f32 %v1586, %v1662
  %v1736 = vmul.f32 %v1588, %v1676
  %v1737 = vmul.f32 %v1590, %v1690
  %v1738 = vmul.f32 %v1592, %v1704
  %v1739 = vmul.f32 %v1594, %v1718
  %v1740 = vmul.f32 %v1596, %v1732
  %1741 = vrot.lane.b32.xlu0 %v92, 80
  %v1742 = vpop.permute.xlu0 %1741
  %v1745 = vsel %vm121, %v1733, 0
  %1747 = vmatpush.msra.mxu0 0.0
  %1748 = vmatpush.msra.mxu0 0.0
  %1749 = vmatpush.msra.mxu0 0.0
  %1750 = vmatpush.msra.mxu0 0.0
  %1751 = vmatpush.msra.mxu0 0.0
  %1752 = vmatpush.msra.mxu0 0.0
  %1753 = vmatpush.msra.mxu0 0.0
  %1754 = vmatpush.msra.mxu0 0.0
  %1755 = vmatpush.msra.mxu0 0.0
  %1756 = vmatpush.msra.mxu0 0.0
  %1757 = vmatpush.msra.mxu0 0.0
  %1758 = vmatpush.msra.mxu0 0.0
  %1759 = vmatpush.msra.mxu0 0.0
  %1760 = vmatpush.msra.mxu0 0.0
  %1761 = vmatpush.msra.mxu0 0.0
  %1762 = vmatpush.msra.mxu0 %v1742
  %1763 = vmatmul.f32.gmra.mxu0 %v1745
  %v1764 = vpop.f32.mrf.mxu0
  %v1765 = vadd.f32 0.0, %v1764
  %1766 = vdwg.mxu0
  %1767 = vrot.lane.b32.xlu0 %v95, 80
  %v1768 = vpop.permute.xlu0 %1767
  %v1771 = vsel %vm121, %v1734, 0
  %1773 = vmatpush.msra.mxu0 0.0
  %1774 = vmatpush.msra.mxu0 0.0
  %1775 = vmatpush.msra.mxu0 0.0
  %1776 = vmatpush.msra.mxu0 0.0
  %1777 = vmatpush.msra.mxu0 0.0
  %1778 = vmatpush.msra.mxu0 0.0
  %1779 = vmatpush.msra.mxu0 0.0
  %1780 = vmatpush.msra.mxu0 0.0
  %1781 = vmatpush.msra.mxu0 0.0
  %1782 = vmatpush.msra.mxu0 0.0
  %1783 = vmatpush.msra.mxu0 0.0
  %1784 = vmatpush.msra.mxu0 0.0
  %1785 = vmatpush.msra.mxu0 0.0
  %1786 = vmatpush.msra.mxu0 0.0
  %1787 = vmatpush.msra.mxu0 0.0
  %1788 = vmatpush.msra.mxu0 %v1768
  %1789 = vmatmul.f32.gmra.mxu0 %v1771
  %v1790 = vpop.f32.mrf.mxu0
  %v1791 = vadd.f32 0.0, %v1790
  %1792 = vdwg.mxu0
  %1793 = vrot.lane.b32.xlu0 %v98, 80
  %v1794 = vpop.permute.xlu0 %1793
  %v1797 = vsel %vm121, %v1735, 0
  %1799 = vmatpush.msra.mxu0 0.0
  %1800 = vmatpush.msra.mxu0 0.0
  %1801 = vmatpush.msra.mxu0 0.0
  %1802 = vmatpush.msra.mxu0 0.0
  %1803 = vmatpush.msra.mxu0 0.0
  %1804 = vmatpush.msra.mxu0 0.0
  %1805 = vmatpush.msra.mxu0 0.0
  %1806 = vmatpush.msra.mxu0 0.0
  %1807 = vmatpush.msra.mxu0 0.0
  %1808 = vmatpush.msra.mxu0 0.0
  %1809 = vmatpush.msra.mxu0 0.0
  %1810 = vmatpush.msra.mxu0 0.0
  %1811 = vmatpush.msra.mxu0 0.0
  %1812 = vmatpush.msra.mxu0 0.0
  %1813 = vmatpush.msra.mxu0 0.0
  %1814 = vmatpush.msra.mxu0 %v1794
  %1815 = vmatmul.f32.gmra.mxu0 %v1797
  %v1816 = vpop.f32.mrf.mxu0
  %v1817 = vadd.f32 0.0, %v1816
  %1818 = vdwg.mxu0
  %1819 = vrot.lane.b32.xlu0 %v101, 80
  %v1820 = vpop.permute.xlu0 %1819
  %v1823 = vsel %vm121, %v1736, 0
  %1825 = vmatpush.msra.mxu0 0.0
  %1826 = vmatpush.msra.mxu0 0.0
  %1827 = vmatpush.msra.mxu0 0.0
  %1828 = vmatpush.msra.mxu0 0.0
  %1829 = vmatpush.msra.mxu0 0.0
  %1830 = vmatpush.msra.mxu0 0.0
  %1831 = vmatpush.msra.mxu0 0.0
  %1832 = vmatpush.msra.mxu0 0.0
  %1833 = vmatpush.msra.mxu0 0.0
  %1834 = vmatpush.msra.mxu0 0.0
  %1835 = vmatpush.msra.mxu0 0.0
  %1836 = vmatpush.msra.mxu0 0.0
  %1837 = vmatpush.msra.mxu0 0.0
  %1838 = vmatpush.msra.mxu0 0.0
  %1839 = vmatpush.msra.mxu0 0.0
  %1840 = vmatpush.msra.mxu0 %v1820
  %1841 = vmatmul.f32.gmra.mxu0 %v1823
  %v1842 = vpop.f32.mrf.mxu0
  %v1843 = vadd.f32 0.0, %v1842
  %1844 = vdwg.mxu0
  %1845 = vrot.lane.b32.xlu0 %v104, 80
  %v1846 = vpop.permute.xlu0 %1845
  %v1849 = vsel %vm121, %v1737, 0
  %1851 = vmatpush.msra.mxu0 0.0
  %1852 = vmatpush.msra.mxu0 0.0
  %1853 = vmatpush.msra.mxu0 0.0
  %1854 = vmatpush.msra.mxu0 0.0
  %1855 = vmatpush.msra.mxu0 0.0
  %1856 = vmatpush.msra.mxu0 0.0
  %1857 = vmatpush.msra.mxu0 0.0
  %1858 = vmatpush.msra.mxu0 0.0
  %1859 = vmatpush.msra.mxu0 0.0
  %1860 = vmatpush.msra.mxu0 0.0
  %1861 = vmatpush.msra.mxu0 0.0
  %1862 = vmatpush.msra.mxu0 0.0
  %1863 = vmatpush.msra.mxu0 0.0
  %1864 = vmatpush.msra.mxu0 0.0
  %1865 = vmatpush.msra.mxu0 0.0
  %1866 = vmatpush.msra.mxu0 %v1846
  %1867 = vmatmul.f32.gmra.mxu0 %v1849
  %v1868 = vpop.f32.mrf.mxu0
  %v1869 = vadd.f32 0.0, %v1868
  %1870 = vdwg.mxu0
  %1871 = vrot.lane.b32.xlu0 %v107, 80
  %v1872 = vpop.permute.xlu0 %1871
  %v1875 = vsel %vm121, %v1738, 0
  %1877 = vmatpush.msra.mxu0 0.0
  %1878 = vmatpush.msra.mxu0 0.0
  %1879 = vmatpush.msra.mxu0 0.0
  %1880 = vmatpush.msra.mxu0 0.0
  %1881 = vmatpush.msra.mxu0 0.0
  %1882 = vmatpush.msra.mxu0 0.0
  %1883 = vmatpush.msra.mxu0 0.0
  %1884 = vmatpush.msra.mxu0 0.0
  %1885 = vmatpush.msra.mxu0 0.0
  %1886 = vmatpush.msra.mxu0 0.0
  %1887 = vmatpush.msra.mxu0 0.0
  %1888 = vmatpush.msra.mxu0 0.0
  %1889 = vmatpush.msra.mxu0 0.0
  %1890 = vmatpush.msra.mxu0 0.0
  %1891 = vmatpush.msra.mxu0 0.0
  %1892 = vmatpush.msra.mxu0 %v1872
  %1893 = vmatmul.f32.gmra.mxu0 %v1875
  %v1894 = vpop.f32.mrf.mxu0
  %v1895 = vadd.f32 0.0, %v1894
  %1896 = vdwg.mxu0
  %1897 = vrot.lane.b32.xlu0 %v110, 80
  %v1898 = vpop.permute.xlu0 %1897
  %v1901 = vsel %vm121, %v1739, 0
  %1903 = vmatpush.msra.mxu0 0.0
  %1904 = vmatpush.msra.mxu0 0.0
  %1905 = vmatpush.msra.mxu0 0.0
  %1906 = vmatpush.msra.mxu0 0.0
  %1907 = vmatpush.msra.mxu0 0.0
  %1908 = vmatpush.msra.mxu0 0.0
  %1909 = vmatpush.msra.mxu0 0.0
  %1910 = vmatpush.msra.mxu0 0.0
  %1911 = vmatpush.msra.mxu0 0.0
  %1912 = vmatpush.msra.mxu0 0.0
  %1913 = vmatpush.msra.mxu0 0.0
  %1914 = vmatpush.msra.mxu0 0.0
  %1915 = vmatpush.msra.mxu0 0.0
  %1916 = vmatpush.msra.mxu0 0.0
  %1917 = vmatpush.msra.mxu0 0.0
  %1918 = vmatpush.msra.mxu0 %v1898
  %1919 = vmatmul.f32.gmra.mxu0 %v1901
  %v1920 = vpop.f32.mrf.mxu0
  %v1921 = vadd.f32 0.0, %v1920
  %1922 = vdwg.mxu0
  %1923 = vrot.lane.b32.xlu0 %v113, 80
  %v1924 = vpop.permute.xlu0 %1923
  %v1927 = vsel %vm121, %v1740, 0
  %1929 = vmatpush.msra.mxu0 0.0
  %1930 = vmatpush.msra.mxu0 0.0
  %1931 = vmatpush.msra.mxu0 0.0
  %1932 = vmatpush.msra.mxu0 0.0
  %1933 = vmatpush.msra.mxu0 0.0
  %1934 = vmatpush.msra.mxu0 0.0
  %1935 = vmatpush.msra.mxu0 0.0
  %1936 = vmatpush.msra.mxu0 0.0
  %1937 = vmatpush.msra.mxu0 0.0
  %1938 = vmatpush.msra.mxu0 0.0
  %1939 = vmatpush.msra.mxu0 0.0
  %1940 = vmatpush.msra.mxu0 0.0
  %1941 = vmatpush.msra.mxu0 0.0
  %1942 = vmatpush.msra.mxu0 0.0
  %1943 = vmatpush.msra.mxu0 0.0
  %1944 = vmatpush.msra.mxu0 %v1924
  %1945 = vmatmul.f32.gmra.mxu0 %v1927
  %v1946 = vpop.f32.mrf.mxu0
  %v1947 = vadd.f32 0.0, %v1946
  %1948 = vdwg.mxu0
  %1957 = vrot.lane.b32.xlu0 %v1765, 16
  %v1958 = vpop.permute.xlu0 %1957
  %1959 = vrot.lane.b32.xlu0 %v1791, 16
  %v1960 = vpop.permute.xlu0 %1959
  %1961 = vrot.lane.b32.xlu0 %v1817, 16
  %v1962 = vpop.permute.xlu0 %1961
  %1963 = vrot.lane.b32.xlu0 %v1843, 16
  %v1964 = vpop.permute.xlu0 %1963
  %1965 = vrot.lane.b32.xlu0 %v1869, 16
  %v1966 = vpop.permute.xlu0 %1965
  %1967 = vrot.lane.b32.xlu0 %v1895, 16
  %v1968 = vpop.permute.xlu0 %1967
  %1969 = vrot.lane.b32.xlu0 %v1921, 16
  %v1970 = vpop.permute.xlu0 %1969
  %1971 = vrot.lane.b32.xlu0 %v1947, 16
  %v1972 = vpop.permute.xlu0 %1971
  %v1981 = vadd.f32 %v115, %v1958
  %v1982 = vadd.f32 %v115, %v1960
  %v1983 = vadd.f32 %v115, %v1962
  %v1984 = vadd.f32 %v115, %v1964
  %v1985 = vadd.f32 %v115, %v1966
  %v1986 = vadd.f32 %v115, %v1968
  %v1987 = vadd.f32 %v115, %v1970
  %v1988 = vadd.f32 %v115, %v1972
  %1989 = vrot.lane.b32.xlu0 %v115, 104
  %v1990 = vpop.permute.xlu0 %1989
  %1991 = vrot.lane.b32.xlu0 %v92, 104
  %v1992 = vpop.permute.xlu0 %1991
  %v1993 = vsel %vm121, %v1990, 0
  %v1995 = vsel %vm121, %v1992, 0
  %1997 = vmatpush.xpose.msra.mxu0 0.0
  %1998 = vmatpush.xpose.msra.mxu0 0.0
  %1999 = vmatpush.xpose.msra.mxu0 0.0
  %2000 = vmatpush.xpose.msra.mxu0 0.0
  %2001 = vmatpush.xpose.msra.mxu0 0.0
  %2002 = vmatpush.xpose.msra.mxu0 0.0
  %2003 = vmatpush.xpose.msra.mxu0 0.0
  %2004 = vmatpush.xpose.msra.mxu0 0.0
  %2005 = vmatpush.xpose.msra.mxu0 0.0
  %2006 = vmatpush.xpose.msra.mxu0 0.0
  %2007 = vmatpush.xpose.msra.mxu0 0.0
  %2008 = vmatpush.xpose.msra.mxu0 0.0
  %2009 = vmatpush.xpose.msra.mxu0 0.0
  %2010 = vmatpush.xpose.msra.mxu0 0.0
  %2011 = vmatpush.xpose.msra.mxu0 0.0
  %2012 = vmatpush.xpose.msra.mxu0 %v1995
  %2013 = vmatmul.f32.gmra.mxu0 %v1993
  %v2014 = vpop.f32.mrf.mxu0
  %v2015 = vadd.f32 0.0, %v2014
  %2016 = vdwg.mxu0
  %2017 = vrot.lane.b32.xlu0 %v95, 104
  %v2018 = vpop.permute.xlu0 %2017
  %v2019 = vsel %vm121, %v2018, 0
  %2021 = vmatpush.xpose.msra.mxu0 0.0
  %2022 = vmatpush.xpose.msra.mxu0 0.0
  %2023 = vmatpush.xpose.msra.mxu0 0.0
  %2024 = vmatpush.xpose.msra.mxu0 0.0
  %2025 = vmatpush.xpose.msra.mxu0 0.0
  %2026 = vmatpush.xpose.msra.mxu0 0.0
  %2027 = vmatpush.xpose.msra.mxu0 0.0
  %2028 = vmatpush.xpose.msra.mxu0 0.0
  %2029 = vmatpush.xpose.msra.mxu0 0.0
  %2030 = vmatpush.xpose.msra.mxu0 0.0
  %2031 = vmatpush.xpose.msra.mxu0 0.0
  %2032 = vmatpush.xpose.msra.mxu0 0.0
  %2033 = vmatpush.xpose.msra.mxu0 0.0
  %2034 = vmatpush.xpose.msra.mxu0 0.0
  %2035 = vmatpush.xpose.msra.mxu0 0.0
  %2036 = vmatpush.xpose.msra.mxu0 %v2019
  %2037 = vmatmul.f32.gmra.mxu0 %v1993
  %v2038 = vpop.f32.mrf.mxu0
  %v2039 = vadd.f32 0.0, %v2038
  %2040 = vdwg.mxu0
  %2041 = vrot.lane.b32.xlu0 %v98, 104
  %v2042 = vpop.permute.xlu0 %2041
  %v2043 = vsel %vm121, %v2042, 0
  %2045 = vmatpush.xpose.msra.mxu0 0.0
  %2046 = vmatpush.xpose.msra.mxu0 0.0
  %2047 = vmatpush.xpose.msra.mxu0 0.0
  %2048 = vmatpush.xpose.msra.mxu0 0.0
  %2049 = vmatpush.xpose.msra.mxu0 0.0
  %2050 = vmatpush.xpose.msra.mxu0 0.0
  %2051 = vmatpush.xpose.msra.mxu0 0.0
  %2052 = vmatpush.xpose.msra.mxu0 0.0
  %2053 = vmatpush.xpose.msra.mxu0 0.0
  %2054 = vmatpush.xpose.msra.mxu0 0.0
  %2055 = vmatpush.xpose.msra.mxu0 0.0
  %2056 = vmatpush.xpose.msra.mxu0 0.0
  %2057 = vmatpush.xpose.msra.mxu0 0.0
  %2058 = vmatpush.xpose.msra.mxu0 0.0
  %2059 = vmatpush.xpose.msra.mxu0 0.0
  %2060 = vmatpush.xpose.msra.mxu0 %v2043
  %2061 = vmatmul.f32.gmra.mxu0 %v1993
  %v2062 = vpop.f32.mrf.mxu0
  %v2063 = vadd.f32 0.0, %v2062
  %2064 = vdwg.mxu0
  %2065 = vrot.lane.b32.xlu0 %v101, 104
  %v2066 = vpop.permute.xlu0 %2065
  %v2067 = vsel %vm121, %v2066, 0
  %2069 = vmatpush.xpose.msra.mxu0 0.0
  %2070 = vmatpush.xpose.msra.mxu0 0.0
  %2071 = vmatpush.xpose.msra.mxu0 0.0
  %2072 = vmatpush.xpose.msra.mxu0 0.0
  %2073 = vmatpush.xpose.msra.mxu0 0.0
  %2074 = vmatpush.xpose.msra.mxu0 0.0
  %2075 = vmatpush.xpose.msra.mxu0 0.0
  %2076 = vmatpush.xpose.msra.mxu0 0.0
  %2077 = vmatpush.xpose.msra.mxu0 0.0
  %2078 = vmatpush.xpose.msra.mxu0 0.0
  %2079 = vmatpush.xpose.msra.mxu0 0.0
  %2080 = vmatpush.xpose.msra.mxu0 0.0
  %2081 = vmatpush.xpose.msra.mxu0 0.0
  %2082 = vmatpush.xpose.msra.mxu0 0.0
  %2083 = vmatpush.xpose.msra.mxu0 0.0
  %2084 = vmatpush.xpose.msra.mxu0 %v2067
  %2085 = vmatmul.f32.gmra.mxu0 %v1993
  %v2086 = vpop.f32.mrf.mxu0
  %v2087 = vadd.f32 0.0, %v2086
  %2088 = vdwg.mxu0
  %2089 = vrot.lane.b32.xlu0 %v104, 104
  %v2090 = vpop.permute.xlu0 %2089
  %v2091 = vsel %vm121, %v2090, 0
  %2093 = vmatpush.xpose.msra.mxu0 0.0
  %2094 = vmatpush.xpose.msra.mxu0 0.0
  %2095 = vmatpush.xpose.msra.mxu0 0.0
  %2096 = vmatpush.xpose.msra.mxu0 0.0
  %2097 = vmatpush.xpose.msra.mxu0 0.0
  %2098 = vmatpush.xpose.msra.mxu0 0.0
  %2099 = vmatpush.xpose.msra.mxu0 0.0
  %2100 = vmatpush.xpose.msra.mxu0 0.0
  %2101 = vmatpush.xpose.msra.mxu0 0.0
  %2102 = vmatpush.xpose.msra.mxu0 0.0
  %2103 = vmatpush.xpose.msra.mxu0 0.0
  %2104 = vmatpush.xpose.msra.mxu0 0.0
  %2105 = vmatpush.xpose.msra.mxu0 0.0
  %2106 = vmatpush.xpose.msra.mxu0 0.0
  %2107 = vmatpush.xpose.msra.mxu0 0.0
  %2108 = vmatpush.xpose.msra.mxu0 %v2091
  %2109 = vmatmul.f32.gmra.mxu0 %v1993
  %v2110 = vpop.f32.mrf.mxu0
  %v2111 = vadd.f32 0.0, %v2110
  %2112 = vdwg.mxu0
  %2113 = vrot.lane.b32.xlu0 %v107, 104
  %v2114 = vpop.permute.xlu0 %2113
  %v2115 = vsel %vm121, %v2114, 0
  %2117 = vmatpush.xpose.msra.mxu0 0.0
  %2118 = vmatpush.xpose.msra.mxu0 0.0
  %2119 = vmatpush.xpose.msra.mxu0 0.0
  %2120 = vmatpush.xpose.msra.mxu0 0.0
  %2121 = vmatpush.xpose.msra.mxu0 0.0
  %2122 = vmatpush.xpose.msra.mxu0 0.0
  %2123 = vmatpush.xpose.msra.mxu0 0.0
  %2124 = vmatpush.xpose.msra.mxu0 0.0
  %2125 = vmatpush.xpose.msra.mxu0 0.0
  %2126 = vmatpush.xpose.msra.mxu0 0.0
  %2127 = vmatpush.xpose.msra.mxu0 0.0
  %2128 = vmatpush.xpose.msra.mxu0 0.0
  %2129 = vmatpush.xpose.msra.mxu0 0.0
  %2130 = vmatpush.xpose.msra.mxu0 0.0
  %2131 = vmatpush.xpose.msra.mxu0 0.0
  %2132 = vmatpush.xpose.msra.mxu0 %v2115
  %2133 = vmatmul.f32.gmra.mxu0 %v1993
  %v2134 = vpop.f32.mrf.mxu0
  %v2135 = vadd.f32 0.0, %v2134
  %2136 = vdwg.mxu0
  %2137 = vrot.lane.b32.xlu0 %v110, 104
  %v2138 = vpop.permute.xlu0 %2137
  %v2139 = vsel %vm121, %v2138, 0
  %2141 = vmatpush.xpose.msra.mxu0 0.0
  %2142 = vmatpush.xpose.msra.mxu0 0.0
  %2143 = vmatpush.xpose.msra.mxu0 0.0
  %2144 = vmatpush.xpose.msra.mxu0 0.0
  %2145 = vmatpush.xpose.msra.mxu0 0.0
  %2146 = vmatpush.xpose.msra.mxu0 0.0
  %2147 = vmatpush.xpose.msra.mxu0 0.0
  %2148 = vmatpush.xpose.msra.mxu0 0.0
  %2149 = vmatpush.xpose.msra.mxu0 0.0
  %2150 = vmatpush.xpose.msra.mxu0 0.0
  %2151 = vmatpush.xpose.msra.mxu0 0.0
  %2152 = vmatpush.xpose.msra.mxu0 0.0
  %2153 = vmatpush.xpose.msra.mxu0 0.0
  %2154 = vmatpush.xpose.msra.mxu0 0.0
  %2155 = vmatpush.xpose.msra.mxu0 0.0
  %2156 = vmatpush.xpose.msra.mxu0 %v2139
  %2157 = vmatmul.f32.gmra.mxu0 %v1993
  %v2158 = vpop.f32.mrf.mxu0
  %v2159 = vadd.f32 0.0, %v2158
  %2160 = vdwg.mxu0
  %2161 = vrot.lane.b32.xlu0 %v113, 104
  %v2162 = vpop.permute.xlu0 %2161
  %v2163 = vsel %vm121, %v2162, 0
  %2165 = vmatpush.xpose.msra.mxu0 0.0
  %2166 = vmatpush.xpose.msra.mxu0 0.0
  %2167 = vmatpush.xpose.msra.mxu0 0.0
  %2168 = vmatpush.xpose.msra.mxu0 0.0
  %2169 = vmatpush.xpose.msra.mxu0 0.0
  %2170 = vmatpush.xpose.msra.mxu0 0.0
  %2171 = vmatpush.xpose.msra.mxu0 0.0
  %2172 = vmatpush.xpose.msra.mxu0 0.0
  %2173 = vmatpush.xpose.msra.mxu0 0.0
  %2174 = vmatpush.xpose.msra.mxu0 0.0
  %2175 = vmatpush.xpose.msra.mxu0 0.0
  %2176 = vmatpush.xpose.msra.mxu0 0.0
  %2177 = vmatpush.xpose.msra.mxu0 0.0
  %2178 = vmatpush.xpose.msra.mxu0 0.0
  %2179 = vmatpush.xpose.msra.mxu0 0.0
  %2180 = vmatpush.xpose.msra.mxu0 %v2163
  %2181 = vmatmul.f32.gmra.mxu0 %v1993
  %v2182 = vpop.f32.mrf.mxu0
  %v2183 = vadd.f32 0.0, %v2182
  %2184 = vdwg.mxu0
  %v2185 = vsel %vm121, %v2015, -inf
  %2186 = vmax.xlane.f32.xlu0 %v2185
  %v2187 = vpop.xlane.xlu0 %2186
  %v2188 = vsel %vm121, %v2039, -inf
  %2189 = vmax.xlane.f32.xlu0 %v2188
  %v2190 = vpop.xlane.xlu0 %2189
  %v2191 = vsel %vm121, %v2063, -inf
  %2192 = vmax.xlane.f32.xlu0 %v2191
  %v2193 = vpop.xlane.xlu0 %2192
  %v2194 = vsel %vm121, %v2087, -inf
  %2195 = vmax.xlane.f32.xlu0 %v2194
  %v2196 = vpop.xlane.xlu0 %2195
  %v2197 = vsel %vm121, %v2111, -inf
  %2198 = vmax.xlane.f32.xlu0 %v2197
  %v2199 = vpop.xlane.xlu0 %2198
  %v2200 = vsel %vm121, %v2135, -inf
  %2201 = vmax.xlane.f32.xlu0 %v2200
  %v2202 = vpop.xlane.xlu0 %2201
  %v2203 = vsel %vm121, %v2159, -inf
  %2204 = vmax.xlane.f32.xlu0 %v2203
  %v2205 = vpop.xlane.xlu0 %2204
  %v2206 = vsel %vm121, %v2183, -inf
  %2207 = vmax.xlane.f32.xlu0 %v2206
  %v2208 = vpop.xlane.xlu0 %2207
  %v2209 = vsub.f32 %v2015, %v2187
  %v2210 = vsub.f32 %v2039, %v2190
  %v2211 = vsub.f32 %v2063, %v2193
  %v2212 = vsub.f32 %v2087, %v2196
  %v2213 = vsub.f32 %v2111, %v2199
  %v2214 = vsub.f32 %v2135, %v2202
  %v2215 = vsub.f32 %v2159, %v2205
  %v2216 = vsub.f32 %v2183, %v2208
  %v2217 = vmul.f32 %v2209, 1.442695
  %v2218 = vpow.pop %v2217
  %v2219 = vmul.f32 %v2210, 1.442695
  %v2220 = vpow.pop %v2219
  %v2221 = vmul.f32 %v2211, 1.442695
  %v2222 = vpow.pop %v2221
  %v2223 = vmul.f32 %v2212, 1.442695
  %v2224 = vpow.pop %v2223
  %v2225 = vmul.f32 %v2213, 1.442695
  %v2226 = vpow.pop %v2225
  %v2227 = vmul.f32 %v2214, 1.442695
  %v2228 = vpow.pop %v2227
  %v2229 = vmul.f32 %v2215, 1.442695
  %v2230 = vpow.pop %v2229
  %v2231 = vmul.f32 %v2216, 1.442695
  %v2232 = vpow.pop %v2231
  %v2233 = vsel %vm121, %v2218, 0.0
  %2234 = vadd.xlane.f32.xlu0 %v2233
  %v2235 = vpop.xlane.xlu0 %2234
  %v2236 = vsel %vm121, %v2220, 0.0
  %2237 = vadd.xlane.f32.xlu0 %v2236
  %v2238 = vpop.xlane.xlu0 %2237
  %v2239 = vsel %vm121, %v2222, 0.0
  %2240 = vadd.xlane.f32.xlu0 %v2239
  %v2241 = vpop.xlane.xlu0 %2240
  %v2242 = vsel %vm121, %v2224, 0.0
  %2243 = vadd.xlane.f32.xlu0 %v2242
  %v2244 = vpop.xlane.xlu0 %2243
  %v2245 = vsel %vm121, %v2226, 0.0
  %2246 = vadd.xlane.f32.xlu0 %v2245
  %v2247 = vpop.xlane.xlu0 %2246
  %v2248 = vsel %vm121, %v2228, 0.0
  %2249 = vadd.xlane.f32.xlu0 %v2248
  %v2250 = vpop.xlane.xlu0 %2249
  %v2251 = vsel %vm121, %v2230, 0.0
  %2252 = vadd.xlane.f32.xlu0 %v2251
  %v2253 = vpop.xlane.xlu0 %2252
  %v2254 = vsel %vm121, %v2232, 0.0
  %2255 = vadd.xlane.f32.xlu0 %v2254
  %v2256 = vpop.xlane.xlu0 %2255
  %v2257 = vrcp.pop %v2235
  %v2258 = vmul.f32 %v2235, %v2257
  %v2259 = vsub.f32 1.0, %v2258
  %v2260 = vmul.f32 %v2257, %v2259
  %v2261 = vadd.f32 %v2257, %v2260
  %vm2262 = vweird.f32 %v2235
  %vm2263 = vweird.f32 %v2257
  %vm2264 = vmor %vm2262, %vm2263
  %v2265 = vsel %vm2264, %v2257, %v2261
  %v2266 = vand.u32 2147483647, %v2235
  %vm2267 = vcmp.eq.f32.partialorder %v2266, 8.507059e+37
  %v2268 = vand.u32 %v2235, 2147483648
  %v2269 = vor.u32 1.1754944e-38, %v2268
  %v2270 = vsel %vm2267, %v2269, %v2265
  %v2271 = vrcp.pop %v2238
  %v2272 = vmul.f32 %v2238, %v2271
  %v2273 = vsub.f32 1.0, %v2272
  %v2274 = vmul.f32 %v2271, %v2273
  %v2275 = vadd.f32 %v2271, %v2274
  %vm2276 = vweird.f32 %v2238
  %vm2277 = vweird.f32 %v2271
  %vm2278 = vmor %vm2276, %vm2277
  %v2279 = vsel %vm2278, %v2271, %v2275
  %v2280 = vand.u32 2147483647, %v2238
  %vm2281 = vcmp.eq.f32.partialorder %v2280, 8.507059e+37
  %v2282 = vand.u32 %v2238, 2147483648
  %v2283 = vor.u32 1.1754944e-38, %v2282
  %v2284 = vsel %vm2281, %v2283, %v2279
  %v2285 = vrcp.pop %v2241
  %v2286 = vmul.f32 %v2241, %v2285
  %v2287 = vsub.f32 1.0, %v2286
  %v2288 = vmul.f32 %v2285, %v2287
  %v2289 = vadd.f32 %v2285, %v2288
  %vm2290 = vweird.f32 %v2241
  %vm2291 = vweird.f32 %v2285
  %vm2292 = vmor %vm2290, %vm2291
  %v2293 = vsel %vm2292, %v2285, %v2289
  %v2294 = vand.u32 2147483647, %v2241
  %vm2295 = vcmp.eq.f32.partialorder %v2294, 8.507059e+37
  %v2296 = vand.u32 %v2241, 2147483648
  %v2297 = vor.u32 1.1754944e-38, %v2296
  %v2298 = vsel %vm2295, %v2297, %v2293
  %v2299 = vrcp.pop %v2244
  %v2300 = vmul.f32 %v2244, %v2299
  %v2301 = vsub.f32 1.0, %v2300
  %v2302 = vmul.f32 %v2299, %v2301
  %v2303 = vadd.f32 %v2299, %v2302
  %vm2304 = vweird.f32 %v2244
  %vm2305 = vweird.f32 %v2299
  %vm2306 = vmor %vm2304, %vm2305
  %v2307 = vsel %vm2306, %v2299, %v2303
  %v2308 = vand.u32 2147483647, %v2244
  %vm2309 = vcmp.eq.f32.partialorder %v2308, 8.507059e+37
  %v2310 = vand.u32 %v2244, 2147483648
  %v2311 = vor.u32 1.1754944e-38, %v2310
  %v2312 = vsel %vm2309, %v2311, %v2307
  %v2313 = vrcp.pop %v2247
  %v2314 = vmul.f32 %v2247, %v2313
  %v2315 = vsub.f32 1.0, %v2314
  %v2316 = vmul.f32 %v2313, %v2315
  %v2317 = vadd.f32 %v2313, %v2316
  %vm2318 = vweird.f32 %v2247
  %vm2319 = vweird.f32 %v2313
  %vm2320 = vmor %vm2318, %vm2319
  %v2321 = vsel %vm2320, %v2313, %v2317
  %v2322 = vand.u32 2147483647, %v2247
  %vm2323 = vcmp.eq.f32.partialorder %v2322, 8.507059e+37
  %v2324 = vand.u32 %v2247, 2147483648
  %v2325 = vor.u32 1.1754944e-38, %v2324
  %v2326 = vsel %vm2323, %v2325, %v2321
  %v2327 = vrcp.pop %v2250
  %v2328 = vmul.f32 %v2250, %v2327
  %v2329 = vsub.f32 1.0, %v2328
  %v2330 = vmul.f32 %v2327, %v2329
  %v2331 = vadd.f32 %v2327, %v2330
  %vm2332 = vweird.f32 %v2250
  %vm2333 = vweird.f32 %v2327
  %vm2334 = vmor %vm2332, %vm2333
  %v2335 = vsel %vm2334, %v2327, %v2331
  %v2336 = vand.u32 2147483647, %v2250
  %vm2337 = vcmp.eq.f32.partialorder %v2336, 8.507059e+37
  %v2338 = vand.u32 %v2250, 2147483648
  %v2339 = vor.u32 1.1754944e-38, %v2338
  %v2340 = vsel %vm2337, %v2339, %v2335
  %v2341 = vrcp.pop %v2253
  %v2342 = vmul.f32 %v2253, %v2341
  %v2343 = vsub.f32 1.0, %v2342
  %v2344 = vmul.f32 %v2341, %v2343
  %v2345 = vadd.f32 %v2341, %v2344
  %vm2346 = vweird.f32 %v2253
  %vm2347 = vweird.f32 %v2341
  %vm2348 = vmor %vm2346, %vm2347
  %v2349 = vsel %vm2348, %v2341, %v2345
  %v2350 = vand.u32 2147483647, %v2253
  %vm2351 = vcmp.eq.f32.partialorder %v2350, 8.507059e+37
  %v2352 = vand.u32 %v2253, 2147483648
  %v2353 = vor.u32 1.1754944e-38, %v2352
  %v2354 = vsel %vm2351, %v2353, %v2349
  %v2355 = vrcp.pop %v2256
  %v2356 = vmul.f32 %v2256, %v2355
  %v2357 = vsub.f32 1.0, %v2356
  %v2358 = vmul.f32 %v2355, %v2357
  %v2359 = vadd.f32 %v2355, %v2358
  %vm2360 = vweird.f32 %v2256
  %vm2361 = vweird.f32 %v2355
  %vm2362 = vmor %vm2360, %vm2361
  %v2363 = vsel %vm2362, %v2355, %v2359
  %v2364 = vand.u32 2147483647, %v2256
  %vm2365 = vcmp.eq.f32.partialorder %v2364, 8.507059e+37
  %v2366 = vand.u32 %v2256, 2147483648
  %v2367 = vor.u32 1.1754944e-38, %v2366
  %v2368 = vsel %vm2365, %v2367, %v2363
  %v2369 = vmul.f32 %v2218, %v2270
  %v2370 = vmul.f32 %v2220, %v2284
  %v2371 = vmul.f32 %v2222, %v2298
  %v2372 = vmul.f32 %v2224, %v2312
  %v2373 = vmul.f32 %v2226, %v2326
  %v2374 = vmul.f32 %v2228, %v2340
  %v2375 = vmul.f32 %v2230, %v2354
  %v2376 = vmul.f32 %v2232, %v2368
  %2377 = vrot.lane.b32.xlu0 %v92, 72
  %v2378 = vpop.permute.xlu0 %2377
  %v2381 = vsel %vm121, %v2369, 0
  %2383 = vmatpush.msra.mxu0 0.0
  %2384 = vmatpush.msra.mxu0 0.0
  %2385 = vmatpush.msra.mxu0 0.0
  %2386 = vmatpush.msra.mxu0 0.0
  %2387 = vmatpush.msra.mxu0 0.0
  %2388 = vmatpush.msra.mxu0 0.0
  %2389 = vmatpush.msra.mxu0 0.0
  %2390 = vmatpush.msra.mxu0 0.0
  %2391 = vmatpush.msra.mxu0 0.0
  %2392 = vmatpush.msra.mxu0 0.0
  %2393 = vmatpush.msra.mxu0 0.0
  %2394 = vmatpush.msra.mxu0 0.0
  %2395 = vmatpush.msra.mxu0 0.0
  %2396 = vmatpush.msra.mxu0 0.0
  %2397 = vmatpush.msra.mxu0 0.0
  %2398 = vmatpush.msra.mxu0 %v2378
  %2399 = vmatmul.f32.gmra.mxu0 %v2381
  %v2400 = vpop.f32.mrf.mxu0
  %v2401 = vadd.f32 0.0, %v2400
  %2402 = vdwg.mxu0
  %2403 = vrot.lane.b32.xlu0 %v95, 72
  %v2404 = vpop.permute.xlu0 %2403
  %v2407 = vsel %vm121, %v2370, 0
  %2409 = vmatpush.msra.mxu0 0.0
  %2410 = vmatpush.msra.mxu0 0.0
  %2411 = vmatpush.msra.mxu0 0.0
  %2412 = vmatpush.msra.mxu0 0.0
  %2413 = vmatpush.msra.mxu0 0.0
  %2414 = vmatpush.msra.mxu0 0.0
  %2415 = vmatpush.msra.mxu0 0.0
  %2416 = vmatpush.msra.mxu0 0.0
  %2417 = vmatpush.msra.mxu0 0.0
  %2418 = vmatpush.msra.mxu0 0.0
  %2419 = vmatpush.msra.mxu0 0.0
  %2420 = vmatpush.msra.mxu0 0.0
  %2421 = vmatpush.msra.mxu0 0.0
  %2422 = vmatpush.msra.mxu0 0.0
  %2423 = vmatpush.msra.mxu0 0.0
  %2424 = vmatpush.msra.mxu0 %v2404
  %2425 = vmatmul.f32.gmra.mxu0 %v2407
  %v2426 = vpop.f32.mrf.mxu0
  %v2427 = vadd.f32 0.0, %v2426
  %2428 = vdwg.mxu0
  %2429 = vrot.lane.b32.xlu0 %v98, 72
  %v2430 = vpop.permute.xlu0 %2429
  %v2433 = vsel %vm121, %v2371, 0
  %2435 = vmatpush.msra.mxu0 0.0
  %2436 = vmatpush.msra.mxu0 0.0
  %2437 = vmatpush.msra.mxu0 0.0
  %2438 = vmatpush.msra.mxu0 0.0
  %2439 = vmatpush.msra.mxu0 0.0
  %2440 = vmatpush.msra.mxu0 0.0
  %2441 = vmatpush.msra.mxu0 0.0
  %2442 = vmatpush.msra.mxu0 0.0
  %2443 = vmatpush.msra.mxu0 0.0
  %2444 = vmatpush.msra.mxu0 0.0
  %2445 = vmatpush.msra.mxu0 0.0
  %2446 = vmatpush.msra.mxu0 0.0
  %2447 = vmatpush.msra.mxu0 0.0
  %2448 = vmatpush.msra.mxu0 0.0
  %2449 = vmatpush.msra.mxu0 0.0
  %2450 = vmatpush.msra.mxu0 %v2430
  %2451 = vmatmul.f32.gmra.mxu0 %v2433
  %v2452 = vpop.f32.mrf.mxu0
  %v2453 = vadd.f32 0.0, %v2452
  %2454 = vdwg.mxu0
  %2455 = vrot.lane.b32.xlu0 %v101, 72
  %v2456 = vpop.permute.xlu0 %2455
  %v2459 = vsel %vm121, %v2372, 0
  %2461 = vmatpush.msra.mxu0 0.0
  %2462 = vmatpush.msra.mxu0 0.0
  %2463 = vmatpush.msra.mxu0 0.0
  %2464 = vmatpush.msra.mxu0 0.0
  %2465 = vmatpush.msra.mxu0 0.0
  %2466 = vmatpush.msra.mxu0 0.0
  %2467 = vmatpush.msra.mxu0 0.0
  %2468 = vmatpush.msra.mxu0 0.0
  %2469 = vmatpush.msra.mxu0 0.0
  %2470 = vmatpush.msra.mxu0 0.0
  %2471 = vmatpush.msra.mxu0 0.0
  %2472 = vmatpush.msra.mxu0 0.0
  %2473 = vmatpush.msra.mxu0 0.0
  %2474 = vmatpush.msra.mxu0 0.0
  %2475 = vmatpush.msra.mxu0 0.0
  %2476 = vmatpush.msra.mxu0 %v2456
  %2477 = vmatmul.f32.gmra.mxu0 %v2459
  %v2478 = vpop.f32.mrf.mxu0
  %v2479 = vadd.f32 0.0, %v2478
  %2480 = vdwg.mxu0
  %2481 = vrot.lane.b32.xlu0 %v104, 72
  %v2482 = vpop.permute.xlu0 %2481
  %v2485 = vsel %vm121, %v2373, 0
  %2487 = vmatpush.msra.mxu0 0.0
  %2488 = vmatpush.msra.mxu0 0.0
  %2489 = vmatpush.msra.mxu0 0.0
  %2490 = vmatpush.msra.mxu0 0.0
  %2491 = vmatpush.msra.mxu0 0.0
  %2492 = vmatpush.msra.mxu0 0.0
  %2493 = vmatpush.msra.mxu0 0.0
  %2494 = vmatpush.msra.mxu0 0.0
  %2495 = vmatpush.msra.mxu0 0.0
  %2496 = vmatpush.msra.mxu0 0.0
  %2497 = vmatpush.msra.mxu0 0.0
  %2498 = vmatpush.msra.mxu0 0.0
  %2499 = vmatpush.msra.mxu0 0.0
  %2500 = vmatpush.msra.mxu0 0.0
  %2501 = vmatpush.msra.mxu0 0.0
  %2502 = vmatpush.msra.mxu0 %v2482
  %2503 = vmatmul.f32.gmra.mxu0 %v2485
  %v2504 = vpop.f32.mrf.mxu0
  %v2505 = vadd.f32 0.0, %v2504
  %2506 = vdwg.mxu0
  %2507 = vrot.lane.b32.xlu0 %v107, 72
  %v2508 = vpop.permute.xlu0 %2507
  %v2511 = vsel %vm121, %v2374, 0
  %2513 = vmatpush.msra.mxu0 0.0
  %2514 = vmatpush.msra.mxu0 0.0
  %2515 = vmatpush.msra.mxu0 0.0
  %2516 = vmatpush.msra.mxu0 0.0
  %2517 = vmatpush.msra.mxu0 0.0
  %2518 = vmatpush.msra.mxu0 0.0
  %2519 = vmatpush.msra.mxu0 0.0
  %2520 = vmatpush.msra.mxu0 0.0
  %2521 = vmatpush.msra.mxu0 0.0
  %2522 = vmatpush.msra.mxu0 0.0
  %2523 = vmatpush.msra.mxu0 0.0
  %2524 = vmatpush.msra.mxu0 0.0
  %2525 = vmatpush.msra.mxu0 0.0
  %2526 = vmatpush.msra.mxu0 0.0
  %2527 = vmatpush.msra.mxu0 0.0
  %2528 = vmatpush.msra.mxu0 %v2508
  %2529 = vmatmul.f32.gmra.mxu0 %v2511
  %v2530 = vpop.f32.mrf.mxu0
  %v2531 = vadd.f32 0.0, %v2530
  %2532 = vdwg.mxu0
  %2533 = vrot.lane.b32.xlu0 %v110, 72
  %v2534 = vpop.permute.xlu0 %2533
  %v2537 = vsel %vm121, %v2375, 0
  %2539 = vmatpush.msra.mxu0 0.0
  %2540 = vmatpush.msra.mxu0 0.0
  %2541 = vmatpush.msra.mxu0 0.0
  %2542 = vmatpush.msra.mxu0 0.0
  %2543 = vmatpush.msra.mxu0 0.0
  %2544 = vmatpush.msra.mxu0 0.0
  %2545 = vmatpush.msra.mxu0 0.0
  %2546 = vmatpush.msra.mxu0 0.0
  %2547 = vmatpush.msra.mxu0 0.0
  %2548 = vmatpush.msra.mxu0 0.0
  %2549 = vmatpush.msra.mxu0 0.0
  %2550 = vmatpush.msra.mxu0 0.0
  %2551 = vmatpush.msra.mxu0 0.0
  %2552 = vmatpush.msra.mxu0 0.0
  %2553 = vmatpush.msra.mxu0 0.0
  %2554 = vmatpush.msra.mxu0 %v2534
  %2555 = vmatmul.f32.gmra.mxu0 %v2537
  %v2556 = vpop.f32.mrf.mxu0
  %v2557 = vadd.f32 0.0, %v2556
  %2558 = vdwg.mxu0
  %2559 = vrot.lane.b32.xlu0 %v113, 72
  %v2560 = vpop.permute.xlu0 %2559
  %v2563 = vsel %vm121, %v2376, 0
  %2565 = vmatpush.msra.mxu0 0.0
  %2566 = vmatpush.msra.mxu0 0.0
  %2567 = vmatpush.msra.mxu0 0.0
  %2568 = vmatpush.msra.mxu0 0.0
  %2569 = vmatpush.msra.mxu0 0.0
  %2570 = vmatpush.msra.mxu0 0.0
  %2571 = vmatpush.msra.mxu0 0.0
  %2572 = vmatpush.msra.mxu0 0.0
  %2573 = vmatpush.msra.mxu0 0.0
  %2574 = vmatpush.msra.mxu0 0.0
  %2575 = vmatpush.msra.mxu0 0.0
  %2576 = vmatpush.msra.mxu0 0.0
  %2577 = vmatpush.msra.mxu0 0.0
  %2578 = vmatpush.msra.mxu0 0.0
  %2579 = vmatpush.msra.mxu0 0.0
  %2580 = vmatpush.msra.mxu0 %v2560
  %2581 = vmatmul.f32.gmra.mxu0 %v2563
  %v2582 = vpop.f32.mrf.mxu0
  %v2583 = vadd.f32 0.0, %v2582
  %2584 = vdwg.mxu0
  %2593 = vrot.lane.b32.xlu0 %v2401, 24
  %v2594 = vpop.permute.xlu0 %2593
  %2595 = vrot.lane.b32.xlu0 %v2427, 24
  %v2596 = vpop.permute.xlu0 %2595
  %2597 = vrot.lane.b32.xlu0 %v2453, 24
  %v2598 = vpop.permute.xlu0 %2597
  %2599 = vrot.lane.b32.xlu0 %v2479, 24
  %v2600 = vpop.permute.xlu0 %2599
  %2601 = vrot.lane.b32.xlu0 %v2505, 24
  %v2602 = vpop.permute.xlu0 %2601
  %2603 = vrot.lane.b32.xlu0 %v2531, 24
  %v2604 = vpop.permute.xlu0 %2603
  %2605 = vrot.lane.b32.xlu0 %v2557, 24
  %v2606 = vpop.permute.xlu0 %2605
  %2607 = vrot.lane.b32.xlu0 %v2583, 24
  %v2608 = vpop.permute.xlu0 %2607
  %v2617 = vadd.f32 %v115, %v2594
  %v2618 = vadd.f32 %v115, %v2596
  %v2619 = vadd.f32 %v115, %v2598
  %v2620 = vadd.f32 %v115, %v2600
  %v2621 = vadd.f32 %v115, %v2602
  %v2622 = vadd.f32 %v115, %v2604
  %v2623 = vadd.f32 %v115, %v2606
  %v2624 = vadd.f32 %v115, %v2608
  %v2625 = vsel %vm121, %v709, %v1345
  %v2626 = vsel %vm121, %v710, %v1346
  %v2627 = vsel %vm121, %v711, %v1347
  %v2628 = vsel %vm121, %v712, %v1348
  %v2629 = vsel %vm121, %v713, %v1349
  %v2630 = vsel %vm121, %v714, %v1350
  %v2631 = vsel %vm121, %v715, %v1351
  %v2632 = vsel %vm121, %v716, %v1352
  %v2633 = vsel %vm49, %v2625, %v1981
  %v2634 = vsel %vm49, %v2626, %v1982
  %v2635 = vsel %vm49, %v2627, %v1983
  %v2636 = vsel %vm49, %v2628, %v1984
  %v2637 = vsel %vm49, %v2629, %v1985
  %v2638 = vsel %vm49, %v2630, %v1986
  %v2639 = vsel %vm49, %v2631, %v1987
  %v2640 = vsel %vm49, %v2632, %v1988
  %vm2641 = vcmask 195584
  %v2642 = vsel %vm2641, %v2633, %v2617
  %v2643 = vsel %vm2641, %v2634, %v2618
  %v2644 = vsel %vm2641, %v2635, %v2619
  %v2645 = vsel %vm2641, %v2636, %v2620
  %v2646 = vsel %vm2641, %v2637, %v2621
  %v2647 = vsel %vm2641, %v2638, %v2622
  %v2648 = vsel %vm2641, %v2639, %v2623
  %v2649 = vsel %vm2641, %v2640, %v2624
  %v2651 = vperm.slane %v120, 0
  %vm2653 = vcmask 261120
  %v2655 = vsel %vm2653, %v2642, 0
  %v2658 = vsel %vm2653, %v2643, 0
  %v2661 = vsel %vm2653, %v2644, 0
  %v2664 = vsel %vm2653, %v2645, 0
  %v2667 = vsel %vm2653, %v2646, 0
  %v2670 = vsel %vm2653, %v2647, 0
  %v2673 = vsel %vm2653, %v2648, 0
  %v2676 = vsel %vm2653, %v2649, 0
  %2678 = vmatpush.msra.mxu0 0.0
  %2679 = vmatpush.msra.mxu0 0.0
  %2680 = vmatpush.msra.mxu0 0.0
  %2681 = vmatpush.msra.mxu0 0.0
  %2682 = vmatpush.msra.mxu0 0.0
  %2683 = vmatpush.msra.mxu0 0.0
  %2684 = vmatpush.msra.mxu0 0.0
  %2685 = vmatpush.msra.mxu0 0.0
  %2686 = vmatpush.msra.mxu0 0.0
  %2687 = vmatpush.msra.mxu0 0.0
  %2688 = vmatpush.msra.mxu0 0.0
  %2689 = vmatpush.msra.mxu0 0.0
  %2690 = vmatpush.msra.mxu0 %v119
  %2691 = vmatpush.msra.mxu0 %v118
  %2692 = vmatpush.msra.mxu0 %v117
  %2693 = vmatpush.msra.mxu0 %v116
  %2694 = vmatmul.f32.gmra.mxu0 %v2655
  %v2695 = vpop.f32.mrf.mxu0
  %v2696 = vadd.f32 %v2651, %v2695
  %2697 = vmatmul.f32.gmra.mxu0 %v2658
  %v2698 = vpop.f32.mrf.mxu0
  %v2699 = vadd.f32 %v2651, %v2698
  %2700 = vmatmul.f32.gmra.mxu0 %v2661
  %v2701 = vpop.f32.mrf.mxu0
  %v2702 = vadd.f32 %v2651, %v2701
  %2703 = vmatmul.f32.gmra.mxu0 %v2664
  %v2704 = vpop.f32.mrf.mxu0
  %v2705 = vadd.f32 %v2651, %v2704
  %2706 = vmatmul.f32.gmra.mxu0 %v2667
  %v2707 = vpop.f32.mrf.mxu0
  %v2708 = vadd.f32 %v2651, %v2707
  %2709 = vmatmul.f32.gmra.mxu0 %v2670
  %v2710 = vpop.f32.mrf.mxu0
  %v2711 = vadd.f32 %v2651, %v2710
  %2712 = vmatmul.f32.gmra.mxu0 %v2673
  %v2713 = vpop.f32.mrf.mxu0
  %v2714 = vadd.f32 %v2651, %v2713
  %2715 = vmatmul.f32.gmra.mxu0 %v2676
  %v2716 = vpop.f32.mrf.mxu0
  %v2717 = vadd.f32 %v2651, %v2716
  %2718 = vdwg.mxu0
  %v2719 = vmax.f32 %v2696, 0.0
  %v2720 = vmax.f32 %v2699, 0.0
  %v2721 = vmax.f32 %v2702, 0.0
  %v2722 = vmax.f32 %v2705, 0.0
  %v2723 = vmax.f32 %v2708, 0.0
  %v2724 = vmax.f32 %v2711, 0.0
  %v2725 = vmax.f32 %v2714, 0.0
  %v2726 = vmax.f32 %v2717, 0.0
  %v2727 = vadd.f32 %v2642, %v2719
  %v2728 = vadd.f32 %v2643, %v2720
  %v2729 = vadd.f32 %v2644, %v2721
  %v2730 = vadd.f32 %v2645, %v2722
  %v2731 = vadd.f32 %v2646, %v2723
  %v2732 = vadd.f32 %v2647, %v2724
  %v2733 = vadd.f32 %v2648, %v2725
  %v2734 = vadd.f32 %v2649, %v2726
  %v2735 = vld [vmem:[%s4] sm:$0xff]
  %v2736 = vld [vmem:[%s4 + $0x8] sm:$0xff]
  %v2737 = vld [vmem:[%s4 + $0x10] sm:$0xff]
  %v2738 = vld [vmem:[%s4 + $0x18] sm:$0xff]
  %v2739 = vld [vmem:[%s5] sm:$0x1]
  %v2741 = vperm.slane %v2739, 0
  %v2744 = vsel %vm2653, %v2727, 0
  %v2747 = vsel %vm2653, %v2728, 0
  %v2750 = vsel %vm2653, %v2729, 0
  %v2753 = vsel %vm2653, %v2730, 0
  %v2756 = vsel %vm2653, %v2731, 0
  %v2759 = vsel %vm2653, %v2732, 0
  %v2762 = vsel %vm2653, %v2733, 0
  %v2765 = vsel %vm2653, %v2734, 0
  %2767 = vmatpush.msra.mxu0 0.0
  %2768 = vmatpush.msra.mxu0 0.0
  %2769 = vmatpush.msra.mxu0 0.0
  %2770 = vmatpush.msra.mxu0 0.0
  %2771 = vmatpush.msra.mxu0 0.0
  %2772 = vmatpush.msra.mxu0 0.0
  %2773 = vmatpush.msra.mxu0 0.0
  %2774 = vmatpush.msra.mxu0 0.0
  %2775 = vmatpush.msra.mxu0 0.0
  %2776 = vmatpush.msra.mxu0 0.0
  %2777 = vmatpush.msra.mxu0 0.0
  %2778 = vmatpush.msra.mxu0 0.0
  %2779 = vmatpush.msra.mxu0 %v2738
  %2780 = vmatpush.msra.mxu0 %v2737
  %2781 = vmatpush.msra.mxu0 %v2736
  %2782 = vmatpush.msra.mxu0 %v2735
  %2783 = vmatmul.f32.gmra.mxu0 %v2744
  %v2784 = vpop.f32.mrf.mxu0
  %v2785 = vadd.f32 %v2741, %v2784
  %2786 = vmatmul.f32.gmra.mxu0 %v2747
  %v2787 = vpop.f32.mrf.mxu0
  %v2788 = vadd.f32 %v2741, %v2787
  %2789 = vmatmul.f32.gmra.mxu0 %v2750
  %v2790 = vpop.f32.mrf.mxu0
  %v2791 = vadd.f32 %v2741, %v2790
  %2792 = vmatmul.f32.gmra.mxu0 %v2753
  %v2793 = vpop.f32.mrf.mxu0
  %v2794 = vadd.f32 %v2741, %v2793
  %2795 = vmatmul.f32.gmra.mxu0 %v2756
  %v2796 = vpop.f32.mrf.mxu0
  %v2797 = vadd.f32 %v2741, %v2796
  %2798 = vmatmul.f32.gmra.mxu0 %v2759
  %v2799 = vpop.f32.mrf.mxu0
  %v2800 = vadd.f32 %v2741, %v2799
  %2801 = vmatmul.f32.gmra.mxu0 %v2762
  %v2802 = vpop.f32.mrf.mxu0
  %v2803 = vadd.f32 %v2741, %v2802
  %2804 = vmatmul.f32.gmra.mxu0 %v2765
  %v2805 = vpop.f32.mrf.mxu0
  %v2806 = vadd.f32 %v2741, %v2805
  %2807 = vdwg.mxu0
  %v2808 = vld [vmem:[%s8] sm:$0xff]
  %v2809 = vld [vmem:[%s8 + $0x8] sm:$0xff]
  %v2810 = vld [vmem:[%s8 + $0x10] sm:$0xff]
  %v2811 = vld [vmem:[%s8 + $0x18] sm:$0xff]
  %v2812 = vld [vmem:[%s9] sm:$0x1]
  %2813 = vrot.lane.b32.xlu0 %v92, 64
  %v2814 = vpop.permute.xlu0 %2813
  %v2815 = vsel %vm121, %v2814, 0
  %v2818 = vsel %vm121, %v2785, 0
  %2820 = vmatpush.xpose.msra.mxu0 0.0
  %2821 = vmatpush.xpose.msra.mxu0 0.0
  %2822 = vmatpush.xpose.msra.mxu0 0.0
  %2823 = vmatpush.xpose.msra.mxu0 0.0
  %2824 = vmatpush.xpose.msra.mxu0 0.0
  %2825 = vmatpush.xpose.msra.mxu0 0.0
  %2826 = vmatpush.xpose.msra.mxu0 0.0
  %2827 = vmatpush.xpose.msra.mxu0 0.0
  %2828 = vmatpush.xpose.msra.mxu0 0.0
  %2829 = vmatpush.xpose.msra.mxu0 0.0
  %2830 = vmatpush.xpose.msra.mxu0 0.0
  %2831 = vmatpush.xpose.msra.mxu0 0.0
  %2832 = vmatpush.xpose.msra.mxu0 0.0
  %2833 = vmatpush.xpose.msra.mxu0 0.0
  %2834 = vmatpush.xpose.msra.mxu0 0.0
  %2835 = vmatpush.xpose.msra.mxu0 %v2818
  %2836 = vmatmul.f32.gmra.mxu0 %v2815
  %v2837 = vpop.f32.mrf.mxu0
  %v2838 = vadd.f32 0.0, %v2837
  %2839 = vdwg.mxu0
  %2840 = vrot.lane.b32.xlu0 %v95, 64
  %v2841 = vpop.permute.xlu0 %2840
  %v2842 = vsel %vm121, %v2841, 0
  %v2845 = vsel %vm121, %v2788, 0
  %2847 = vmatpush.xpose.msra.mxu0 0.0
  %2848 = vmatpush.xpose.msra.mxu0 0.0
  %2849 = vmatpush.xpose.msra.mxu0 0.0
  %2850 = vmatpush.xpose.msra.mxu0 0.0
  %2851 = vmatpush.xpose.msra.mxu0 0.0
  %2852 = vmatpush.xpose.msra.mxu0 0.0
  %2853 = vmatpush.xpose.msra.mxu0 0.0
  %2854 = vmatpush.xpose.msra.mxu0 0.0
  %2855 = vmatpush.xpose.msra.mxu0 0.0
  %2856 = vmatpush.xpose.msra.mxu0 0.0
  %2857 = vmatpush.xpose.msra.mxu0 0.0
  %2858 = vmatpush.xpose.msra.mxu0 0.0
  %2859 = vmatpush.xpose.msra.mxu0 0.0
  %2860 = vmatpush.xpose.msra.mxu0 0.0
  %2861 = vmatpush.xpose.msra.mxu0 0.0
  %2862 = vmatpush.xpose.msra.mxu0 %v2845
  %2863 = vmatmul.f32.gmra.mxu0 %v2842
  %v2864 = vpop.f32.mrf.mxu0
  %v2865 = vadd.f32 0.0, %v2864
  %2866 = vdwg.mxu0
  %2867 = vrot.lane.b32.xlu0 %v98, 64
  %v2868 = vpop.permute.xlu0 %2867
  %v2869 = vsel %vm121, %v2868, 0
  %v2872 = vsel %vm121, %v2791, 0
  %2874 = vmatpush.xpose.msra.mxu0 0.0
  %2875 = vmatpush.xpose.msra.mxu0 0.0
  %2876 = vmatpush.xpose.msra.mxu0 0.0
  %2877 = vmatpush.xpose.msra.mxu0 0.0
  %2878 = vmatpush.xpose.msra.mxu0 0.0
  %2879 = vmatpush.xpose.msra.mxu0 0.0
  %2880 = vmatpush.xpose.msra.mxu0 0.0
  %2881 = vmatpush.xpose.msra.mxu0 0.0
  %2882 = vmatpush.xpose.msra.mxu0 0.0
  %2883 = vmatpush.xpose.msra.mxu0 0.0
  %2884 = vmatpush.xpose.msra.mxu0 0.0
  %2885 = vmatpush.xpose.msra.mxu0 0.0
  %2886 = vmatpush.xpose.msra.mxu0 0.0
  %2887 = vmatpush.xpose.msra.mxu0 0.0
  %2888 = vmatpush.xpose.msra.mxu0 0.0
  %2889 = vmatpush.xpose.msra.mxu0 %v2872
  %2890 = vmatmul.f32.gmra.mxu0 %v2869
  %v2891 = vpop.f32.mrf.mxu0
  %v2892 = vadd.f32 0.0, %v2891
  %2893 = vdwg.mxu0
  %2894 = vrot.lane.b32.xlu0 %v101, 64
  %v2895 = vpop.permute.xlu0 %2894
  %v2896 = vsel %vm121, %v2895, 0
  %v2899 = vsel %vm121, %v2794, 0
  %2901 = vmatpush.xpose.msra.mxu0 0.0
  %2902 = vmatpush.xpose.msra.mxu0 0.0
  %2903 = vmatpush.xpose.msra.mxu0 0.0
  %2904 = vmatpush.xpose.msra.mxu0 0.0
  %2905 = vmatpush.xpose.msra.mxu0 0.0
  %2906 = vmatpush.xpose.msra.mxu0 0.0
  %2907 = vmatpush.xpose.msra.mxu0 0.0
  %2908 = vmatpush.xpose.msra.mxu0 0.0
  %2909 = vmatpush.xpose.msra.mxu0 0.0
  %2910 = vmatpush.xpose.msra.mxu0 0.0
  %2911 = vmatpush.xpose.msra.mxu0 0.0
  %2912 = vmatpush.xpose.msra.mxu0 0.0
  %2913 = vmatpush.xpose.msra.mxu0 0.0
  %2914 = vmatpush.xpose.msra.mxu0 0.0
  %2915 = vmatpush.xpose.msra.mxu0 0.0
  %2916 = vmatpush.xpose.msra.mxu0 %v2899
  %2917 = vmatmul.f32.gmra.mxu0 %v2896
  %v2918 = vpop.f32.mrf.mxu0
  %v2919 = vadd.f32 0.0, %v2918
  %2920 = vdwg.mxu0
  %2921 = vrot.lane.b32.xlu0 %v104, 64
  %v2922 = vpop.permute.xlu0 %2921
  %v2923 = vsel %vm121, %v2922, 0
  %v2926 = vsel %vm121, %v2797, 0
  %2928 = vmatpush.xpose.msra.mxu0 0.0
  %2929 = vmatpush.xpose.msra.mxu0 0.0
  %2930 = vmatpush.xpose.msra.mxu0 0.0
  %2931 = vmatpush.xpose.msra.mxu0 0.0
  %2932 = vmatpush.xpose.msra.mxu0 0.0
  %2933 = vmatpush.xpose.msra.mxu0 0.0
  %2934 = vmatpush.xpose.msra.mxu0 0.0
  %2935 = vmatpush.xpose.msra.mxu0 0.0
  %2936 = vmatpush.xpose.msra.mxu0 0.0
  %2937 = vmatpush.xpose.msra.mxu0 0.0
  %2938 = vmatpush.xpose.msra.mxu0 0.0
  %2939 = vmatpush.xpose.msra.mxu0 0.0
  %2940 = vmatpush.xpose.msra.mxu0 0.0
  %2941 = vmatpush.xpose.msra.mxu0 0.0
  %2942 = vmatpush.xpose.msra.mxu0 0.0
  %2943 = vmatpush.xpose.msra.mxu0 %v2926
  %2944 = vmatmul.f32.gmra.mxu0 %v2923
  %v2945 = vpop.f32.mrf.mxu0
  %v2946 = vadd.f32 0.0, %v2945
  %2947 = vdwg.mxu0
  %2948 = vrot.lane.b32.xlu0 %v107, 64
  %v2949 = vpop.permute.xlu0 %2948
  %v2950 = vsel %vm121, %v2949, 0
  %v2953 = vsel %vm121, %v2800, 0
  %2955 = vmatpush.xpose.msra.mxu0 0.0
  %2956 = vmatpush.xpose.msra.mxu0 0.0
  %2957 = vmatpush.xpose.msra.mxu0 0.0
  %2958 = vmatpush.xpose.msra.mxu0 0.0
  %2959 = vmatpush.xpose.msra.mxu0 0.0
  %2960 = vmatpush.xpose.msra.mxu0 0.0
  %2961 = vmatpush.xpose.msra.mxu0 0.0
  %2962 = vmatpush.xpose.msra.mxu0 0.0
  %2963 = vmatpush.xpose.msra.mxu0 0.0
  %2964 = vmatpush.xpose.msra.mxu0 0.0
  %2965 = vmatpush.xpose.msra.mxu0 0.0
  %2966 = vmatpush.xpose.msra.mxu0 0.0
  %2967 = vmatpush.xpose.msra.mxu0 0.0
  %2968 = vmatpush.xpose.msra.mxu0 0.0
  %2969 = vmatpush.xpose.msra.mxu0 0.0
  %2970 = vmatpush.xpose.msra.mxu0 %v2953
  %2971 = vmatmul.f32.gmra.mxu0 %v2950
  %v2972 = vpop.f32.mrf.mxu0
  %v2973 = vadd.f32 0.0, %v2972
  %2974 = vdwg.mxu0
  %2975 = vrot.lane.b32.xlu0 %v110, 64
  %v2976 = vpop.permute.xlu0 %2975
  %v2977 = vsel %vm121, %v2976, 0
  %v2980 = vsel %vm121, %v2803, 0
  %2982 = vmatpush.xpose.msra.mxu0 0.0
  %2983 = vmatpush.xpose.msra.mxu0 0.0
  %2984 = vmatpush.xpose.msra.mxu0 0.0
  %2985 = vmatpush.xpose.msra.mxu0 0.0
  %2986 = vmatpush.xpose.msra.mxu0 0.0
  %2987 = vmatpush.xpose.msra.mxu0 0.0
  %2988 = vmatpush.xpose.msra.mxu0 0.0
  %2989 = vmatpush.xpose.msra.mxu0 0.0
  %2990 = vmatpush.xpose.msra.mxu0 0.0
  %2991 = vmatpush.xpose.msra.mxu0 0.0
  %2992 = vmatpush.xpose.msra.mxu0 0.0
  %2993 = vmatpush.xpose.msra.mxu0 0.0
  %2994 = vmatpush.xpose.msra.mxu0 0.0
  %2995 = vmatpush.xpose.msra.mxu0 0.0
  %2996 = vmatpush.xpose.msra.mxu0 0.0
  %2997 = vmatpush.xpose.msra.mxu0 %v2980
  %2998 = vmatmul.f32.gmra.mxu0 %v2977
  %v2999 = vpop.f32.mrf.mxu0
  %v3000 = vadd.f32 0.0, %v2999
  %3001 = vdwg.mxu0
  %3002 = vrot.lane.b32.xlu0 %v113, 64
  %v3003 = vpop.permute.xlu0 %3002
  %v3004 = vsel %vm121, %v3003, 0
  %v3007 = vsel %vm121, %v2806, 0
  %3009 = vmatpush.xpose.msra.mxu0 0.0
  %3010 = vmatpush.xpose.msra.mxu0 0.0
  %3011 = vmatpush.xpose.msra.mxu0 0.0
  %3012 = vmatpush.xpose.msra.mxu0 0.0
  %3013 = vmatpush.xpose.msra.mxu0 0.0
  %3014 = vmatpush.xpose.msra.mxu0 0.0
  %3015 = vmatpush.xpose.msra.mxu0 0.0
  %3016 = vmatpush.xpose.msra.mxu0 0.0
  %3017 = vmatpush.xpose.msra.mxu0 0.0
  %3018 = vmatpush.xpose.msra.mxu0 0.0
  %3019 = vmatpush.xpose.msra.mxu0 0.0
  %3020 = vmatpush.xpose.msra.mxu0 0.0
  %3021 = vmatpush.xpose.msra.mxu0 0.0
  %3022 = vmatpush.xpose.msra.mxu0 0.0
  %3023 = vmatpush.xpose.msra.mxu0 0.0
  %3024 = vmatpush.xpose.msra.mxu0 %v3007
  %3025 = vmatmul.f32.gmra.mxu0 %v3004
  %v3026 = vpop.f32.mrf.mxu0
  %v3027 = vadd.f32 0.0, %v3026
  %3028 = vdwg.mxu0
  %v3029 = vsel %vm121, %v2838, -inf
  %3030 = vmax.xlane.f32.xlu0 %v3029
  %v3031 = vpop.xlane.xlu0 %3030
  %v3032 = vsel %vm121, %v2865, -inf
  %3033 = vmax.xlane.f32.xlu0 %v3032
  %v3034 = vpop.xlane.xlu0 %3033
  %v3035 = vsel %vm121, %v2892, -inf
  %3036 = vmax.xlane.f32.xlu0 %v3035
  %v3037 = vpop.xlane.xlu0 %3036
  %v3038 = vsel %vm121, %v2919, -inf
  %3039 = vmax.xlane.f32.xlu0 %v3038
  %v3040 = vpop.xlane.xlu0 %3039
  %v3041 = vsel %vm121, %v2946, -inf
  %3042 = vmax.xlane.f32.xlu0 %v3041
  %v3043 = vpop.xlane.xlu0 %3042
  %v3044 = vsel %vm121, %v2973, -inf
  %3045 = vmax.xlane.f32.xlu0 %v3044
  %v3046 = vpop.xlane.xlu0 %3045
  %v3047 = vsel %vm121, %v3000, -inf
  %3048 = vmax.xlane.f32.xlu0 %v3047
  %v3049 = vpop.xlane.xlu0 %3048
  %v3050 = vsel %vm121, %v3027, -inf
  %3051 = vmax.xlane.f32.xlu0 %v3050
  %v3052 = vpop.xlane.xlu0 %3051
  %v3053 = vsub.f32 %v2838, %v3031
  %v3054 = vsub.f32 %v2865, %v3034
  %v3055 = vsub.f32 %v2892, %v3037
  %v3056 = vsub.f32 %v2919, %v3040
  %v3057 = vsub.f32 %v2946, %v3043
  %v3058 = vsub.f32 %v2973, %v3046
  %v3059 = vsub.f32 %v3000, %v3049
  %v3060 = vsub.f32 %v3027, %v3052
  %v3061 = vmul.f32 %v3053, 1.442695
  %v3062 = vpow.pop %v3061
  %v3063 = vmul.f32 %v3054, 1.442695
  %v3064 = vpow.pop %v3063
  %v3065 = vmul.f32 %v3055, 1.442695
  %v3066 = vpow.pop %v3065
  %v3067 = vmul.f32 %v3056, 1.442695
  %v3068 = vpow.pop %v3067
  %v3069 = vmul.f32 %v3057, 1.442695
  %v3070 = vpow.pop %v3069
  %v3071 = vmul.f32 %v3058, 1.442695
  %v3072 = vpow.pop %v3071
  %v3073 = vmul.f32 %v3059, 1.442695
  %v3074 = vpow.pop %v3073
  %v3075 = vmul.f32 %v3060, 1.442695
  %v3076 = vpow.pop %v3075
  %v3077 = vsel %vm121, %v3062, 0.0
  %3078 = vadd.xlane.f32.xlu0 %v3077
  %v3079 = vpop.xlane.xlu0 %3078
  %v3080 = vsel %vm121, %v3064, 0.0
  %3081 = vadd.xlane.f32.xlu0 %v3080
  %v3082 = vpop.xlane.xlu0 %3081
  %v3083 = vsel %vm121, %v3066, 0.0
  %3084 = vadd.xlane.f32.xlu0 %v3083
  %v3085 = vpop.xlane.xlu0 %3084
  %v3086 = vsel %vm121, %v3068, 0.0
  %3087 = vadd.xlane.f32.xlu0 %v3086
  %v3088 = vpop.xlane.xlu0 %3087
  %v3089 = vsel %vm121, %v3070, 0.0
  %3090 = vadd.xlane.f32.xlu0 %v3089
  %v3091 = vpop.xlane.xlu0 %3090
  %v3092 = vsel %vm121, %v3072, 0.0
  %3093 = vadd.xlane.f32.xlu0 %v3092
  %v3094 = vpop.xlane.xlu0 %3093
  %v3095 = vsel %vm121, %v3074, 0.0
  %3096 = vadd.xlane.f32.xlu0 %v3095
  %v3097 = vpop.xlane.xlu0 %3096
  %v3098 = vsel %vm121, %v3076, 0.0
  %3099 = vadd.xlane.f32.xlu0 %v3098
  %v3100 = vpop.xlane.xlu0 %3099
  %v3101 = vrcp.pop %v3079
  %v3102 = vmul.f32 %v3079, %v3101
  %v3103 = vsub.f32 1.0, %v3102
  %v3104 = vmul.f32 %v3101, %v3103
  %v3105 = vadd.f32 %v3101, %v3104
  %vm3106 = vweird.f32 %v3079
  %vm3107 = vweird.f32 %v3101
  %vm3108 = vmor %vm3106, %vm3107
  %v3109 = vsel %vm3108, %v3101, %v3105
  %v3110 = vand.u32 2147483647, %v3079
  %vm3111 = vcmp.eq.f32.partialorder %v3110, 8.507059e+37
  %v3112 = vand.u32 %v3079, 2147483648
  %v3113 = vor.u32 1.1754944e-38, %v3112
  %v3114 = vsel %vm3111, %v3113, %v3109
  %v3115 = vrcp.pop %v3082
  %v3116 = vmul.f32 %v3082, %v3115
  %v3117 = vsub.f32 1.0, %v3116
  %v3118 = vmul.f32 %v3115, %v3117
  %v3119 = vadd.f32 %v3115, %v3118
  %vm3120 = vweird.f32 %v3082
  %vm3121 = vweird.f32 %v3115
  %vm3122 = vmor %vm3120, %vm3121
  %v3123 = vsel %vm3122, %v3115, %v3119
  %v3124 = vand.u32 2147483647, %v3082
  %vm3125 = vcmp.eq.f32.partialorder %v3124, 8.507059e+37
  %v3126 = vand.u32 %v3082, 2147483648
  %v3127 = vor.u32 1.1754944e-38, %v3126
  %v3128 = vsel %vm3125, %v3127, %v3123
  %v3129 = vrcp.pop %v3085
  %v3130 = vmul.f32 %v3085, %v3129
  %v3131 = vsub.f32 1.0, %v3130
  %v3132 = vmul.f32 %v3129, %v3131
  %v3133 = vadd.f32 %v3129, %v3132
  %vm3134 = vweird.f32 %v3085
  %vm3135 = vweird.f32 %v3129
  %vm3136 = vmor %vm3134, %vm3135
  %v3137 = vsel %vm3136, %v3129, %v3133
  %v3138 = vand.u32 2147483647, %v3085
  %vm3139 = vcmp.eq.f32.partialorder %v3138, 8.507059e+37
  %v3140 = vand.u32 %v3085, 2147483648
  %v3141 = vor.u32 1.1754944e-38, %v3140
  %v3142 = vsel %vm3139, %v3141, %v3137
  %v3143 = vrcp.pop %v3088
  %v3144 = vmul.f32 %v3088, %v3143
  %v3145 = vsub.f32 1.0, %v3144
  %v3146 = vmul.f32 %v3143, %v3145
  %v3147 = vadd.f32 %v3143, %v3146
  %vm3148 = vweird.f32 %v3088
  %vm3149 = vweird.f32 %v3143
  %vm3150 = vmor %vm3148, %vm3149
  %v3151 = vsel %vm3150, %v3143, %v3147
  %v3152 = vand.u32 2147483647, %v3088
  %vm3153 = vcmp.eq.f32.partialorder %v3152, 8.507059e+37
  %v3154 = vand.u32 %v3088, 2147483648
  %v3155 = vor.u32 1.1754944e-38, %v3154
  %v3156 = vsel %vm3153, %v3155, %v3151
  %v3157 = vrcp.pop %v3091
  %v3158 = vmul.f32 %v3091, %v3157
  %v3159 = vsub.f32 1.0, %v3158
  %v3160 = vmul.f32 %v3157, %v3159
  %v3161 = vadd.f32 %v3157, %v3160
  %vm3162 = vweird.f32 %v3091
  %vm3163 = vweird.f32 %v3157
  %vm3164 = vmor %vm3162, %vm3163
  %v3165 = vsel %vm3164, %v3157, %v3161
  %v3166 = vand.u32 2147483647, %v3091
  %vm3167 = vcmp.eq.f32.partialorder %v3166, 8.507059e+37
  %v3168 = vand.u32 %v3091, 2147483648
  %v3169 = vor.u32 1.1754944e-38, %v3168
  %v3170 = vsel %vm3167, %v3169, %v3165
  %v3171 = vrcp.pop %v3094
  %v3172 = vmul.f32 %v3094, %v3171
  %v3173 = vsub.f32 1.0, %v3172
  %v3174 = vmul.f32 %v3171, %v3173
  %v3175 = vadd.f32 %v3171, %v3174
  %vm3176 = vweird.f32 %v3094
  %vm3177 = vweird.f32 %v3171
  %vm3178 = vmor %vm3176, %vm3177
  %v3179 = vsel %vm3178, %v3171, %v3175
  %v3180 = vand.u32 2147483647, %v3094
  %vm3181 = vcmp.eq.f32.partialorder %v3180, 8.507059e+37
  %v3182 = vand.u32 %v3094, 2147483648
  %v3183 = vor.u32 1.1754944e-38, %v3182
  %v3184 = vsel %vm3181, %v3183, %v3179
  %v3185 = vrcp.pop %v3097
  %v3186 = vmul.f32 %v3097, %v3185
  %v3187 = vsub.f32 1.0, %v3186
  %v3188 = vmul.f32 %v3185, %v3187
  %v3189 = vadd.f32 %v3185, %v3188
  %vm3190 = vweird.f32 %v3097
  %vm3191 = vweird.f32 %v3185
  %vm3192 = vmor %vm3190, %vm3191
  %v3193 = vsel %vm3192, %v3185, %v3189
  %v3194 = vand.u32 2147483647, %v3097
  %vm3195 = vcmp.eq.f32.partialorder %v3194, 8.507059e+37
  %v3196 = vand.u32 %v3097, 2147483648
  %v3197 = vor.u32 1.1754944e-38, %v3196
  %v3198 = vsel %vm3195, %v3197, %v3193
  %v3199 = vrcp.pop %v3100
  %v3200 = vmul.f32 %v3100, %v3199
  %v3201 = vsub.f32 1.0, %v3200
  %v3202 = vmul.f32 %v3199, %v3201
  %v3203 = vadd.f32 %v3199, %v3202
  %vm3204 = vweird.f32 %v3100
  %vm3205 = vweird.f32 %v3199
  %vm3206 = vmor %vm3204, %vm3205
  %v3207 = vsel %vm3206, %v3199, %v3203
  %v3208 = vand.u32 2147483647, %v3100
  %vm3209 = vcmp.eq.f32.partialorder %v3208, 8.507059e+37
  %v3210 = vand.u32 %v3100, 2147483648
  %v3211 = vor.u32 1.1754944e-38, %v3210
  %v3212 = vsel %vm3209, %v3211, %v3207
  %v3213 = vmul.f32 %v3062, %v3114
  %v3214 = vmul.f32 %v3064, %v3128
  %v3215 = vmul.f32 %v3066, %v3142
  %v3216 = vmul.f32 %v3068, %v3156
  %v3217 = vmul.f32 %v3070, %v3170
  %v3218 = vmul.f32 %v3072, %v3184
  %v3219 = vmul.f32 %v3074, %v3198
  %v3220 = vmul.f32 %v3076, %v3212
  %3221 = vrot.lane.b32.xlu0 %v2785, 96
  %v3222 = vpop.permute.xlu0 %3221
  %v3225 = vsel %vm121, %v3213, 0
  %3227 = vmatpush.msra.mxu0 0.0
  %3228 = vmatpush.msra.mxu0 0.0
  %3229 = vmatpush.msra.mxu0 0.0
  %3230 = vmatpush.msra.mxu0 0.0
  %3231 = vmatpush.msra.mxu0 0.0
  %3232 = vmatpush.msra.mxu0 0.0
  %3233 = vmatpush.msra.mxu0 0.0
  %3234 = vmatpush.msra.mxu0 0.0
  %3235 = vmatpush.msra.mxu0 0.0
  %3236 = vmatpush.msra.mxu0 0.0
  %3237 = vmatpush.msra.mxu0 0.0
  %3238 = vmatpush.msra.mxu0 0.0
  %3239 = vmatpush.msra.mxu0 0.0
  %3240 = vmatpush.msra.mxu0 0.0
  %3241 = vmatpush.msra.mxu0 0.0
  %3242 = vmatpush.msra.mxu0 %v3222
  %3243 = vmatmul.f32.gmra.mxu0 %v3225
  %v3244 = vpop.f32.mrf.mxu0
  %v3245 = vadd.f32 0.0, %v3244
  %3246 = vdwg.mxu0
  %3247 = vrot.lane.b32.xlu0 %v2788, 96
  %v3248 = vpop.permute.xlu0 %3247
  %v3251 = vsel %vm121, %v3214, 0
  %3253 = vmatpush.msra.mxu0 0.0
  %3254 = vmatpush.msra.mxu0 0.0
  %3255 = vmatpush.msra.mxu0 0.0
  %3256 = vmatpush.msra.mxu0 0.0
  %3257 = vmatpush.msra.mxu0 0.0
  %3258 = vmatpush.msra.mxu0 0.0
  %3259 = vmatpush.msra.mxu0 0.0
  %3260 = vmatpush.msra.mxu0 0.0
  %3261 = vmatpush.msra.mxu0 0.0
  %3262 = vmatpush.msra.mxu0 0.0
  %3263 = vmatpush.msra.mxu0 0.0
  %3264 = vmatpush.msra.mxu0 0.0
  %3265 = vmatpush.msra.mxu0 0.0
  %3266 = vmatpush.msra.mxu0 0.0
  %3267 = vmatpush.msra.mxu0 0.0
  %3268 = vmatpush.msra.mxu0 %v3248
  %3269 = vmatmul.f32.gmra.mxu0 %v3251
  %v3270 = vpop.f32.mrf.mxu0
  %v3271 = vadd.f32 0.0, %v3270
  %3272 = vdwg.mxu0
  %3273 = vrot.lane.b32.xlu0 %v2791, 96
  %v3274 = vpop.permute.xlu0 %3273
  %v3277 = vsel %vm121, %v3215, 0
  %3279 = vmatpush.msra.mxu0 0.0
  %3280 = vmatpush.msra.mxu0 0.0
  %3281 = vmatpush.msra.mxu0 0.0
  %3282 = vmatpush.msra.mxu0 0.0
  %3283 = vmatpush.msra.mxu0 0.0
  %3284 = vmatpush.msra.mxu0 0.0
  %3285 = vmatpush.msra.mxu0 0.0
  %3286 = vmatpush.msra.mxu0 0.0
  %3287 = vmatpush.msra.mxu0 0.0
  %3288 = vmatpush.msra.mxu0 0.0
  %3289 = vmatpush.msra.mxu0 0.0
  %3290 = vmatpush.msra.mxu0 0.0
  %3291 = vmatpush.msra.mxu0 0.0
  %3292 = vmatpush.msra.mxu0 0.0
  %3293 = vmatpush.msra.mxu0 0.0
  %3294 = vmatpush.msra.mxu0 %v3274
  %3295 = vmatmul.f32.gmra.mxu0 %v3277
  %v3296 = vpop.f32.mrf.mxu0
  %v3297 = vadd.f32 0.0, %v3296
  %3298 = vdwg.mxu0
  %3299 = vrot.lane.b32.xlu0 %v2794, 96
  %v3300 = vpop.permute.xlu0 %3299
  %v3303 = vsel %vm121, %v3216, 0
  %3305 = vmatpush.msra.mxu0 0.0
  %3306 = vmatpush.msra.mxu0 0.0
  %3307 = vmatpush.msra.mxu0 0.0
  %3308 = vmatpush.msra.mxu0 0.0
  %3309 = vmatpush.msra.mxu0 0.0
  %3310 = vmatpush.msra.mxu0 0.0
  %3311 = vmatpush.msra.mxu0 0.0
  %3312 = vmatpush.msra.mxu0 0.0
  %3313 = vmatpush.msra.mxu0 0.0
  %3314 = vmatpush.msra.mxu0 0.0
  %3315 = vmatpush.msra.mxu0 0.0
  %3316 = vmatpush.msra.mxu0 0.0
  %3317 = vmatpush.msra.mxu0 0.0
  %3318 = vmatpush.msra.mxu0 0.0
  %3319 = vmatpush.msra.mxu0 0.0
  %3320 = vmatpush.msra.mxu0 %v3300
  %3321 = vmatmul.f32.gmra.mxu0 %v3303
  %v3322 = vpop.f32.mrf.mxu0
  %v3323 = vadd.f32 0.0, %v3322
  %3324 = vdwg.mxu0
  %3325 = vrot.lane.b32.xlu0 %v2797, 96
  %v3326 = vpop.permute.xlu0 %3325
  %v3329 = vsel %vm121, %v3217, 0
  %3331 = vmatpush.msra.mxu0 0.0
  %3332 = vmatpush.msra.mxu0 0.0
  %3333 = vmatpush.msra.mxu0 0.0
  %3334 = vmatpush.msra.mxu0 0.0
  %3335 = vmatpush.msra.mxu0 0.0
  %3336 = vmatpush.msra.mxu0 0.0
  %3337 = vmatpush.msra.mxu0 0.0
  %3338 = vmatpush.msra.mxu0 0.0
  %3339 = vmatpush.msra.mxu0 0.0
  %3340 = vmatpush.msra.mxu0 0.0
  %3341 = vmatpush.msra.mxu0 0.0
  %3342 = vmatpush.msra.mxu0 0.0
  %3343 = vmatpush.msra.mxu0 0.0
  %3344 = vmatpush.msra.mxu0 0.0
  %3345 = vmatpush.msra.mxu0 0.0
  %3346 = vmatpush.msra.mxu0 %v3326
  %3347 = vmatmul.f32.gmra.mxu0 %v3329
  %v3348 = vpop.f32.mrf.mxu0
  %v3349 = vadd.f32 0.0, %v3348
  %3350 = vdwg.mxu0
  %3351 = vrot.lane.b32.xlu0 %v2800, 96
  %v3352 = vpop.permute.xlu0 %3351
  %v3355 = vsel %vm121, %v3218, 0
  %3357 = vmatpush.msra.mxu0 0.0
  %3358 = vmatpush.msra.mxu0 0.0
  %3359 = vmatpush.msra.mxu0 0.0
  %3360 = vmatpush.msra.mxu0 0.0
  %3361 = vmatpush.msra.mxu0 0.0
  %3362 = vmatpush.msra.mxu0 0.0
  %3363 = vmatpush.msra.mxu0 0.0
  %3364 = vmatpush.msra.mxu0 0.0
  %3365 = vmatpush.msra.mxu0 0.0
  %3366 = vmatpush.msra.mxu0 0.0
  %3367 = vmatpush.msra.mxu0 0.0
  %3368 = vmatpush.msra.mxu0 0.0
  %3369 = vmatpush.msra.mxu0 0.0
  %3370 = vmatpush.msra.mxu0 0.0
  %3371 = vmatpush.msra.mxu0 0.0
  %3372 = vmatpush.msra.mxu0 %v3352
  %3373 = vmatmul.f32.gmra.mxu0 %v3355
  %v3374 = vpop.f32.mrf.mxu0
  %v3375 = vadd.f32 0.0, %v3374
  %3376 = vdwg.mxu0
  %3377 = vrot.lane.b32.xlu0 %v2803, 96
  %v3378 = vpop.permute.xlu0 %3377
  %v3381 = vsel %vm121, %v3219, 0
  %3383 = vmatpush.msra.mxu0 0.0
  %3384 = vmatpush.msra.mxu0 0.0
  %3385 = vmatpush.msra.mxu0 0.0
  %3386 = vmatpush.msra.mxu0 0.0
  %3387 = vmatpush.msra.mxu0 0.0
  %3388 = vmatpush.msra.mxu0 0.0
  %3389 = vmatpush.msra.mxu0 0.0
  %3390 = vmatpush.msra.mxu0 0.0
  %3391 = vmatpush.msra.mxu0 0.0
  %3392 = vmatpush.msra.mxu0 0.0
  %3393 = vmatpush.msra.mxu0 0.0
  %3394 = vmatpush.msra.mxu0 0.0
  %3395 = vmatpush.msra.mxu0 0.0
  %3396 = vmatpush.msra.mxu0 0.0
  %3397 = vmatpush.msra.mxu0 0.0
  %3398 = vmatpush.msra.mxu0 %v3378
  %3399 = vmatmul.f32.gmra.mxu0 %v3381
  %v3400 = vpop.f32.mrf.mxu0
  %v3401 = vadd.f32 0.0, %v3400
  %3402 = vdwg.mxu0
  %3403 = vrot.lane.b32.xlu0 %v2806, 96
  %v3404 = vpop.permute.xlu0 %3403
  %v3407 = vsel %vm121, %v3220, 0
  %3409 = vmatpush.msra.mxu0 0.0
  %3410 = vmatpush.msra.mxu0 0.0
  %3411 = vmatpush.msra.mxu0 0.0
  %3412 = vmatpush.msra.mxu0 0.0
  %3413 = vmatpush.msra.mxu0 0.0
  %3414 = vmatpush.msra.mxu0 0.0
  %3415 = vmatpush.msra.mxu0 0.0
  %3416 = vmatpush.msra.mxu0 0.0
  %3417 = vmatpush.msra.mxu0 0.0
  %3418 = vmatpush.msra.mxu0 0.0
  %3419 = vmatpush.msra.mxu0 0.0
  %3420 = vmatpush.msra.mxu0 0.0
  %3421 = vmatpush.msra.mxu0 0.0
  %3422 = vmatpush.msra.mxu0 0.0
  %3423 = vmatpush.msra.mxu0 0.0
  %3424 = vmatpush.msra.mxu0 %v3404
  %3425 = vmatmul.f32.gmra.mxu0 %v3407
  %v3426 = vpop.f32.mrf.mxu0
  %v3427 = vadd.f32 0.0, %v3426
  %3428 = vdwg.mxu0
  %3437 = vrot.lane.b32.xlu0 %v3245, 64
  %v3438 = vpop.permute.xlu0 %3437
  %3439 = vrot.lane.b32.xlu0 %v3271, 64
  %v3440 = vpop.permute.xlu0 %3439
  %3441 = vrot.lane.b32.xlu0 %v3297, 64
  %v3442 = vpop.permute.xlu0 %3441
  %3443 = vrot.lane.b32.xlu0 %v3323, 64
  %v3444 = vpop.permute.xlu0 %3443
  %3445 = vrot.lane.b32.xlu0 %v3349, 64
  %v3446 = vpop.permute.xlu0 %3445
  %3447 = vrot.lane.b32.xlu0 %v3375, 64
  %v3448 = vpop.permute.xlu0 %3447
  %3449 = vrot.lane.b32.xlu0 %v3401, 64
  %v3450 = vpop.permute.xlu0 %3449
  %3451 = vrot.lane.b32.xlu0 %v3427, 64
  %v3452 = vpop.permute.xlu0 %3451
  %v3461 = vadd.f32 %v92, %v3438
  %v3462 = vadd.f32 %v95, %v3440
  %v3463 = vadd.f32 %v98, %v3442
  %v3464 = vadd.f32 %v101, %v3444
  %v3465 = vadd.f32 %v104, %v3446
  %v3466 = vadd.f32 %v107, %v3448
  %v3467 = vadd.f32 %v110, %v3450
  %v3468 = vadd.f32 %v113, %v3452
  %3469 = vrot.lane.b32.xlu0 %v92, 56
  %v3470 = vpop.permute.xlu0 %3469
  %3471 = vrot.lane.b32.xlu0 %v2785, 120
  %v3472 = vpop.permute.xlu0 %3471
  %v3473 = vsel %vm121, %v3470, 0
  %v3475 = vsel %vm121, %v3472, 0
  %3477 = vmatpush.xpose.msra.mxu0 0.0
  %3478 = vmatpush.xpose.msra.mxu0 0.0
  %3479 = vmatpush.xpose.msra.mxu0 0.0
  %3480 = vmatpush.xpose.msra.mxu0 0.0
  %3481 = vmatpush.xpose.msra.mxu0 0.0
  %3482 = vmatpush.xpose.msra.mxu0 0.0
  %3483 = vmatpush.xpose.msra.mxu0 0.0
  %3484 = vmatpush.xpose.msra.mxu0 0.0
  %3485 = vmatpush.xpose.msra.mxu0 0.0
  %3486 = vmatpush.xpose.msra.mxu0 0.0
  %3487 = vmatpush.xpose.msra.mxu0 0.0
  %3488 = vmatpush.xpose.msra.mxu0 0.0
  %3489 = vmatpush.xpose.msra.mxu0 0.0
  %3490 = vmatpush.xpose.msra.mxu0 0.0
  %3491 = vmatpush.xpose.msra.mxu0 0.0
  %3492 = vmatpush.xpose.msra.mxu0 %v3475
  %3493 = vmatmul.f32.gmra.mxu0 %v3473
  %v3494 = vpop.f32.mrf.mxu0
  %v3495 = vadd.f32 0.0, %v3494
  %3496 = vdwg.mxu0
  %3497 = vrot.lane.b32.xlu0 %v95, 56
  %v3498 = vpop.permute.xlu0 %3497
  %3499 = vrot.lane.b32.xlu0 %v2788, 120
  %v3500 = vpop.permute.xlu0 %3499
  %v3501 = vsel %vm121, %v3498, 0
  %v3503 = vsel %vm121, %v3500, 0
  %3505 = vmatpush.xpose.msra.mxu0 0.0
  %3506 = vmatpush.xpose.msra.mxu0 0.0
  %3507 = vmatpush.xpose.msra.mxu0 0.0
  %3508 = vmatpush.xpose.msra.mxu0 0.0
  %3509 = vmatpush.xpose.msra.mxu0 0.0
  %3510 = vmatpush.xpose.msra.mxu0 0.0
  %3511 = vmatpush.xpose.msra.mxu0 0.0
  %3512 = vmatpush.xpose.msra.mxu0 0.0
  %3513 = vmatpush.xpose.msra.mxu0 0.0
  %3514 = vmatpush.xpose.msra.mxu0 0.0
  %3515 = vmatpush.xpose.msra.mxu0 0.0
  %3516 = vmatpush.xpose.msra.mxu0 0.0
  %3517 = vmatpush.xpose.msra.mxu0 0.0
  %3518 = vmatpush.xpose.msra.mxu0 0.0
  %3519 = vmatpush.xpose.msra.mxu0 0.0
  %3520 = vmatpush.xpose.msra.mxu0 %v3503
  %3521 = vmatmul.f32.gmra.mxu0 %v3501
  %v3522 = vpop.f32.mrf.mxu0
  %v3523 = vadd.f32 0.0, %v3522
  %3524 = vdwg.mxu0
  %3525 = vrot.lane.b32.xlu0 %v98, 56
  %v3526 = vpop.permute.xlu0 %3525
  %3527 = vrot.lane.b32.xlu0 %v2791, 120
  %v3528 = vpop.permute.xlu0 %3527
  %v3529 = vsel %vm121, %v3526, 0
  %v3531 = vsel %vm121, %v3528, 0
  %3533 = vmatpush.xpose.msra.mxu0 0.0
  %3534 = vmatpush.xpose.msra.mxu0 0.0
  %3535 = vmatpush.xpose.msra.mxu0 0.0
  %3536 = vmatpush.xpose.msra.mxu0 0.0
  %3537 = vmatpush.xpose.msra.mxu0 0.0
  %3538 = vmatpush.xpose.msra.mxu0 0.0
  %3539 = vmatpush.xpose.msra.mxu0 0.0
  %3540 = vmatpush.xpose.msra.mxu0 0.0
  %3541 = vmatpush.xpose.msra.mxu0 0.0
  %3542 = vmatpush.xpose.msra.mxu0 0.0
  %3543 = vmatpush.xpose.msra.mxu0 0.0
  %3544 = vmatpush.xpose.msra.mxu0 0.0
  %3545 = vmatpush.xpose.msra.mxu0 0.0
  %3546 = vmatpush.xpose.msra.mxu0 0.0
  %3547 = vmatpush.xpose.msra.mxu0 0.0
  %3548 = vmatpush.xpose.msra.mxu0 %v3531
  %3549 = vmatmul.f32.gmra.mxu0 %v3529
  %v3550 = vpop.f32.mrf.mxu0
  %v3551 = vadd.f32 0.0, %v3550
  %3552 = vdwg.mxu0
  %3553 = vrot.lane.b32.xlu0 %v101, 56
  %v3554 = vpop.permute.xlu0 %3553
  %3555 = vrot.lane.b32.xlu0 %v2794, 120
  %v3556 = vpop.permute.xlu0 %3555
  %v3557 = vsel %vm121, %v3554, 0
  %v3559 = vsel %vm121, %v3556, 0
  %3561 = vmatpush.xpose.msra.mxu0 0.0
  %3562 = vmatpush.xpose.msra.mxu0 0.0
  %3563 = vmatpush.xpose.msra.mxu0 0.0
  %3564 = vmatpush.xpose.msra.mxu0 0.0
  %3565 = vmatpush.xpose.msra.mxu0 0.0
  %3566 = vmatpush.xpose.msra.mxu0 0.0
  %3567 = vmatpush.xpose.msra.mxu0 0.0
  %3568 = vmatpush.xpose.msra.mxu0 0.0
  %3569 = vmatpush.xpose.msra.mxu0 0.0
  %3570 = vmatpush.xpose.msra.mxu0 0.0
  %3571 = vmatpush.xpose.msra.mxu0 0.0
  %3572 = vmatpush.xpose.msra.mxu0 0.0
  %3573 = vmatpush.xpose.msra.mxu0 0.0
  %3574 = vmatpush.xpose.msra.mxu0 0.0
  %3575 = vmatpush.xpose.msra.mxu0 0.0
  %3576 = vmatpush.xpose.msra.mxu0 %v3559
  %3577 = vmatmul.f32.gmra.mxu0 %v3557
  %v3578 = vpop.f32.mrf.mxu0
  %v3579 = vadd.f32 0.0, %v3578
  %3580 = vdwg.mxu0
  %3581 = vrot.lane.b32.xlu0 %v104, 56
  %v3582 = vpop.permute.xlu0 %3581
  %3583 = vrot.lane.b32.xlu0 %v2797, 120
  %v3584 = vpop.permute.xlu0 %3583
  %v3585 = vsel %vm121, %v3582, 0
  %v3587 = vsel %vm121, %v3584, 0
  %3589 = vmatpush.xpose.msra.mxu0 0.0
  %3590 = vmatpush.xpose.msra.mxu0 0.0
  %3591 = vmatpush.xpose.msra.mxu0 0.0
  %3592 = vmatpush.xpose.msra.mxu0 0.0
  %3593 = vmatpush.xpose.msra.mxu0 0.0
  %3594 = vmatpush.xpose.msra.mxu0 0.0
  %3595 = vmatpush.xpose.msra.mxu0 0.0
  %3596 = vmatpush.xpose.msra.mxu0 0.0
  %3597 = vmatpush.xpose.msra.mxu0 0.0
  %3598 = vmatpush.xpose.msra.mxu0 0.0
  %3599 = vmatpush.xpose.msra.mxu0 0.0
  %3600 = vmatpush.xpose.msra.mxu0 0.0
  %3601 = vmatpush.xpose.msra.mxu0 0.0
  %3602 = vmatpush.xpose.msra.mxu0 0.0
  %3603 = vmatpush.xpose.msra.mxu0 0.0
  %3604 = vmatpush.xpose.msra.mxu0 %v3587
  %3605 = vmatmul.f32.gmra.mxu0 %v3585
  %v3606 = vpop.f32.mrf.mxu0
  %v3607 = vadd.f32 0.0, %v3606
  %3608 = vdwg.mxu0
  %3609 = vrot.lane.b32.xlu0 %v107, 56
  %v3610 = vpop.permute.xlu0 %3609
  %3611 = vrot.lane.b32.xlu0 %v2800, 120
  %v3612 = vpop.permute.xlu0 %3611
  %v3613 = vsel %vm121, %v3610, 0
  %v3615 = vsel %vm121, %v3612, 0
  %3617 = vmatpush.xpose.msra.mxu0 0.0
  %3618 = vmatpush.xpose.msra.mxu0 0.0
  %3619 = vmatpush.xpose.msra.mxu0 0.0
  %3620 = vmatpush.xpose.msra.mxu0 0.0
  %3621 = vmatpush.xpose.msra.mxu0 0.0
  %3622 = vmatpush.xpose.msra.mxu0 0.0
  %3623 = vmatpush.xpose.msra.mxu0 0.0
  %3624 = vmatpush.xpose.msra.mxu0 0.0
  %3625 = vmatpush.xpose.msra.mxu0 0.0
  %3626 = vmatpush.xpose.msra.mxu0 0.0
  %3627 = vmatpush.xpose.msra.mxu0 0.0
  %3628 = vmatpush.xpose.msra.mxu0 0.0
  %3629 = vmatpush.xpose.msra.mxu0 0.0
  %3630 = vmatpush.xpose.msra.mxu0 0.0
  %3631 = vmatpush.xpose.msra.mxu0 0.0
  %3632 = vmatpush.xpose.msra.mxu0 %v3615
  %3633 = vmatmul.f32.gmra.mxu0 %v3613
  %v3634 = vpop.f32.mrf.mxu0
  %v3635 = vadd.f32 0.0, %v3634
  %3636 = vdwg.mxu0
  %3637 = vrot.lane.b32.xlu0 %v110, 56
  %v3638 = vpop.permute.xlu0 %3637
  %3639 = vrot.lane.b32.xlu0 %v2803, 120
  %v3640 = vpop.permute.xlu0 %3639
  %v3641 = vsel %vm121, %v3638, 0
  %v3643 = vsel %vm121, %v3640, 0
  %3645 = vmatpush.xpose.msra.mxu0 0.0
  %3646 = vmatpush.xpose.msra.mxu0 0.0
  %3647 = vmatpush.xpose.msra.mxu0 0.0
  %3648 = vmatpush.xpose.msra.mxu0 0.0
  %3649 = vmatpush.xpose.msra.mxu0 0.0
  %3650 = vmatpush.xpose.msra.mxu0 0.0
  %3651 = vmatpush.xpose.msra.mxu0 0.0
  %3652 = vmatpush.xpose.msra.mxu0 0.0
  %3653 = vmatpush.xpose.msra.mxu0 0.0
  %3654 = vmatpush.xpose.msra.mxu0 0.0
  %3655 = vmatpush.xpose.msra.mxu0 0.0
  %3656 = vmatpush.xpose.msra.mxu0 0.0
  %3657 = vmatpush.xpose.msra.mxu0 0.0
  %3658 = vmatpush.xpose.msra.mxu0 0.0
  %3659 = vmatpush.xpose.msra.mxu0 0.0
  %3660 = vmatpush.xpose.msra.mxu0 %v3643
  %3661 = vmatmul.f32.gmra.mxu0 %v3641
  %v3662 = vpop.f32.mrf.mxu0
  %v3663 = vadd.f32 0.0, %v3662
  %3664 = vdwg.mxu0
  %3665 = vrot.lane.b32.xlu0 %v113, 56
  %v3666 = vpop.permute.xlu0 %3665
  %3667 = vrot.lane.b32.xlu0 %v2806, 120
  %v3668 = vpop.permute.xlu0 %3667
  %v3669 = vsel %vm121, %v3666, 0
  %v3671 = vsel %vm121, %v3668, 0
  %3673 = vmatpush.xpose.msra.mxu0 0.0
  %3674 = vmatpush.xpose.msra.mxu0 0.0
  %3675 = vmatpush.xpose.msra.mxu0 0.0
  %3676 = vmatpush.xpose.msra.mxu0 0.0
  %3677 = vmatpush.xpose.msra.mxu0 0.0
  %3678 = vmatpush.xpose.msra.mxu0 0.0
  %3679 = vmatpush.xpose.msra.mxu0 0.0
  %3680 = vmatpush.xpose.msra.mxu0 0.0
  %3681 = vmatpush.xpose.msra.mxu0 0.0
  %3682 = vmatpush.xpose.msra.mxu0 0.0
  %3683 = vmatpush.xpose.msra.mxu0 0.0
  %3684 = vmatpush.xpose.msra.mxu0 0.0
  %3685 = vmatpush.xpose.msra.mxu0 0.0
  %3686 = vmatpush.xpose.msra.mxu0 0.0
  %3687 = vmatpush.xpose.msra.mxu0 0.0
  %3688 = vmatpush.xpose.msra.mxu0 %v3671
  %3689 = vmatmul.f32.gmra.mxu0 %v3669
  %v3690 = vpop.f32.mrf.mxu0
  %v3691 = vadd.f32 0.0, %v3690
  %3692 = vdwg.mxu0
  %v3693 = vsel %vm121, %v3495, -inf
  %3694 = vmax.xlane.f32.xlu0 %v3693
  %v3695 = vpop.xlane.xlu0 %3694
  %v3696 = vsel %vm121, %v3523, -inf
  %3697 = vmax.xlane.f32.xlu0 %v3696
  %v3698 = vpop.xlane.xlu0 %3697
  %v3699 = vsel %vm121, %v3551, -inf
  %3700 = vmax.xlane.f32.xlu0 %v3699
  %v3701 = vpop.xlane.xlu0 %3700
  %v3702 = vsel %vm121, %v3579, -inf
  %3703 = vmax.xlane.f32.xlu0 %v3702
  %v3704 = vpop.xlane.xlu0 %3703
  %v3705 = vsel %vm121, %v3607, -inf
  %3706 = vmax.xlane.f32.xlu0 %v3705
  %v3707 = vpop.xlane.xlu0 %3706
  %v3708 = vsel %vm121, %v3635, -inf
  %3709 = vmax.xlane.f32.xlu0 %v3708
  %v3710 = vpop.xlane.xlu0 %3709
  %v3711 = vsel %vm121, %v3663, -inf
  %3712 = vmax.xlane.f32.xlu0 %v3711
  %v3713 = vpop.xlane.xlu0 %3712
  %v3714 = vsel %vm121, %v3691, -inf
  %3715 = vmax.xlane.f32.xlu0 %v3714
  %v3716 = vpop.xlane.xlu0 %3715
  %v3717 = vsub.f32 %v3495, %v3695
  %v3718 = vsub.f32 %v3523, %v3698
  %v3719 = vsub.f32 %v3551, %v3701
  %v3720 = vsub.f32 %v3579, %v3704
  %v3721 = vsub.f32 %v3607, %v3707
  %v3722 = vsub.f32 %v3635, %v3710
  %v3723 = vsub.f32 %v3663, %v3713
  %v3724 = vsub.f32 %v3691, %v3716
  %v3725 = vmul.f32 %v3717, 1.442695
  %v3726 = vpow.pop %v3725
  %v3727 = vmul.f32 %v3718, 1.442695
  %v3728 = vpow.pop %v3727
  %v3729 = vmul.f32 %v3719, 1.442695
  %v3730 = vpow.pop %v3729
  %v3731 = vmul.f32 %v3720, 1.442695
  %v3732 = vpow.pop %v3731
  %v3733 = vmul.f32 %v3721, 1.442695
  %v3734 = vpow.pop %v3733
  %v3735 = vmul.f32 %v3722, 1.442695
  %v3736 = vpow.pop %v3735
  %v3737 = vmul.f32 %v3723, 1.442695
  %v3738 = vpow.pop %v3737
  %v3739 = vmul.f32 %v3724, 1.442695
  %v3740 = vpow.pop %v3739
  %v3741 = vsel %vm121, %v3726, 0.0
  %3742 = vadd.xlane.f32.xlu0 %v3741
  %v3743 = vpop.xlane.xlu0 %3742
  %v3744 = vsel %vm121, %v3728, 0.0
  %3745 = vadd.xlane.f32.xlu0 %v3744
  %v3746 = vpop.xlane.xlu0 %3745
  %v3747 = vsel %vm121, %v3730, 0.0
  %3748 = vadd.xlane.f32.xlu0 %v3747
  %v3749 = vpop.xlane.xlu0 %3748
  %v3750 = vsel %vm121, %v3732, 0.0
  %3751 = vadd.xlane.f32.xlu0 %v3750
  %v3752 = vpop.xlane.xlu0 %3751
  %v3753 = vsel %vm121, %v3734, 0.0
  %3754 = vadd.xlane.f32.xlu0 %v3753
  %v3755 = vpop.xlane.xlu0 %3754
  %v3756 = vsel %vm121, %v3736, 0.0
  %3757 = vadd.xlane.f32.xlu0 %v3756
  %v3758 = vpop.xlane.xlu0 %3757
  %v3759 = vsel %vm121, %v3738, 0.0
  %3760 = vadd.xlane.f32.xlu0 %v3759
  %v3761 = vpop.xlane.xlu0 %3760
  %v3762 = vsel %vm121, %v3740, 0.0
  %3763 = vadd.xlane.f32.xlu0 %v3762
  %v3764 = vpop.xlane.xlu0 %3763
  %v3765 = vrcp.pop %v3743
  %v3766 = vmul.f32 %v3743, %v3765
  %v3767 = vsub.f32 1.0, %v3766
  %v3768 = vmul.f32 %v3765, %v3767
  %v3769 = vadd.f32 %v3765, %v3768
  %vm3770 = vweird.f32 %v3743
  %vm3771 = vweird.f32 %v3765
  %vm3772 = vmor %vm3770, %vm3771
  %v3773 = vsel %vm3772, %v3765, %v3769
  %v3774 = vand.u32 2147483647, %v3743
  %vm3775 = vcmp.eq.f32.partialorder %v3774, 8.507059e+37
  %v3776 = vand.u32 %v3743, 2147483648
  %v3777 = vor.u32 1.1754944e-38, %v3776
  %v3778 = vsel %vm3775, %v3777, %v3773
  %v3779 = vrcp.pop %v3746
  %v3780 = vmul.f32 %v3746, %v3779
  %v3781 = vsub.f32 1.0, %v3780
  %v3782 = vmul.f32 %v3779, %v3781
  %v3783 = vadd.f32 %v3779, %v3782
  %vm3784 = vweird.f32 %v3746
  %vm3785 = vweird.f32 %v3779
  %vm3786 = vmor %vm3784, %vm3785
  %v3787 = vsel %vm3786, %v3779, %v3783
  %v3788 = vand.u32 2147483647, %v3746
  %vm3789 = vcmp.eq.f32.partialorder %v3788, 8.507059e+37
  %v3790 = vand.u32 %v3746, 2147483648
  %v3791 = vor.u32 1.1754944e-38, %v3790
  %v3792 = vsel %vm3789, %v3791, %v3787
  %v3793 = vrcp.pop %v3749
  %v3794 = vmul.f32 %v3749, %v3793
  %v3795 = vsub.f32 1.0, %v3794
  %v3796 = vmul.f32 %v3793, %v3795
  %v3797 = vadd.f32 %v3793, %v3796
  %vm3798 = vweird.f32 %v3749
  %vm3799 = vweird.f32 %v3793
  %vm3800 = vmor %vm3798, %vm3799
  %v3801 = vsel %vm3800, %v3793, %v3797
  %v3802 = vand.u32 2147483647, %v3749
  %vm3803 = vcmp.eq.f32.partialorder %v3802, 8.507059e+37
  %v3804 = vand.u32 %v3749, 2147483648
  %v3805 = vor.u32 1.1754944e-38, %v3804
  %v3806 = vsel %vm3803, %v3805, %v3801
  %v3807 = vrcp.pop %v3752
  %v3808 = vmul.f32 %v3752, %v3807
  %v3809 = vsub.f32 1.0, %v3808
  %v3810 = vmul.f32 %v3807, %v3809
  %v3811 = vadd.f32 %v3807, %v3810
  %vm3812 = vweird.f32 %v3752
  %vm3813 = vweird.f32 %v3807
  %vm3814 = vmor %vm3812, %vm3813
  %v3815 = vsel %vm3814, %v3807, %v3811
  %v3816 = vand.u32 2147483647, %v3752
  %vm3817 = vcmp.eq.f32.partialorder %v3816, 8.507059e+37
  %v3818 = vand.u32 %v3752, 2147483648
  %v3819 = vor.u32 1.1754944e-38, %v3818
  %v3820 = vsel %vm3817, %v3819, %v3815
  %v3821 = vrcp.pop %v3755
  %v3822 = vmul.f32 %v3755, %v3821
  %v3823 = vsub.f32 1.0, %v3822
  %v3824 = vmul.f32 %v3821, %v3823
  %v3825 = vadd.f32 %v3821, %v3824
  %vm3826 = vweird.f32 %v3755
  %vm3827 = vweird.f32 %v3821
  %vm3828 = vmor %vm3826, %vm3827
  %v3829 = vsel %vm3828, %v3821, %v3825
  %v3830 = vand.u32 2147483647, %v3755
  %vm3831 = vcmp.eq.f32.partialorder %v3830, 8.507059e+37
  %v3832 = vand.u32 %v3755, 2147483648
  %v3833 = vor.u32 1.1754944e-38, %v3832
  %v3834 = vsel %vm3831, %v3833, %v3829
  %v3835 = vrcp.pop %v3758
  %v3836 = vmul.f32 %v3758, %v3835
  %v3837 = vsub.f32 1.0, %v3836
  %v3838 = vmul.f32 %v3835, %v3837
  %v3839 = vadd.f32 %v3835, %v3838
  %vm3840 = vweird.f32 %v3758
  %vm3841 = vweird.f32 %v3835
  %vm3842 = vmor %vm3840, %vm3841
  %v3843 = vsel %vm3842, %v3835, %v3839
  %v3844 = vand.u32 2147483647, %v3758
  %vm3845 = vcmp.eq.f32.partialorder %v3844, 8.507059e+37
  %v3846 = vand.u32 %v3758, 2147483648
  %v3847 = vor.u32 1.1754944e-38, %v3846
  %v3848 = vsel %vm3845, %v3847, %v3843
  %v3849 = vrcp.pop %v3761
  %v3850 = vmul.f32 %v3761, %v3849
  %v3851 = vsub.f32 1.0, %v3850
  %v3852 = vmul.f32 %v3849, %v3851
  %v3853 = vadd.f32 %v3849, %v3852
  %vm3854 = vweird.f32 %v3761
  %vm3855 = vweird.f32 %v3849
  %vm3856 = vmor %vm3854, %vm3855
  %v3857 = vsel %vm3856, %v3849, %v3853
  %v3858 = vand.u32 2147483647, %v3761
  %vm3859 = vcmp.eq.f32.partialorder %v3858, 8.507059e+37
  %v3860 = vand.u32 %v3761, 2147483648
  %v3861 = vor.u32 1.1754944e-38, %v3860
  %v3862 = vsel %vm3859, %v3861, %v3857
  %v3863 = vrcp.pop %v3764
  %v3864 = vmul.f32 %v3764, %v3863
  %v3865 = vsub.f32 1.0, %v3864
  %v3866 = vmul.f32 %v3863, %v3865
  %v3867 = vadd.f32 %v3863, %v3866
  %vm3868 = vweird.f32 %v3764
  %vm3869 = vweird.f32 %v3863
  %vm3870 = vmor %vm3868, %vm3869
  %v3871 = vsel %vm3870, %v3863, %v3867
  %v3872 = vand.u32 2147483647, %v3764
  %vm3873 = vcmp.eq.f32.partialorder %v3872, 8.507059e+37
  %v3874 = vand.u32 %v3764, 2147483648
  %v3875 = vor.u32 1.1754944e-38, %v3874
  %v3876 = vsel %vm3873, %v3875, %v3871
  %v3877 = vmul.f32 %v3726, %v3778
  %v3878 = vmul.f32 %v3728, %v3792
  %v3879 = vmul.f32 %v3730, %v3806
  %v3880 = vmul.f32 %v3732, %v3820
  %v3881 = vmul.f32 %v3734, %v3834
  %v3882 = vmul.f32 %v3736, %v3848
  %v3883 = vmul.f32 %v3738, %v3862
  %v3884 = vmul.f32 %v3740, %v3876
  %3885 = vrot.lane.b32.xlu0 %v2785, 88
  %v3886 = vpop.permute.xlu0 %3885
  %v3889 = vsel %vm121, %v3877, 0
  %3891 = vmatpush.msra.mxu0 0.0
  %3892 = vmatpush.msra.mxu0 0.0
  %3893 = vmatpush.msra.mxu0 0.0
  %3894 = vmatpush.msra.mxu0 0.0
  %3895 = vmatpush.msra.mxu0 0.0
  %3896 = vmatpush.msra.mxu0 0.0
  %3897 = vmatpush.msra.mxu0 0.0
  %3898 = vmatpush.msra.mxu0 0.0
  %3899 = vmatpush.msra.mxu0 0.0
  %3900 = vmatpush.msra.mxu0 0.0
  %3901 = vmatpush.msra.mxu0 0.0
  %3902 = vmatpush.msra.mxu0 0.0
  %3903 = vmatpush.msra.mxu0 0.0
  %3904 = vmatpush.msra.mxu0 0.0
  %3905 = vmatpush.msra.mxu0 0.0
  %3906 = vmatpush.msra.mxu0 %v3886
  %3907 = vmatmul.f32.gmra.mxu0 %v3889
  %v3908 = vpop.f32.mrf.mxu0
  %v3909 = vadd.f32 0.0, %v3908
  %3910 = vdwg.mxu0
  %3911 = vrot.lane.b32.xlu0 %v2788, 88
  %v3912 = vpop.permute.xlu0 %3911
  %v3915 = vsel %vm121, %v3878, 0
  %3917 = vmatpush.msra.mxu0 0.0
  %3918 = vmatpush.msra.mxu0 0.0
  %3919 = vmatpush.msra.mxu0 0.0
  %3920 = vmatpush.msra.mxu0 0.0
  %3921 = vmatpush.msra.mxu0 0.0
  %3922 = vmatpush.msra.mxu0 0.0
  %3923 = vmatpush.msra.mxu0 0.0
  %3924 = vmatpush.msra.mxu0 0.0
  %3925 = vmatpush.msra.mxu0 0.0
  %3926 = vmatpush.msra.mxu0 0.0
  %3927 = vmatpush.msra.mxu0 0.0
  %3928 = vmatpush.msra.mxu0 0.0
  %3929 = vmatpush.msra.mxu0 0.0
  %3930 = vmatpush.msra.mxu0 0.0
  %3931 = vmatpush.msra.mxu0 0.0
  %3932 = vmatpush.msra.mxu0 %v3912
  %3933 = vmatmul.f32.gmra.mxu0 %v3915
  %v3934 = vpop.f32.mrf.mxu0
  %v3935 = vadd.f32 0.0, %v3934
  %3936 = vdwg.mxu0
  %3937 = vrot.lane.b32.xlu0 %v2791, 88
  %v3938 = vpop.permute.xlu0 %3937
  %v3941 = vsel %vm121, %v3879, 0
  %3943 = vmatpush.msra.mxu0 0.0
  %3944 = vmatpush.msra.mxu0 0.0
  %3945 = vmatpush.msra.mxu0 0.0
  %3946 = vmatpush.msra.mxu0 0.0
  %3947 = vmatpush.msra.mxu0 0.0
  %3948 = vmatpush.msra.mxu0 0.0
  %3949 = vmatpush.msra.mxu0 0.0
  %3950 = vmatpush.msra.mxu0 0.0
  %3951 = vmatpush.msra.mxu0 0.0
  %3952 = vmatpush.msra.mxu0 0.0
  %3953 = vmatpush.msra.mxu0 0.0
  %3954 = vmatpush.msra.mxu0 0.0
  %3955 = vmatpush.msra.mxu0 0.0
  %3956 = vmatpush.msra.mxu0 0.0
  %3957 = vmatpush.msra.mxu0 0.0
  %3958 = vmatpush.msra.mxu0 %v3938
  %3959 = vmatmul.f32.gmra.mxu0 %v3941
  %v3960 = vpop.f32.mrf.mxu0
  %v3961 = vadd.f32 0.0, %v3960
  %3962 = vdwg.mxu0
  %3963 = vrot.lane.b32.xlu0 %v2794, 88
  %v3964 = vpop.permute.xlu0 %3963
  %v3967 = vsel %vm121, %v3880, 0
  %3969 = vmatpush.msra.mxu0 0.0
  %3970 = vmatpush.msra.mxu0 0.0
  %3971 = vmatpush.msra.mxu0 0.0
  %3972 = vmatpush.msra.mxu0 0.0
  %3973 = vmatpush.msra.mxu0 0.0
  %3974 = vmatpush.msra.mxu0 0.0
  %3975 = vmatpush.msra.mxu0 0.0
  %3976 = vmatpush.msra.mxu0 0.0
  %3977 = vmatpush.msra.mxu0 0.0
  %3978 = vmatpush.msra.mxu0 0.0
  %3979 = vmatpush.msra.mxu0 0.0
  %3980 = vmatpush.msra.mxu0 0.0
  %3981 = vmatpush.msra.mxu0 0.0
  %3982 = vmatpush.msra.mxu0 0.0
  %3983 = vmatpush.msra.mxu0 0.0
  %3984 = vmatpush.msra.mxu0 %v3964
  %3985 = vmatmul.f32.gmra.mxu0 %v3967
  %v3986 = vpop.f32.mrf.mxu0
  %v3987 = vadd.f32 0.0, %v3986
  %3988 = vdwg.mxu0
  %3989 = vrot.lane.b32.xlu0 %v2797, 88
  %v3990 = vpop.permute.xlu0 %3989
  %v3993 = vsel %vm121, %v3881, 0
  %3995 = vmatpush.msra.mxu0 0.0
  %3996 = vmatpush.msra.mxu0 0.0
  %3997 = vmatpush.msra.mxu0 0.0
  %3998 = vmatpush.msra.mxu0 0.0
  %3999 = vmatpush.msra.mxu0 0.0
  %4000 = vmatpush.msra.mxu0 0.0
  %4001 = vmatpush.msra.mxu0 0.0
  %4002 = vmatpush.msra.mxu0 0.0
  %4003 = vmatpush.msra.mxu0 0.0
  %4004 = vmatpush.msra.mxu0 0.0
  %4005 = vmatpush.msra.mxu0 0.0
  %4006 = vmatpush.msra.mxu0 0.0
  %4007 = vmatpush.msra.mxu0 0.0
  %4008 = vmatpush.msra.mxu0 0.0
  %4009 = vmatpush.msra.mxu0 0.0
  %4010 = vmatpush.msra.mxu0 %v3990
  %4011 = vmatmul.f32.gmra.mxu0 %v3993
  %v4012 = vpop.f32.mrf.mxu0
  %v4013 = vadd.f32 0.0, %v4012
  %4014 = vdwg.mxu0
  %4015 = vrot.lane.b32.xlu0 %v2800, 88
  %v4016 = vpop.permute.xlu0 %4015
  %v4019 = vsel %vm121, %v3882, 0
  %4021 = vmatpush.msra.mxu0 0.0
  %4022 = vmatpush.msra.mxu0 0.0
  %4023 = vmatpush.msra.mxu0 0.0
  %4024 = vmatpush.msra.mxu0 0.0
  %4025 = vmatpush.msra.mxu0 0.0
  %4026 = vmatpush.msra.mxu0 0.0
  %4027 = vmatpush.msra.mxu0 0.0
  %4028 = vmatpush.msra.mxu0 0.0
  %4029 = vmatpush.msra.mxu0 0.0
  %4030 = vmatpush.msra.mxu0 0.0
  %4031 = vmatpush.msra.mxu0 0.0
  %4032 = vmatpush.msra.mxu0 0.0
  %4033 = vmatpush.msra.mxu0 0.0
  %4034 = vmatpush.msra.mxu0 0.0
  %4035 = vmatpush.msra.mxu0 0.0
  %4036 = vmatpush.msra.mxu0 %v4016
  %4037 = vmatmul.f32.gmra.mxu0 %v4019
  %v4038 = vpop.f32.mrf.mxu0
  %v4039 = vadd.f32 0.0, %v4038
  %4040 = vdwg.mxu0
  %4041 = vrot.lane.b32.xlu0 %v2803, 88
  %v4042 = vpop.permute.xlu0 %4041
  %v4045 = vsel %vm121, %v3883, 0
  %4047 = vmatpush.msra.mxu0 0.0
  %4048 = vmatpush.msra.mxu0 0.0
  %4049 = vmatpush.msra.mxu0 0.0
  %4050 = vmatpush.msra.mxu0 0.0
  %4051 = vmatpush.msra.mxu0 0.0
  %4052 = vmatpush.msra.mxu0 0.0
  %4053 = vmatpush.msra.mxu0 0.0
  %4054 = vmatpush.msra.mxu0 0.0
  %4055 = vmatpush.msra.mxu0 0.0
  %4056 = vmatpush.msra.mxu0 0.0
  %4057 = vmatpush.msra.mxu0 0.0
  %4058 = vmatpush.msra.mxu0 0.0
  %4059 = vmatpush.msra.mxu0 0.0
  %4060 = vmatpush.msra.mxu0 0.0
  %4061 = vmatpush.msra.mxu0 0.0
  %4062 = vmatpush.msra.mxu0 %v4042
  %4063 = vmatmul.f32.gmra.mxu0 %v4045
  %v4064 = vpop.f32.mrf.mxu0
  %v4065 = vadd.f32 0.0, %v4064
  %4066 = vdwg.mxu0
  %4067 = vrot.lane.b32.xlu0 %v2806, 88
  %v4068 = vpop.permute.xlu0 %4067
  %v4071 = vsel %vm121, %v3884, 0
  %4073 = vmatpush.msra.mxu0 0.0
  %4074 = vmatpush.msra.mxu0 0.0
  %4075 = vmatpush.msra.mxu0 0.0
  %4076 = vmatpush.msra.mxu0 0.0
  %4077 = vmatpush.msra.mxu0 0.0
  %4078 = vmatpush.msra.mxu0 0.0
  %4079 = vmatpush.msra.mxu0 0.0
  %4080 = vmatpush.msra.mxu0 0.0
  %4081 = vmatpush.msra.mxu0 0.0
  %4082 = vmatpush.msra.mxu0 0.0
  %4083 = vmatpush.msra.mxu0 0.0
  %4084 = vmatpush.msra.mxu0 0.0
  %4085 = vmatpush.msra.mxu0 0.0
  %4086 = vmatpush.msra.mxu0 0.0
  %4087 = vmatpush.msra.mxu0 0.0
  %4088 = vmatpush.msra.mxu0 %v4068
  %4089 = vmatmul.f32.gmra.mxu0 %v4071
  %v4090 = vpop.f32.mrf.mxu0
  %v4091 = vadd.f32 0.0, %v4090
  %4092 = vdwg.mxu0
  %4101 = vrot.lane.b32.xlu0 %v3909, 72
  %v4102 = vpop.permute.xlu0 %4101
  %4103 = vrot.lane.b32.xlu0 %v3935, 72
  %v4104 = vpop.permute.xlu0 %4103
  %4105 = vrot.lane.b32.xlu0 %v3961, 72
  %v4106 = vpop.permute.xlu0 %4105
  %4107 = vrot.lane.b32.xlu0 %v3987, 72
  %v4108 = vpop.permute.xlu0 %4107
  %4109 = vrot.lane.b32.xlu0 %v4013, 72
  %v4110 = vpop.permute.xlu0 %4109
  %4111 = vrot.lane.b32.xlu0 %v4039, 72
  %v4112 = vpop.permute.xlu0 %4111
  %4113 = vrot.lane.b32.xlu0 %v4065, 72
  %v4114 = vpop.permute.xlu0 %4113
  %4115 = vrot.lane.b32.xlu0 %v4091, 72
  %v4116 = vpop.permute.xlu0 %4115
  %v4125 = vadd.f32 %v92, %v4102
  %v4126 = vadd.f32 %v95, %v4104
  %v4127 = vadd.f32 %v98, %v4106
  %v4128 = vadd.f32 %v101, %v4108
  %v4129 = vadd.f32 %v104, %v4110
  %v4130 = vadd.f32 %v107, %v4112
  %v4131 = vadd.f32 %v110, %v4114
  %v4132 = vadd.f32 %v113, %v4116
  %4133 = vrot.lane.b32.xlu0 %v92, 48
  %v4134 = vpop.permute.xlu0 %4133
  %4135 = vrot.lane.b32.xlu0 %v2785, 112
  %v4136 = vpop.permute.xlu0 %4135
  %v4137 = vsel %vm121, %v4134, 0
  %v4139 = vsel %vm121, %v4136, 0
  %4141 = vmatpush.xpose.msra.mxu0 0.0
  %4142 = vmatpush.xpose.msra.mxu0 0.0
  %4143 = vmatpush.xpose.msra.mxu0 0.0
  %4144 = vmatpush.xpose.msra.mxu0 0.0
  %4145 = vmatpush.xpose.msra.mxu0 0.0
  %4146 = vmatpush.xpose.msra.mxu0 0.0
  %4147 = vmatpush.xpose.msra.mxu0 0.0
  %4148 = vmatpush.xpose.msra.mxu0 0.0
  %4149 = vmatpush.xpose.msra.mxu0 0.0
  %4150 = vmatpush.xpose.msra.mxu0 0.0
  %4151 = vmatpush.xpose.msra.mxu0 0.0
  %4152 = vmatpush.xpose.msra.mxu0 0.0
  %4153 = vmatpush.xpose.msra.mxu0 0.0
  %4154 = vmatpush.xpose.msra.mxu0 0.0
  %4155 = vmatpush.xpose.msra.mxu0 0.0
  %4156 = vmatpush.xpose.msra.mxu0 %v4139
  %4157 = vmatmul.f32.gmra.mxu0 %v4137
  %v4158 = vpop.f32.mrf.mxu0
  %v4159 = vadd.f32 0.0, %v4158
  %4160 = vdwg.mxu0
  %4161 = vrot.lane.b32.xlu0 %v95, 48
  %v4162 = vpop.permute.xlu0 %4161
  %4163 = vrot.lane.b32.xlu0 %v2788, 112
  %v4164 = vpop.permute.xlu0 %4163
  %v4165 = vsel %vm121, %v4162, 0
  %v4167 = vsel %vm121, %v4164, 0
  %4169 = vmatpush.xpose.msra.mxu0 0.0
  %4170 = vmatpush.xpose.msra.mxu0 0.0
  %4171 = vmatpush.xpose.msra.mxu0 0.0
  %4172 = vmatpush.xpose.msra.mxu0 0.0
  %4173 = vmatpush.xpose.msra.mxu0 0.0
  %4174 = vmatpush.xpose.msra.mxu0 0.0
  %4175 = vmatpush.xpose.msra.mxu0 0.0
  %4176 = vmatpush.xpose.msra.mxu0 0.0
  %4177 = vmatpush.xpose.msra.mxu0 0.0
  %4178 = vmatpush.xpose.msra.mxu0 0.0
  %4179 = vmatpush.xpose.msra.mxu0 0.0
  %4180 = vmatpush.xpose.msra.mxu0 0.0
  %4181 = vmatpush.xpose.msra.mxu0 0.0
  %4182 = vmatpush.xpose.msra.mxu0 0.0
  %4183 = vmatpush.xpose.msra.mxu0 0.0
  %4184 = vmatpush.xpose.msra.mxu0 %v4167
  %4185 = vmatmul.f32.gmra.mxu0 %v4165
  %v4186 = vpop.f32.mrf.mxu0
  %v4187 = vadd.f32 0.0, %v4186
  %4188 = vdwg.mxu0
  %4189 = vrot.lane.b32.xlu0 %v98, 48
  %v4190 = vpop.permute.xlu0 %4189
  %4191 = vrot.lane.b32.xlu0 %v2791, 112
  %v4192 = vpop.permute.xlu0 %4191
  %v4193 = vsel %vm121, %v4190, 0
  %v4195 = vsel %vm121, %v4192, 0
  %4197 = vmatpush.xpose.msra.mxu0 0.0
  %4198 = vmatpush.xpose.msra.mxu0 0.0
  %4199 = vmatpush.xpose.msra.mxu0 0.0
  %4200 = vmatpush.xpose.msra.mxu0 0.0
  %4201 = vmatpush.xpose.msra.mxu0 0.0
  %4202 = vmatpush.xpose.msra.mxu0 0.0
  %4203 = vmatpush.xpose.msra.mxu0 0.0
  %4204 = vmatpush.xpose.msra.mxu0 0.0
  %4205 = vmatpush.xpose.msra.mxu0 0.0
  %4206 = vmatpush.xpose.msra.mxu0 0.0
  %4207 = vmatpush.xpose.msra.mxu0 0.0
  %4208 = vmatpush.xpose.msra.mxu0 0.0
  %4209 = vmatpush.xpose.msra.mxu0 0.0
  %4210 = vmatpush.xpose.msra.mxu0 0.0
  %4211 = vmatpush.xpose.msra.mxu0 0.0
  %4212 = vmatpush.xpose.msra.mxu0 %v4195
  %4213 = vmatmul.f32.gmra.mxu0 %v4193
  %v4214 = vpop.f32.mrf.mxu0
  %v4215 = vadd.f32 0.0, %v4214
  %4216 = vdwg.mxu0
  %4217 = vrot.lane.b32.xlu0 %v101, 48
  %v4218 = vpop.permute.xlu0 %4217
  %4219 = vrot.lane.b32.xlu0 %v2794, 112
  %v4220 = vpop.permute.xlu0 %4219
  %v4221 = vsel %vm121, %v4218, 0
  %v4223 = vsel %vm121, %v4220, 0
  %4225 = vmatpush.xpose.msra.mxu0 0.0
  %4226 = vmatpush.xpose.msra.mxu0 0.0
  %4227 = vmatpush.xpose.msra.mxu0 0.0
  %4228 = vmatpush.xpose.msra.mxu0 0.0
  %4229 = vmatpush.xpose.msra.mxu0 0.0
  %4230 = vmatpush.xpose.msra.mxu0 0.0
  %4231 = vmatpush.xpose.msra.mxu0 0.0
  %4232 = vmatpush.xpose.msra.mxu0 0.0
  %4233 = vmatpush.xpose.msra.mxu0 0.0
  %4234 = vmatpush.xpose.msra.mxu0 0.0
  %4235 = vmatpush.xpose.msra.mxu0 0.0
  %4236 = vmatpush.xpose.msra.mxu0 0.0
  %4237 = vmatpush.xpose.msra.mxu0 0.0
  %4238 = vmatpush.xpose.msra.mxu0 0.0
  %4239 = vmatpush.xpose.msra.mxu0 0.0
  %4240 = vmatpush.xpose.msra.mxu0 %v4223
  %4241 = vmatmul.f32.gmra.mxu0 %v4221
  %v4242 = vpop.f32.mrf.mxu0
  %v4243 = vadd.f32 0.0, %v4242
  %4244 = vdwg.mxu0
  %4245 = vrot.lane.b32.xlu0 %v104, 48
  %v4246 = vpop.permute.xlu0 %4245
  %4247 = vrot.lane.b32.xlu0 %v2797, 112
  %v4248 = vpop.permute.xlu0 %4247
  %v4249 = vsel %vm121, %v4246, 0
  %v4251 = vsel %vm121, %v4248, 0
  %4253 = vmatpush.xpose.msra.mxu0 0.0
  %4254 = vmatpush.xpose.msra.mxu0 0.0
  %4255 = vmatpush.xpose.msra.mxu0 0.0
  %4256 = vmatpush.xpose.msra.mxu0 0.0
  %4257 = vmatpush.xpose.msra.mxu0 0.0
  %4258 = vmatpush.xpose.msra.mxu0 0.0
  %4259 = vmatpush.xpose.msra.mxu0 0.0
  %4260 = vmatpush.xpose.msra.mxu0 0.0
  %4261 = vmatpush.xpose.msra.mxu0 0.0
  %4262 = vmatpush.xpose.msra.mxu0 0.0
  %4263 = vmatpush.xpose.msra.mxu0 0.0
  %4264 = vmatpush.xpose.msra.mxu0 0.0
  %4265 = vmatpush.xpose.msra.mxu0 0.0
  %4266 = vmatpush.xpose.msra.mxu0 0.0
  %4267 = vmatpush.xpose.msra.mxu0 0.0
  %4268 = vmatpush.xpose.msra.mxu0 %v4251
  %4269 = vmatmul.f32.gmra.mxu0 %v4249
  %v4270 = vpop.f32.mrf.mxu0
  %v4271 = vadd.f32 0.0, %v4270
  %4272 = vdwg.mxu0
  %4273 = vrot.lane.b32.xlu0 %v107, 48
  %v4274 = vpop.permute.xlu0 %4273
  %4275 = vrot.lane.b32.xlu0 %v2800, 112
  %v4276 = vpop.permute.xlu0 %4275
  %v4277 = vsel %vm121, %v4274, 0
  %v4279 = vsel %vm121, %v4276, 0
  %4281 = vmatpush.xpose.msra.mxu0 0.0
  %4282 = vmatpush.xpose.msra.mxu0 0.0
  %4283 = vmatpush.xpose.msra.mxu0 0.0
  %4284 = vmatpush.xpose.msra.mxu0 0.0
  %4285 = vmatpush.xpose.msra.mxu0 0.0
  %4286 = vmatpush.xpose.msra.mxu0 0.0
  %4287 = vmatpush.xpose.msra.mxu0 0.0
  %4288 = vmatpush.xpose.msra.mxu0 0.0
  %4289 = vmatpush.xpose.msra.mxu0 0.0
  %4290 = vmatpush.xpose.msra.mxu0 0.0
  %4291 = vmatpush.xpose.msra.mxu0 0.0
  %4292 = vmatpush.xpose.msra.mxu0 0.0
  %4293 = vmatpush.xpose.msra.mxu0 0.0
  %4294 = vmatpush.xpose.msra.mxu0 0.0
  %4295 = vmatpush.xpose.msra.mxu0 0.0
  %4296 = vmatpush.xpose.msra.mxu0 %v4279
  %4297 = vmatmul.f32.gmra.mxu0 %v4277
  %v4298 = vpop.f32.mrf.mxu0
  %v4299 = vadd.f32 0.0, %v4298
  %4300 = vdwg.mxu0
  %4301 = vrot.lane.b32.xlu0 %v110, 48
  %v4302 = vpop.permute.xlu0 %4301
  %4303 = vrot.lane.b32.xlu0 %v2803, 112
  %v4304 = vpop.permute.xlu0 %4303
  %v4305 = vsel %vm121, %v4302, 0
  %v4307 = vsel %vm121, %v4304, 0
  %4309 = vmatpush.xpose.msra.mxu0 0.0
  %4310 = vmatpush.xpose.msra.mxu0 0.0
  %4311 = vmatpush.xpose.msra.mxu0 0.0
  %4312 = vmatpush.xpose.msra.mxu0 0.0
  %4313 = vmatpush.xpose.msra.mxu0 0.0
  %4314 = vmatpush.xpose.msra.mxu0 0.0
  %4315 = vmatpush.xpose.msra.mxu0 0.0
  %4316 = vmatpush.xpose.msra.mxu0 0.0
  %4317 = vmatpush.xpose.msra.mxu0 0.0
  %4318 = vmatpush.xpose.msra.mxu0 0.0
  %4319 = vmatpush.xpose.msra.mxu0 0.0
  %4320 = vmatpush.xpose.msra.mxu0 0.0
  %4321 = vmatpush.xpose.msra.mxu0 0.0
  %4322 = vmatpush.xpose.msra.mxu0 0.0
  %4323 = vmatpush.xpose.msra.mxu0 0.0
  %4324 = vmatpush.xpose.msra.mxu0 %v4307
  %4325 = vmatmul.f32.gmra.mxu0 %v4305
  %v4326 = vpop.f32.mrf.mxu0
  %v4327 = vadd.f32 0.0, %v4326
  %4328 = vdwg.mxu0
  %4329 = vrot.lane.b32.xlu0 %v113, 48
  %v4330 = vpop.permute.xlu0 %4329
  %4331 = vrot.lane.b32.xlu0 %v2806, 112
  %v4332 = vpop.permute.xlu0 %4331
  %v4333 = vsel %vm121, %v4330, 0
  %v4335 = vsel %vm121, %v4332, 0
  %4337 = vmatpush.xpose.msra.mxu0 0.0
  %4338 = vmatpush.xpose.msra.mxu0 0.0
  %4339 = vmatpush.xpose.msra.mxu0 0.0
  %4340 = vmatpush.xpose.msra.mxu0 0.0
  %4341 = vmatpush.xpose.msra.mxu0 0.0
  %4342 = vmatpush.xpose.msra.mxu0 0.0
  %4343 = vmatpush.xpose.msra.mxu0 0.0
  %4344 = vmatpush.xpose.msra.mxu0 0.0
  %4345 = vmatpush.xpose.msra.mxu0 0.0
  %4346 = vmatpush.xpose.msra.mxu0 0.0
  %4347 = vmatpush.xpose.msra.mxu0 0.0
  %4348 = vmatpush.xpose.msra.mxu0 0.0
  %4349 = vmatpush.xpose.msra.mxu0 0.0
  %4350 = vmatpush.xpose.msra.mxu0 0.0
  %4351 = vmatpush.xpose.msra.mxu0 0.0
  %4352 = vmatpush.xpose.msra.mxu0 %v4335
  %4353 = vmatmul.f32.gmra.mxu0 %v4333
  %v4354 = vpop.f32.mrf.mxu0
  %v4355 = vadd.f32 0.0, %v4354
  %4356 = vdwg.mxu0
  %v4357 = vsel %vm121, %v4159, -inf
  %4358 = vmax.xlane.f32.xlu0 %v4357
  %v4359 = vpop.xlane.xlu0 %4358
  %v4360 = vsel %vm121, %v4187, -inf
  %4361 = vmax.xlane.f32.xlu0 %v4360
  %v4362 = vpop.xlane.xlu0 %4361
  %v4363 = vsel %vm121, %v4215, -inf
  %4364 = vmax.xlane.f32.xlu0 %v4363
  %v4365 = vpop.xlane.xlu0 %4364
  %v4366 = vsel %vm121, %v4243, -inf
  %4367 = vmax.xlane.f32.xlu0 %v4366
  %v4368 = vpop.xlane.xlu0 %4367
  %v4369 = vsel %vm121, %v4271, -inf
  %4370 = vmax.xlane.f32.xlu0 %v4369
  %v4371 = vpop.xlane.xlu0 %4370
  %v4372 = vsel %vm121, %v4299, -inf
  %4373 = vmax.xlane.f32.xlu0 %v4372
  %v4374 = vpop.xlane.xlu0 %4373
  %v4375 = vsel %vm121, %v4327, -inf
  %4376 = vmax.xlane.f32.xlu0 %v4375
  %v4377 = vpop.xlane.xlu0 %4376
  %v4378 = vsel %vm121, %v4355, -inf
  %4379 = vmax.xlane.f32.xlu0 %v4378
  %v4380 = vpop.xlane.xlu0 %4379
  %v4381 = vsub.f32 %v4159, %v4359
  %v4382 = vsub.f32 %v4187, %v4362
  %v4383 = vsub.f32 %v4215, %v4365
  %v4384 = vsub.f32 %v4243, %v4368
  %v4385 = vsub.f32 %v4271, %v4371
  %v4386 = vsub.f32 %v4299, %v4374
  %v4387 = vsub.f32 %v4327, %v4377
  %v4388 = vsub.f32 %v4355, %v4380
  %v4389 = vmul.f32 %v4381, 1.442695
  %v4390 = vpow.pop %v4389
  %v4391 = vmul.f32 %v4382, 1.442695
  %v4392 = vpow.pop %v4391
  %v4393 = vmul.f32 %v4383, 1.442695
  %v4394 = vpow.pop %v4393
  %v4395 = vmul.f32 %v4384, 1.442695
  %v4396 = vpow.pop %v4395
  %v4397 = vmul.f32 %v4385, 1.442695
  %v4398 = vpow.pop %v4397
  %v4399 = vmul.f32 %v4386, 1.442695
  %v4400 = vpow.pop %v4399
  %v4401 = vmul.f32 %v4387, 1.442695
  %v4402 = vpow.pop %v4401
  %v4403 = vmul.f32 %v4388, 1.442695
  %v4404 = vpow.pop %v4403
  %v4405 = vsel %vm121, %v4390, 0.0
  %4406 = vadd.xlane.f32.xlu0 %v4405
  %v4407 = vpop.xlane.xlu0 %4406
  %v4408 = vsel %vm121, %v4392, 0.0
  %4409 = vadd.xlane.f32.xlu0 %v4408
  %v4410 = vpop.xlane.xlu0 %4409
  %v4411 = vsel %vm121, %v4394, 0.0
  %4412 = vadd.xlane.f32.xlu0 %v4411
  %v4413 = vpop.xlane.xlu0 %4412
  %v4414 = vsel %vm121, %v4396, 0.0
  %4415 = vadd.xlane.f32.xlu0 %v4414
  %v4416 = vpop.xlane.xlu0 %4415
  %v4417 = vsel %vm121, %v4398, 0.0
  %4418 = vadd.xlane.f32.xlu0 %v4417
  %v4419 = vpop.xlane.xlu0 %4418
  %v4420 = vsel %vm121, %v4400, 0.0
  %4421 = vadd.xlane.f32.xlu0 %v4420
  %v4422 = vpop.xlane.xlu0 %4421
  %v4423 = vsel %vm121, %v4402, 0.0
  %4424 = vadd.xlane.f32.xlu0 %v4423
  %v4425 = vpop.xlane.xlu0 %4424
  %v4426 = vsel %vm121, %v4404, 0.0
  %4427 = vadd.xlane.f32.xlu0 %v4426
  %v4428 = vpop.xlane.xlu0 %4427
  %v4429 = vrcp.pop %v4407
  %v4430 = vmul.f32 %v4407, %v4429
  %v4431 = vsub.f32 1.0, %v4430
  %v4432 = vmul.f32 %v4429, %v4431
  %v4433 = vadd.f32 %v4429, %v4432
  %vm4434 = vweird.f32 %v4407
  %vm4435 = vweird.f32 %v4429
  %vm4436 = vmor %vm4434, %vm4435
  %v4437 = vsel %vm4436, %v4429, %v4433
  %v4438 = vand.u32 2147483647, %v4407
  %vm4439 = vcmp.eq.f32.partialorder %v4438, 8.507059e+37
  %v4440 = vand.u32 %v4407, 2147483648
  %v4441 = vor.u32 1.1754944e-38, %v4440
  %v4442 = vsel %vm4439, %v4441, %v4437
  %v4443 = vrcp.pop %v4410
  %v4444 = vmul.f32 %v4410, %v4443
  %v4445 = vsub.f32 1.0, %v4444
  %v4446 = vmul.f32 %v4443, %v4445
  %v4447 = vadd.f32 %v4443, %v4446
  %vm4448 = vweird.f32 %v4410
  %vm4449 = vweird.f32 %v4443
  %vm4450 = vmor %vm4448, %vm4449
  %v4451 = vsel %vm4450, %v4443, %v4447
  %v4452 = vand.u32 2147483647, %v4410
  %vm4453 = vcmp.eq.f32.partialorder %v4452, 8.507059e+37
  %v4454 = vand.u32 %v4410, 2147483648
  %v4455 = vor.u32 1.1754944e-38, %v4454
  %v4456 = vsel %vm4453, %v4455, %v4451
  %v4457 = vrcp.pop %v4413
  %v4458 = vmul.f32 %v4413, %v4457
  %v4459 = vsub.f32 1.0, %v4458
  %v4460 = vmul.f32 %v4457, %v4459
  %v4461 = vadd.f32 %v4457, %v4460
  %vm4462 = vweird.f32 %v4413
  %vm4463 = vweird.f32 %v4457
  %vm4464 = vmor %vm4462, %vm4463
  %v4465 = vsel %vm4464, %v4457, %v4461
  %v4466 = vand.u32 2147483647, %v4413
  %vm4467 = vcmp.eq.f32.partialorder %v4466, 8.507059e+37
  %v4468 = vand.u32 %v4413, 2147483648
  %v4469 = vor.u32 1.1754944e-38, %v4468
  %v4470 = vsel %vm4467, %v4469, %v4465
  %v4471 = vrcp.pop %v4416
  %v4472 = vmul.f32 %v4416, %v4471
  %v4473 = vsub.f32 1.0, %v4472
  %v4474 = vmul.f32 %v4471, %v4473
  %v4475 = vadd.f32 %v4471, %v4474
  %vm4476 = vweird.f32 %v4416
  %vm4477 = vweird.f32 %v4471
  %vm4478 = vmor %vm4476, %vm4477
  %v4479 = vsel %vm4478, %v4471, %v4475
  %v4480 = vand.u32 2147483647, %v4416
  %vm4481 = vcmp.eq.f32.partialorder %v4480, 8.507059e+37
  %v4482 = vand.u32 %v4416, 2147483648
  %v4483 = vor.u32 1.1754944e-38, %v4482
  %v4484 = vsel %vm4481, %v4483, %v4479
  %v4485 = vrcp.pop %v4419
  %v4486 = vmul.f32 %v4419, %v4485
  %v4487 = vsub.f32 1.0, %v4486
  %v4488 = vmul.f32 %v4485, %v4487
  %v4489 = vadd.f32 %v4485, %v4488
  %vm4490 = vweird.f32 %v4419
  %vm4491 = vweird.f32 %v4485
  %vm4492 = vmor %vm4490, %vm4491
  %v4493 = vsel %vm4492, %v4485, %v4489
  %v4494 = vand.u32 2147483647, %v4419
  %vm4495 = vcmp.eq.f32.partialorder %v4494, 8.507059e+37
  %v4496 = vand.u32 %v4419, 2147483648
  %v4497 = vor.u32 1.1754944e-38, %v4496
  %v4498 = vsel %vm4495, %v4497, %v4493
  %v4499 = vrcp.pop %v4422
  %v4500 = vmul.f32 %v4422, %v4499
  %v4501 = vsub.f32 1.0, %v4500
  %v4502 = vmul.f32 %v4499, %v4501
  %v4503 = vadd.f32 %v4499, %v4502
  %vm4504 = vweird.f32 %v4422
  %vm4505 = vweird.f32 %v4499
  %vm4506 = vmor %vm4504, %vm4505
  %v4507 = vsel %vm4506, %v4499, %v4503
  %v4508 = vand.u32 2147483647, %v4422
  %vm4509 = vcmp.eq.f32.partialorder %v4508, 8.507059e+37
  %v4510 = vand.u32 %v4422, 2147483648
  %v4511 = vor.u32 1.1754944e-38, %v4510
  %v4512 = vsel %vm4509, %v4511, %v4507
  %v4513 = vrcp.pop %v4425
  %v4514 = vmul.f32 %v4425, %v4513
  %v4515 = vsub.f32 1.0, %v4514
  %v4516 = vmul.f32 %v4513, %v4515
  %v4517 = vadd.f32 %v4513, %v4516
  %vm4518 = vweird.f32 %v4425
  %vm4519 = vweird.f32 %v4513
  %vm4520 = vmor %vm4518, %vm4519
  %v4521 = vsel %vm4520, %v4513, %v4517
  %v4522 = vand.u32 2147483647, %v4425
  %vm4523 = vcmp.eq.f32.partialorder %v4522, 8.507059e+37
  %v4524 = vand.u32 %v4425, 2147483648
  %v4525 = vor.u32 1.1754944e-38, %v4524
  %v4526 = vsel %vm4523, %v4525, %v4521
  %v4527 = vrcp.pop %v4428
  %v4528 = vmul.f32 %v4428, %v4527
  %v4529 = vsub.f32 1.0, %v4528
  %v4530 = vmul.f32 %v4527, %v4529
  %v4531 = vadd.f32 %v4527, %v4530
  %vm4532 = vweird.f32 %v4428
  %vm4533 = vweird.f32 %v4527
  %vm4534 = vmor %vm4532, %vm4533
  %v4535 = vsel %vm4534, %v4527, %v4531
  %v4536 = vand.u32 2147483647, %v4428
  %vm4537 = vcmp.eq.f32.partialorder %v4536, 8.507059e+37
  %v4538 = vand.u32 %v4428, 2147483648
  %v4539 = vor.u32 1.1754944e-38, %v4538
  %v4540 = vsel %vm4537, %v4539, %v4535
  %v4541 = vmul.f32 %v4390, %v4442
  %v4542 = vmul.f32 %v4392, %v4456
  %v4543 = vmul.f32 %v4394, %v4470
  %v4544 = vmul.f32 %v4396, %v4484
  %v4545 = vmul.f32 %v4398, %v4498
  %v4546 = vmul.f32 %v4400, %v4512
  %v4547 = vmul.f32 %v4402, %v4526
  %v4548 = vmul.f32 %v4404, %v4540
  %4549 = vrot.lane.b32.xlu0 %v2785, 80
  %v4550 = vpop.permute.xlu0 %4549
  %v4553 = vsel %vm121, %v4541, 0
  %4555 = vmatpush.msra.mxu0 0.0
  %4556 = vmatpush.msra.mxu0 0.0
  %4557 = vmatpush.msra.mxu0 0.0
  %4558 = vmatpush.msra.mxu0 0.0
  %4559 = vmatpush.msra.mxu0 0.0
  %4560 = vmatpush.msra.mxu0 0.0
  %4561 = vmatpush.msra.mxu0 0.0
  %4562 = vmatpush.msra.mxu0 0.0
  %4563 = vmatpush.msra.mxu0 0.0
  %4564 = vmatpush.msra.mxu0 0.0
  %4565 = vmatpush.msra.mxu0 0.0
  %4566 = vmatpush.msra.mxu0 0.0
  %4567 = vmatpush.msra.mxu0 0.0
  %4568 = vmatpush.msra.mxu0 0.0
  %4569 = vmatpush.msra.mxu0 0.0
  %4570 = vmatpush.msra.mxu0 %v4550
  %4571 = vmatmul.f32.gmra.mxu0 %v4553
  %v4572 = vpop.f32.mrf.mxu0
  %v4573 = vadd.f32 0.0, %v4572
  %4574 = vdwg.mxu0
  %4575 = vrot.lane.b32.xlu0 %v2788, 80
  %v4576 = vpop.permute.xlu0 %4575
  %v4579 = vsel %vm121, %v4542, 0
  %4581 = vmatpush.msra.mxu0 0.0
  %4582 = vmatpush.msra.mxu0 0.0
  %4583 = vmatpush.msra.mxu0 0.0
  %4584 = vmatpush.msra.mxu0 0.0
  %4585 = vmatpush.msra.mxu0 0.0
  %4586 = vmatpush.msra.mxu0 0.0
  %4587 = vmatpush.msra.mxu0 0.0
  %4588 = vmatpush.msra.mxu0 0.0
  %4589 = vmatpush.msra.mxu0 0.0
  %4590 = vmatpush.msra.mxu0 0.0
  %4591 = vmatpush.msra.mxu0 0.0
  %4592 = vmatpush.msra.mxu0 0.0
  %4593 = vmatpush.msra.mxu0 0.0
  %4594 = vmatpush.msra.mxu0 0.0
  %4595 = vmatpush.msra.mxu0 0.0
  %4596 = vmatpush.msra.mxu0 %v4576
  %4597 = vmatmul.f32.gmra.mxu0 %v4579
  %v4598 = vpop.f32.mrf.mxu0
  %v4599 = vadd.f32 0.0, %v4598
  %4600 = vdwg.mxu0
  %4601 = vrot.lane.b32.xlu0 %v2791, 80
  %v4602 = vpop.permute.xlu0 %4601
  %v4605 = vsel %vm121, %v4543, 0
  %4607 = vmatpush.msra.mxu0 0.0
  %4608 = vmatpush.msra.mxu0 0.0
  %4609 = vmatpush.msra.mxu0 0.0
  %4610 = vmatpush.msra.mxu0 0.0
  %4611 = vmatpush.msra.mxu0 0.0
  %4612 = vmatpush.msra.mxu0 0.0
  %4613 = vmatpush.msra.mxu0 0.0
  %4614 = vmatpush.msra.mxu0 0.0
  %4615 = vmatpush.msra.mxu0 0.0
  %4616 = vmatpush.msra.mxu0 0.0
  %4617 = vmatpush.msra.mxu0 0.0
  %4618 = vmatpush.msra.mxu0 0.0
  %4619 = vmatpush.msra.mxu0 0.0
  %4620 = vmatpush.msra.mxu0 0.0
  %4621 = vmatpush.msra.mxu0 0.0
  %4622 = vmatpush.msra.mxu0 %v4602
  %4623 = vmatmul.f32.gmra.mxu0 %v4605
  %v4624 = vpop.f32.mrf.mxu0
  %v4625 = vadd.f32 0.0, %v4624
  %4626 = vdwg.mxu0
  %4627 = vrot.lane.b32.xlu0 %v2794, 80
  %v4628 = vpop.permute.xlu0 %4627
  %v4631 = vsel %vm121, %v4544, 0
  %4633 = vmatpush.msra.mxu0 0.0
  %4634 = vmatpush.msra.mxu0 0.0
  %4635 = vmatpush.msra.mxu0 0.0
  %4636 = vmatpush.msra.mxu0 0.0
  %4637 = vmatpush.msra.mxu0 0.0
  %4638 = vmatpush.msra.mxu0 0.0
  %4639 = vmatpush.msra.mxu0 0.0
  %4640 = vmatpush.msra.mxu0 0.0
  %4641 = vmatpush.msra.mxu0 0.0
  %4642 = vmatpush.msra.mxu0 0.0
  %4643 = vmatpush.msra.mxu0 0.0
  %4644 = vmatpush.msra.mxu0 0.0
  %4645 = vmatpush.msra.mxu0 0.0
  %4646 = vmatpush.msra.mxu0 0.0
  %4647 = vmatpush.msra.mxu0 0.0
  %4648 = vmatpush.msra.mxu0 %v4628
  %4649 = vmatmul.f32.gmra.mxu0 %v4631
  %v4650 = vpop.f32.mrf.mxu0
  %v4651 = vadd.f32 0.0, %v4650
  %4652 = vdwg.mxu0
  %4653 = vrot.lane.b32.xlu0 %v2797, 80
  %v4654 = vpop.permute.xlu0 %4653
  %v4657 = vsel %vm121, %v4545, 0
  %4659 = vmatpush.msra.mxu0 0.0
  %4660 = vmatpush.msra.mxu0 0.0
  %4661 = vmatpush.msra.mxu0 0.0
  %4662 = vmatpush.msra.mxu0 0.0
  %4663 = vmatpush.msra.mxu0 0.0
  %4664 = vmatpush.msra.mxu0 0.0
  %4665 = vmatpush.msra.mxu0 0.0
  %4666 = vmatpush.msra.mxu0 0.0
  %4667 = vmatpush.msra.mxu0 0.0
  %4668 = vmatpush.msra.mxu0 0.0
  %4669 = vmatpush.msra.mxu0 0.0
  %4670 = vmatpush.msra.mxu0 0.0
  %4671 = vmatpush.msra.mxu0 0.0
  %4672 = vmatpush.msra.mxu0 0.0
  %4673 = vmatpush.msra.mxu0 0.0
  %4674 = vmatpush.msra.mxu0 %v4654
  %4675 = vmatmul.f32.gmra.mxu0 %v4657
  %v4676 = vpop.f32.mrf.mxu0
  %v4677 = vadd.f32 0.0, %v4676
  %4678 = vdwg.mxu0
  %4679 = vrot.lane.b32.xlu0 %v2800, 80
  %v4680 = vpop.permute.xlu0 %4679
  %v4683 = vsel %vm121, %v4546, 0
  %4685 = vmatpush.msra.mxu0 0.0
  %4686 = vmatpush.msra.mxu0 0.0
  %4687 = vmatpush.msra.mxu0 0.0
  %4688 = vmatpush.msra.mxu0 0.0
  %4689 = vmatpush.msra.mxu0 0.0
  %4690 = vmatpush.msra.mxu0 0.0
  %4691 = vmatpush.msra.mxu0 0.0
  %4692 = vmatpush.msra.mxu0 0.0
  %4693 = vmatpush.msra.mxu0 0.0
  %4694 = vmatpush.msra.mxu0 0.0
  %4695 = vmatpush.msra.mxu0 0.0
  %4696 = vmatpush.msra.mxu0 0.0
  %4697 = vmatpush.msra.mxu0 0.0
  %4698 = vmatpush.msra.mxu0 0.0
  %4699 = vmatpush.msra.mxu0 0.0
  %4700 = vmatpush.msra.mxu0 %v4680
  %4701 = vmatmul.f32.gmra.mxu0 %v4683
  %v4702 = vpop.f32.mrf.mxu0
  %v4703 = vadd.f32 0.0, %v4702
  %4704 = vdwg.mxu0
  %4705 = vrot.lane.b32.xlu0 %v2803, 80
  %v4706 = vpop.permute.xlu0 %4705
  %v4709 = vsel %vm121, %v4547, 0
  %4711 = vmatpush.msra.mxu0 0.0
  %4712 = vmatpush.msra.mxu0 0.0
  %4713 = vmatpush.msra.mxu0 0.0
  %4714 = vmatpush.msra.mxu0 0.0
  %4715 = vmatpush.msra.mxu0 0.0
  %4716 = vmatpush.msra.mxu0 0.0
  %4717 = vmatpush.msra.mxu0 0.0
  %4718 = vmatpush.msra.mxu0 0.0
  %4719 = vmatpush.msra.mxu0 0.0
  %4720 = vmatpush.msra.mxu0 0.0
  %4721 = vmatpush.msra.mxu0 0.0
  %4722 = vmatpush.msra.mxu0 0.0
  %4723 = vmatpush.msra.mxu0 0.0
  %4724 = vmatpush.msra.mxu0 0.0
  %4725 = vmatpush.msra.mxu0 0.0
  %4726 = vmatpush.msra.mxu0 %v4706
  %4727 = vmatmul.f32.gmra.mxu0 %v4709
  %v4728 = vpop.f32.mrf.mxu0
  %v4729 = vadd.f32 0.0, %v4728
  %4730 = vdwg.mxu0
  %4731 = vrot.lane.b32.xlu0 %v2806, 80
  %v4732 = vpop.permute.xlu0 %4731
  %v4735 = vsel %vm121, %v4548, 0
  %4737 = vmatpush.msra.mxu0 0.0
  %4738 = vmatpush.msra.mxu0 0.0
  %4739 = vmatpush.msra.mxu0 0.0
  %4740 = vmatpush.msra.mxu0 0.0
  %4741 = vmatpush.msra.mxu0 0.0
  %4742 = vmatpush.msra.mxu0 0.0
  %4743 = vmatpush.msra.mxu0 0.0
  %4744 = vmatpush.msra.mxu0 0.0
  %4745 = vmatpush.msra.mxu0 0.0
  %4746 = vmatpush.msra.mxu0 0.0
  %4747 = vmatpush.msra.mxu0 0.0
  %4748 = vmatpush.msra.mxu0 0.0
  %4749 = vmatpush.msra.mxu0 0.0
  %4750 = vmatpush.msra.mxu0 0.0
  %4751 = vmatpush.msra.mxu0 0.0
  %4752 = vmatpush.msra.mxu0 %v4732
  %4753 = vmatmul.f32.gmra.mxu0 %v4735
  %v4754 = vpop.f32.mrf.mxu0
  %v4755 = vadd.f32 0.0, %v4754
  %4756 = vdwg.mxu0
  %4765 = vrot.lane.b32.xlu0 %v4573, 80
  %v4766 = vpop.permute.xlu0 %4765
  %4767 = vrot.lane.b32.xlu0 %v4599, 80
  %v4768 = vpop.permute.xlu0 %4767
  %4769 = vrot.lane.b32.xlu0 %v4625, 80
  %v4770 = vpop.permute.xlu0 %4769
  %4771 = vrot.lane.b32.xlu0 %v4651, 80
  %v4772 = vpop.permute.xlu0 %4771
  %4773 = vrot.lane.b32.xlu0 %v4677, 80
  %v4774 = vpop.permute.xlu0 %4773
  %4775 = vrot.lane.b32.xlu0 %v4703, 80
  %v4776 = vpop.permute.xlu0 %4775
  %4777 = vrot.lane.b32.xlu0 %v4729, 80
  %v4778 = vpop.permute.xlu0 %4777
  %4779 = vrot.lane.b32.xlu0 %v4755, 80
  %v4780 = vpop.permute.xlu0 %4779
  %v4789 = vadd.f32 %v92, %v4766
  %v4790 = vadd.f32 %v95, %v4768
  %v4791 = vadd.f32 %v98, %v4770
  %v4792 = vadd.f32 %v101, %v4772
  %v4793 = vadd.f32 %v104, %v4774
  %v4794 = vadd.f32 %v107, %v4776
  %v4795 = vadd.f32 %v110, %v4778
  %v4796 = vadd.f32 %v113, %v4780
  %4797 = vrot.lane.b32.xlu0 %v92, 40
  %v4798 = vpop.permute.xlu0 %4797
  %4799 = vrot.lane.b32.xlu0 %v2785, 104
  %v4800 = vpop.permute.xlu0 %4799
  %v4801 = vsel %vm121, %v4798, 0
  %v4803 = vsel %vm121, %v4800, 0
  %4805 = vmatpush.xpose.msra.mxu0 0.0
  %4806 = vmatpush.xpose.msra.mxu0 0.0
  %4807 = vmatpush.xpose.msra.mxu0 0.0
  %4808 = vmatpush.xpose.msra.mxu0 0.0
  %4809 = vmatpush.xpose.msra.mxu0 0.0
  %4810 = vmatpush.xpose.msra.mxu0 0.0
  %4811 = vmatpush.xpose.msra.mxu0 0.0
  %4812 = vmatpush.xpose.msra.mxu0 0.0
  %4813 = vmatpush.xpose.msra.mxu0 0.0
  %4814 = vmatpush.xpose.msra.mxu0 0.0
  %4815 = vmatpush.xpose.msra.mxu0 0.0
  %4816 = vmatpush.xpose.msra.mxu0 0.0
  %4817 = vmatpush.xpose.msra.mxu0 0.0
  %4818 = vmatpush.xpose.msra.mxu0 0.0
  %4819 = vmatpush.xpose.msra.mxu0 0.0
  %4820 = vmatpush.xpose.msra.mxu0 %v4803
  %4821 = vmatmul.f32.gmra.mxu0 %v4801
  %v4822 = vpop.f32.mrf.mxu0
  %v4823 = vadd.f32 0.0, %v4822
  %4824 = vdwg.mxu0
  %4825 = vrot.lane.b32.xlu0 %v95, 40
  %v4826 = vpop.permute.xlu0 %4825
  %4827 = vrot.lane.b32.xlu0 %v2788, 104
  %v4828 = vpop.permute.xlu0 %4827
  %v4829 = vsel %vm121, %v4826, 0
  %v4831 = vsel %vm121, %v4828, 0
  %4833 = vmatpush.xpose.msra.mxu0 0.0
  %4834 = vmatpush.xpose.msra.mxu0 0.0
  %4835 = vmatpush.xpose.msra.mxu0 0.0
  %4836 = vmatpush.xpose.msra.mxu0 0.0
  %4837 = vmatpush.xpose.msra.mxu0 0.0
  %4838 = vmatpush.xpose.msra.mxu0 0.0
  %4839 = vmatpush.xpose.msra.mxu0 0.0
  %4840 = vmatpush.xpose.msra.mxu0 0.0
  %4841 = vmatpush.xpose.msra.mxu0 0.0
  %4842 = vmatpush.xpose.msra.mxu0 0.0
  %4843 = vmatpush.xpose.msra.mxu0 0.0
  %4844 = vmatpush.xpose.msra.mxu0 0.0
  %4845 = vmatpush.xpose.msra.mxu0 0.0
  %4846 = vmatpush.xpose.msra.mxu0 0.0
  %4847 = vmatpush.xpose.msra.mxu0 0.0
  %4848 = vmatpush.xpose.msra.mxu0 %v4831
  %4849 = vmatmul.f32.gmra.mxu0 %v4829
  %v4850 = vpop.f32.mrf.mxu0
  %v4851 = vadd.f32 0.0, %v4850
  %4852 = vdwg.mxu0
  %4853 = vrot.lane.b32.xlu0 %v98, 40
  %v4854 = vpop.permute.xlu0 %4853
  %4855 = vrot.lane.b32.xlu0 %v2791, 104
  %v4856 = vpop.permute.xlu0 %4855
  %v4857 = vsel %vm121, %v4854, 0
  %v4859 = vsel %vm121, %v4856, 0
  %4861 = vmatpush.xpose.msra.mxu0 0.0
  %4862 = vmatpush.xpose.msra.mxu0 0.0
  %4863 = vmatpush.xpose.msra.mxu0 0.0
  %4864 = vmatpush.xpose.msra.mxu0 0.0
  %4865 = vmatpush.xpose.msra.mxu0 0.0
  %4866 = vmatpush.xpose.msra.mxu0 0.0
  %4867 = vmatpush.xpose.msra.mxu0 0.0
  %4868 = vmatpush.xpose.msra.mxu0 0.0
  %4869 = vmatpush.xpose.msra.mxu0 0.0
  %4870 = vmatpush.xpose.msra.mxu0 0.0
  %4871 = vmatpush.xpose.msra.mxu0 0.0
  %4872 = vmatpush.xpose.msra.mxu0 0.0
  %4873 = vmatpush.xpose.msra.mxu0 0.0
  %4874 = vmatpush.xpose.msra.mxu0 0.0
  %4875 = vmatpush.xpose.msra.mxu0 0.0
  %4876 = vmatpush.xpose.msra.mxu0 %v4859
  %4877 = vmatmul.f32.gmra.mxu0 %v4857
  %v4878 = vpop.f32.mrf.mxu0
  %v4879 = vadd.f32 0.0, %v4878
  %4880 = vdwg.mxu0
  %4881 = vrot.lane.b32.xlu0 %v101, 40
  %v4882 = vpop.permute.xlu0 %4881
  %4883 = vrot.lane.b32.xlu0 %v2794, 104
  %v4884 = vpop.permute.xlu0 %4883
  %v4885 = vsel %vm121, %v4882, 0
  %v4887 = vsel %vm121, %v4884, 0
  %4889 = vmatpush.xpose.msra.mxu0 0.0
  %4890 = vmatpush.xpose.msra.mxu0 0.0
  %4891 = vmatpush.xpose.msra.mxu0 0.0
  %4892 = vmatpush.xpose.msra.mxu0 0.0
  %4893 = vmatpush.xpose.msra.mxu0 0.0
  %4894 = vmatpush.xpose.msra.mxu0 0.0
  %4895 = vmatpush.xpose.msra.mxu0 0.0
  %4896 = vmatpush.xpose.msra.mxu0 0.0
  %4897 = vmatpush.xpose.msra.mxu0 0.0
  %4898 = vmatpush.xpose.msra.mxu0 0.0
  %4899 = vmatpush.xpose.msra.mxu0 0.0
  %4900 = vmatpush.xpose.msra.mxu0 0.0
  %4901 = vmatpush.xpose.msra.mxu0 0.0
  %4902 = vmatpush.xpose.msra.mxu0 0.0
  %4903 = vmatpush.xpose.msra.mxu0 0.0
  %4904 = vmatpush.xpose.msra.mxu0 %v4887
  %4905 = vmatmul.f32.gmra.mxu0 %v4885
  %v4906 = vpop.f32.mrf.mxu0
  %v4907 = vadd.f32 0.0, %v4906
  %4908 = vdwg.mxu0
  %4909 = vrot.lane.b32.xlu0 %v104, 40
  %v4910 = vpop.permute.xlu0 %4909
  %4911 = vrot.lane.b32.xlu0 %v2797, 104
  %v4912 = vpop.permute.xlu0 %4911
  %v4913 = vsel %vm121, %v4910, 0
  %v4915 = vsel %vm121, %v4912, 0
  %4917 = vmatpush.xpose.msra.mxu0 0.0
  %4918 = vmatpush.xpose.msra.mxu0 0.0
  %4919 = vmatpush.xpose.msra.mxu0 0.0
  %4920 = vmatpush.xpose.msra.mxu0 0.0
  %4921 = vmatpush.xpose.msra.mxu0 0.0
  %4922 = vmatpush.xpose.msra.mxu0 0.0
  %4923 = vmatpush.xpose.msra.mxu0 0.0
  %4924 = vmatpush.xpose.msra.mxu0 0.0
  %4925 = vmatpush.xpose.msra.mxu0 0.0
  %4926 = vmatpush.xpose.msra.mxu0 0.0
  %4927 = vmatpush.xpose.msra.mxu0 0.0
  %4928 = vmatpush.xpose.msra.mxu0 0.0
  %4929 = vmatpush.xpose.msra.mxu0 0.0
  %4930 = vmatpush.xpose.msra.mxu0 0.0
  %4931 = vmatpush.xpose.msra.mxu0 0.0
  %4932 = vmatpush.xpose.msra.mxu0 %v4915
  %4933 = vmatmul.f32.gmra.mxu0 %v4913
  %v4934 = vpop.f32.mrf.mxu0
  %v4935 = vadd.f32 0.0, %v4934
  %4936 = vdwg.mxu0
  %4937 = vrot.lane.b32.xlu0 %v107, 40
  %v4938 = vpop.permute.xlu0 %4937
  %4939 = vrot.lane.b32.xlu0 %v2800, 104
  %v4940 = vpop.permute.xlu0 %4939
  %v4941 = vsel %vm121, %v4938, 0
  %v4943 = vsel %vm121, %v4940, 0
  %4945 = vmatpush.xpose.msra.mxu0 0.0
  %4946 = vmatpush.xpose.msra.mxu0 0.0
  %4947 = vmatpush.xpose.msra.mxu0 0.0
  %4948 = vmatpush.xpose.msra.mxu0 0.0
  %4949 = vmatpush.xpose.msra.mxu0 0.0
  %4950 = vmatpush.xpose.msra.mxu0 0.0
  %4951 = vmatpush.xpose.msra.mxu0 0.0
  %4952 = vmatpush.xpose.msra.mxu0 0.0
  %4953 = vmatpush.xpose.msra.mxu0 0.0
  %4954 = vmatpush.xpose.msra.mxu0 0.0
  %4955 = vmatpush.xpose.msra.mxu0 0.0
  %4956 = vmatpush.xpose.msra.mxu0 0.0
  %4957 = vmatpush.xpose.msra.mxu0 0.0
  %4958 = vmatpush.xpose.msra.mxu0 0.0
  %4959 = vmatpush.xpose.msra.mxu0 0.0
  %4960 = vmatpush.xpose.msra.mxu0 %v4943
  %4961 = vmatmul.f32.gmra.mxu0 %v4941
  %v4962 = vpop.f32.mrf.mxu0
  %v4963 = vadd.f32 0.0, %v4962
  %4964 = vdwg.mxu0
  %4965 = vrot.lane.b32.xlu0 %v110, 40
  %v4966 = vpop.permute.xlu0 %4965
  %4967 = vrot.lane.b32.xlu0 %v2803, 104
  %v4968 = vpop.permute.xlu0 %4967
  %v4969 = vsel %vm121, %v4966, 0
  %v4971 = vsel %vm121, %v4968, 0
  %4973 = vmatpush.xpose.msra.mxu0 0.0
  %4974 = vmatpush.xpose.msra.mxu0 0.0
  %4975 = vmatpush.xpose.msra.mxu0 0.0
  %4976 = vmatpush.xpose.msra.mxu0 0.0
  %4977 = vmatpush.xpose.msra.mxu0 0.0
  %4978 = vmatpush.xpose.msra.mxu0 0.0
  %4979 = vmatpush.xpose.msra.mxu0 0.0
  %4980 = vmatpush.xpose.msra.mxu0 0.0
  %4981 = vmatpush.xpose.msra.mxu0 0.0
  %4982 = vmatpush.xpose.msra.mxu0 0.0
  %4983 = vmatpush.xpose.msra.mxu0 0.0
  %4984 = vmatpush.xpose.msra.mxu0 0.0
  %4985 = vmatpush.xpose.msra.mxu0 0.0
  %4986 = vmatpush.xpose.msra.mxu0 0.0
  %4987 = vmatpush.xpose.msra.mxu0 0.0
  %4988 = vmatpush.xpose.msra.mxu0 %v4971
  %4989 = vmatmul.f32.gmra.mxu0 %v4969
  %v4990 = vpop.f32.mrf.mxu0
  %v4991 = vadd.f32 0.0, %v4990
  %4992 = vdwg.mxu0
  %4993 = vrot.lane.b32.xlu0 %v113, 40
  %v4994 = vpop.permute.xlu0 %4993
  %4995 = vrot.lane.b32.xlu0 %v2806, 104
  %v4996 = vpop.permute.xlu0 %4995
  %v4997 = vsel %vm121, %v4994, 0
  %v4999 = vsel %vm121, %v4996, 0
  %5001 = vmatpush.xpose.msra.mxu0 0.0
  %5002 = vmatpush.xpose.msra.mxu0 0.0
  %5003 = vmatpush.xpose.msra.mxu0 0.0
  %5004 = vmatpush.xpose.msra.mxu0 0.0
  %5005 = vmatpush.xpose.msra.mxu0 0.0
  %5006 = vmatpush.xpose.msra.mxu0 0.0
  %5007 = vmatpush.xpose.msra.mxu0 0.0
  %5008 = vmatpush.xpose.msra.mxu0 0.0
  %5009 = vmatpush.xpose.msra.mxu0 0.0
  %5010 = vmatpush.xpose.msra.mxu0 0.0
  %5011 = vmatpush.xpose.msra.mxu0 0.0
  %5012 = vmatpush.xpose.msra.mxu0 0.0
  %5013 = vmatpush.xpose.msra.mxu0 0.0
  %5014 = vmatpush.xpose.msra.mxu0 0.0
  %5015 = vmatpush.xpose.msra.mxu0 0.0
  %5016 = vmatpush.xpose.msra.mxu0 %v4999
  %5017 = vmatmul.f32.gmra.mxu0 %v4997
  %v5018 = vpop.f32.mrf.mxu0
  %v5019 = vadd.f32 0.0, %v5018
  %5020 = vdwg.mxu0
  %v5021 = vsel %vm121, %v4823, -inf
  %5022 = vmax.xlane.f32.xlu0 %v5021
  %v5023 = vpop.xlane.xlu0 %5022
  %v5024 = vsel %vm121, %v4851, -inf
  %5025 = vmax.xlane.f32.xlu0 %v5024
  %v5026 = vpop.xlane.xlu0 %5025
  %v5027 = vsel %vm121, %v4879, -inf
  %5028 = vmax.xlane.f32.xlu0 %v5027
  %v5029 = vpop.xlane.xlu0 %5028
  %v5030 = vsel %vm121, %v4907, -inf
  %5031 = vmax.xlane.f32.xlu0 %v5030
  %v5032 = vpop.xlane.xlu0 %5031
  %v5033 = vsel %vm121, %v4935, -inf
  %5034 = vmax.xlane.f32.xlu0 %v5033
  %v5035 = vpop.xlane.xlu0 %5034
  %v5036 = vsel %vm121, %v4963, -inf
  %5037 = vmax.xlane.f32.xlu0 %v5036
  %v5038 = vpop.xlane.xlu0 %5037
  %v5039 = vsel %vm121, %v4991, -inf
  %5040 = vmax.xlane.f32.xlu0 %v5039
  %v5041 = vpop.xlane.xlu0 %5040
  %v5042 = vsel %vm121, %v5019, -inf
  %5043 = vmax.xlane.f32.xlu0 %v5042
  %v5044 = vpop.xlane.xlu0 %5043
  %v5045 = vsub.f32 %v4823, %v5023
  %v5046 = vsub.f32 %v4851, %v5026
  %v5047 = vsub.f32 %v4879, %v5029
  %v5048 = vsub.f32 %v4907, %v5032
  %v5049 = vsub.f32 %v4935, %v5035
  %v5050 = vsub.f32 %v4963, %v5038
  %v5051 = vsub.f32 %v4991, %v5041
  %v5052 = vsub.f32 %v5019, %v5044
  %v5053 = vmul.f32 %v5045, 1.442695
  %v5054 = vpow.pop %v5053
  %v5055 = vmul.f32 %v5046, 1.442695
  %v5056 = vpow.pop %v5055
  %v5057 = vmul.f32 %v5047, 1.442695
  %v5058 = vpow.pop %v5057
  %v5059 = vmul.f32 %v5048, 1.442695
  %v5060 = vpow.pop %v5059
  %v5061 = vmul.f32 %v5049, 1.442695
  %v5062 = vpow.pop %v5061
  %v5063 = vmul.f32 %v5050, 1.442695
  %v5064 = vpow.pop %v5063
  %v5065 = vmul.f32 %v5051, 1.442695
  %v5066 = vpow.pop %v5065
  %v5067 = vmul.f32 %v5052, 1.442695
  %v5068 = vpow.pop %v5067
  %v5069 = vsel %vm121, %v5054, 0.0
  %5070 = vadd.xlane.f32.xlu0 %v5069
  %v5071 = vpop.xlane.xlu0 %5070
  %v5072 = vsel %vm121, %v5056, 0.0
  %5073 = vadd.xlane.f32.xlu0 %v5072
  %v5074 = vpop.xlane.xlu0 %5073
  %v5075 = vsel %vm121, %v5058, 0.0
  %5076 = vadd.xlane.f32.xlu0 %v5075
  %v5077 = vpop.xlane.xlu0 %5076
  %v5078 = vsel %vm121, %v5060, 0.0
  %5079 = vadd.xlane.f32.xlu0 %v5078
  %v5080 = vpop.xlane.xlu0 %5079
  %v5081 = vsel %vm121, %v5062, 0.0
  %5082 = vadd.xlane.f32.xlu0 %v5081
  %v5083 = vpop.xlane.xlu0 %5082
  %v5084 = vsel %vm121, %v5064, 0.0
  %5085 = vadd.xlane.f32.xlu0 %v5084
  %v5086 = vpop.xlane.xlu0 %5085
  %v5087 = vsel %vm121, %v5066, 0.0
  %5088 = vadd.xlane.f32.xlu0 %v5087
  %v5089 = vpop.xlane.xlu0 %5088
  %v5090 = vsel %vm121, %v5068, 0.0
  %5091 = vadd.xlane.f32.xlu0 %v5090
  %v5092 = vpop.xlane.xlu0 %5091
  %v5093 = vrcp.pop %v5071
  %v5094 = vmul.f32 %v5071, %v5093
  %v5095 = vsub.f32 1.0, %v5094
  %v5096 = vmul.f32 %v5093, %v5095
  %v5097 = vadd.f32 %v5093, %v5096
  %vm5098 = vweird.f32 %v5071
  %vm5099 = vweird.f32 %v5093
  %vm5100 = vmor %vm5098, %vm5099
  %v5101 = vsel %vm5100, %v5093, %v5097
  %v5102 = vand.u32 2147483647, %v5071
  %vm5103 = vcmp.eq.f32.partialorder %v5102, 8.507059e+37
  %v5104 = vand.u32 %v5071, 2147483648
  %v5105 = vor.u32 1.1754944e-38, %v5104
  %v5106 = vsel %vm5103, %v5105, %v5101
  %v5107 = vrcp.pop %v5074
  %v5108 = vmul.f32 %v5074, %v5107
  %v5109 = vsub.f32 1.0, %v5108
  %v5110 = vmul.f32 %v5107, %v5109
  %v5111 = vadd.f32 %v5107, %v5110
  %vm5112 = vweird.f32 %v5074
  %vm5113 = vweird.f32 %v5107
  %vm5114 = vmor %vm5112, %vm5113
  %v5115 = vsel %vm5114, %v5107, %v5111
  %v5116 = vand.u32 2147483647, %v5074
  %vm5117 = vcmp.eq.f32.partialorder %v5116, 8.507059e+37
  %v5118 = vand.u32 %v5074, 2147483648
  %v5119 = vor.u32 1.1754944e-38, %v5118
  %v5120 = vsel %vm5117, %v5119, %v5115
  %v5121 = vrcp.pop %v5077
  %v5122 = vmul.f32 %v5077, %v5121
  %v5123 = vsub.f32 1.0, %v5122
  %v5124 = vmul.f32 %v5121, %v5123
  %v5125 = vadd.f32 %v5121, %v5124
  %vm5126 = vweird.f32 %v5077
  %vm5127 = vweird.f32 %v5121
  %vm5128 = vmor %vm5126, %vm5127
  %v5129 = vsel %vm5128, %v5121, %v5125
  %v5130 = vand.u32 2147483647, %v5077
  %vm5131 = vcmp.eq.f32.partialorder %v5130, 8.507059e+37
  %v5132 = vand.u32 %v5077, 2147483648
  %v5133 = vor.u32 1.1754944e-38, %v5132
  %v5134 = vsel %vm5131, %v5133, %v5129
  %v5135 = vrcp.pop %v5080
  %v5136 = vmul.f32 %v5080, %v5135
  %v5137 = vsub.f32 1.0, %v5136
  %v5138 = vmul.f32 %v5135, %v5137
  %v5139 = vadd.f32 %v5135, %v5138
  %vm5140 = vweird.f32 %v5080
  %vm5141 = vweird.f32 %v5135
  %vm5142 = vmor %vm5140, %vm5141
  %v5143 = vsel %vm5142, %v5135, %v5139
  %v5144 = vand.u32 2147483647, %v5080
  %vm5145 = vcmp.eq.f32.partialorder %v5144, 8.507059e+37
  %v5146 = vand.u32 %v5080, 2147483648
  %v5147 = vor.u32 1.1754944e-38, %v5146
  %v5148 = vsel %vm5145, %v5147, %v5143
  %v5149 = vrcp.pop %v5083
  %v5150 = vmul.f32 %v5083, %v5149
  %v5151 = vsub.f32 1.0, %v5150
  %v5152 = vmul.f32 %v5149, %v5151
  %v5153 = vadd.f32 %v5149, %v5152
  %vm5154 = vweird.f32 %v5083
  %vm5155 = vweird.f32 %v5149
  %vm5156 = vmor %vm5154, %vm5155
  %v5157 = vsel %vm5156, %v5149, %v5153
  %v5158 = vand.u32 2147483647, %v5083
  %vm5159 = vcmp.eq.f32.partialorder %v5158, 8.507059e+37
  %v5160 = vand.u32 %v5083, 2147483648
  %v5161 = vor.u32 1.1754944e-38, %v5160
  %v5162 = vsel %vm5159, %v5161, %v5157
  %v5163 = vrcp.pop %v5086
  %v5164 = vmul.f32 %v5086, %v5163
  %v5165 = vsub.f32 1.0, %v5164
  %v5166 = vmul.f32 %v5163, %v5165
  %v5167 = vadd.f32 %v5163, %v5166
  %vm5168 = vweird.f32 %v5086
  %vm5169 = vweird.f32 %v5163
  %vm5170 = vmor %vm5168, %vm5169
  %v5171 = vsel %vm5170, %v5163, %v5167
  %v5172 = vand.u32 2147483647, %v5086
  %vm5173 = vcmp.eq.f32.partialorder %v5172, 8.507059e+37
  %v5174 = vand.u32 %v5086, 2147483648
  %v5175 = vor.u32 1.1754944e-38, %v5174
  %v5176 = vsel %vm5173, %v5175, %v5171
  %v5177 = vrcp.pop %v5089
  %v5178 = vmul.f32 %v5089, %v5177
  %v5179 = vsub.f32 1.0, %v5178
  %v5180 = vmul.f32 %v5177, %v5179
  %v5181 = vadd.f32 %v5177, %v5180
  %vm5182 = vweird.f32 %v5089
  %vm5183 = vweird.f32 %v5177
  %vm5184 = vmor %vm5182, %vm5183
  %v5185 = vsel %vm5184, %v5177, %v5181
  %v5186 = vand.u32 2147483647, %v5089
  %vm5187 = vcmp.eq.f32.partialorder %v5186, 8.507059e+37
  %v5188 = vand.u32 %v5089, 2147483648
  %v5189 = vor.u32 1.1754944e-38, %v5188
  %v5190 = vsel %vm5187, %v5189, %v5185
  %v5191 = vrcp.pop %v5092
  %v5192 = vmul.f32 %v5092, %v5191
  %v5193 = vsub.f32 1.0, %v5192
  %v5194 = vmul.f32 %v5191, %v5193
  %v5195 = vadd.f32 %v5191, %v5194
  %vm5196 = vweird.f32 %v5092
  %vm5197 = vweird.f32 %v5191
  %vm5198 = vmor %vm5196, %vm5197
  %v5199 = vsel %vm5198, %v5191, %v5195
  %v5200 = vand.u32 2147483647, %v5092
  %vm5201 = vcmp.eq.f32.partialorder %v5200, 8.507059e+37
  %v5202 = vand.u32 %v5092, 2147483648
  %v5203 = vor.u32 1.1754944e-38, %v5202
  %v5204 = vsel %vm5201, %v5203, %v5199
  %v5205 = vmul.f32 %v5054, %v5106
  %v5206 = vmul.f32 %v5056, %v5120
  %v5207 = vmul.f32 %v5058, %v5134
  %v5208 = vmul.f32 %v5060, %v5148
  %v5209 = vmul.f32 %v5062, %v5162
  %v5210 = vmul.f32 %v5064, %v5176
  %v5211 = vmul.f32 %v5066, %v5190
  %v5212 = vmul.f32 %v5068, %v5204
  %5213 = vrot.lane.b32.xlu0 %v2785, 72
  %v5214 = vpop.permute.xlu0 %5213
  %v5217 = vsel %vm121, %v5205, 0
  %5219 = vmatpush.msra.mxu0 0.0
  %5220 = vmatpush.msra.mxu0 0.0
  %5221 = vmatpush.msra.mxu0 0.0
  %5222 = vmatpush.msra.mxu0 0.0
  %5223 = vmatpush.msra.mxu0 0.0
  %5224 = vmatpush.msra.mxu0 0.0
  %5225 = vmatpush.msra.mxu0 0.0
  %5226 = vmatpush.msra.mxu0 0.0
  %5227 = vmatpush.msra.mxu0 0.0
  %5228 = vmatpush.msra.mxu0 0.0
  %5229 = vmatpush.msra.mxu0 0.0
  %5230 = vmatpush.msra.mxu0 0.0
  %5231 = vmatpush.msra.mxu0 0.0
  %5232 = vmatpush.msra.mxu0 0.0
  %5233 = vmatpush.msra.mxu0 0.0
  %5234 = vmatpush.msra.mxu0 %v5214
  %5235 = vmatmul.f32.gmra.mxu0 %v5217
  %v5236 = vpop.f32.mrf.mxu0
  %v5237 = vadd.f32 0.0, %v5236
  %5238 = vdwg.mxu0
  %5239 = vrot.lane.b32.xlu0 %v2788, 72
  %v5240 = vpop.permute.xlu0 %5239
  %v5243 = vsel %vm121, %v5206, 0
  %5245 = vmatpush.msra.mxu0 0.0
  %5246 = vmatpush.msra.mxu0 0.0
  %5247 = vmatpush.msra.mxu0 0.0
  %5248 = vmatpush.msra.mxu0 0.0
  %5249 = vmatpush.msra.mxu0 0.0
  %5250 = vmatpush.msra.mxu0 0.0
  %5251 = vmatpush.msra.mxu0 0.0
  %5252 = vmatpush.msra.mxu0 0.0
  %5253 = vmatpush.msra.mxu0 0.0
  %5254 = vmatpush.msra.mxu0 0.0
  %5255 = vmatpush.msra.mxu0 0.0
  %5256 = vmatpush.msra.mxu0 0.0
  %5257 = vmatpush.msra.mxu0 0.0
  %5258 = vmatpush.msra.mxu0 0.0
  %5259 = vmatpush.msra.mxu0 0.0
  %5260 = vmatpush.msra.mxu0 %v5240
  %5261 = vmatmul.f32.gmra.mxu0 %v5243
  %v5262 = vpop.f32.mrf.mxu0
  %v5263 = vadd.f32 0.0, %v5262
  %5264 = vdwg.mxu0
  %5265 = vrot.lane.b32.xlu0 %v2791, 72
  %v5266 = vpop.permute.xlu0 %5265
  %v5269 = vsel %vm121, %v5207, 0
  %5271 = vmatpush.msra.mxu0 0.0
  %5272 = vmatpush.msra.mxu0 0.0
  %5273 = vmatpush.msra.mxu0 0.0
  %5274 = vmatpush.msra.mxu0 0.0
  %5275 = vmatpush.msra.mxu0 0.0
  %5276 = vmatpush.msra.mxu0 0.0
  %5277 = vmatpush.msra.mxu0 0.0
  %5278 = vmatpush.msra.mxu0 0.0
  %5279 = vmatpush.msra.mxu0 0.0
  %5280 = vmatpush.msra.mxu0 0.0
  %5281 = vmatpush.msra.mxu0 0.0
  %5282 = vmatpush.msra.mxu0 0.0
  %5283 = vmatpush.msra.mxu0 0.0
  %5284 = vmatpush.msra.mxu0 0.0
  %5285 = vmatpush.msra.mxu0 0.0
  %5286 = vmatpush.msra.mxu0 %v5266
  %5287 = vmatmul.f32.gmra.mxu0 %v5269
  %v5288 = vpop.f32.mrf.mxu0
  %v5289 = vadd.f32 0.0, %v5288
  %5290 = vdwg.mxu0
  %5291 = vrot.lane.b32.xlu0 %v2794, 72
  %v5292 = vpop.permute.xlu0 %5291
  %v5295 = vsel %vm121, %v5208, 0
  %5297 = vmatpush.msra.mxu0 0.0
  %5298 = vmatpush.msra.mxu0 0.0
  %5299 = vmatpush.msra.mxu0 0.0
  %5300 = vmatpush.msra.mxu0 0.0
  %5301 = vmatpush.msra.mxu0 0.0
  %5302 = vmatpush.msra.mxu0 0.0
  %5303 = vmatpush.msra.mxu0 0.0
  %5304 = vmatpush.msra.mxu0 0.0
  %5305 = vmatpush.msra.mxu0 0.0
  %5306 = vmatpush.msra.mxu0 0.0
  %5307 = vmatpush.msra.mxu0 0.0
  %5308 = vmatpush.msra.mxu0 0.0
  %5309 = vmatpush.msra.mxu0 0.0
  %5310 = vmatpush.msra.mxu0 0.0
  %5311 = vmatpush.msra.mxu0 0.0
  %5312 = vmatpush.msra.mxu0 %v5292
  %5313 = vmatmul.f32.gmra.mxu0 %v5295
  %v5314 = vpop.f32.mrf.mxu0
  %v5315 = vadd.f32 0.0, %v5314
  %5316 = vdwg.mxu0
  %5317 = vrot.lane.b32.xlu0 %v2797, 72
  %v5318 = vpop.permute.xlu0 %5317
  %v5321 = vsel %vm121, %v5209, 0
  %5323 = vmatpush.msra.mxu0 0.0
  %5324 = vmatpush.msra.mxu0 0.0
  %5325 = vmatpush.msra.mxu0 0.0
  %5326 = vmatpush.msra.mxu0 0.0
  %5327 = vmatpush.msra.mxu0 0.0
  %5328 = vmatpush.msra.mxu0 0.0
  %5329 = vmatpush.msra.mxu0 0.0
  %5330 = vmatpush.msra.mxu0 0.0
  %5331 = vmatpush.msra.mxu0 0.0
  %5332 = vmatpush.msra.mxu0 0.0
  %5333 = vmatpush.msra.mxu0 0.0
  %5334 = vmatpush.msra.mxu0 0.0
  %5335 = vmatpush.msra.mxu0 0.0
  %5336 = vmatpush.msra.mxu0 0.0
  %5337 = vmatpush.msra.mxu0 0.0
  %5338 = vmatpush.msra.mxu0 %v5318
  %5339 = vmatmul.f32.gmra.mxu0 %v5321
  %v5340 = vpop.f32.mrf.mxu0
  %v5341 = vadd.f32 0.0, %v5340
  %5342 = vdwg.mxu0
  %5343 = vrot.lane.b32.xlu0 %v2800, 72
  %v5344 = vpop.permute.xlu0 %5343
  %v5347 = vsel %vm121, %v5210, 0
  %5349 = vmatpush.msra.mxu0 0.0
  %5350 = vmatpush.msra.mxu0 0.0
  %5351 = vmatpush.msra.mxu0 0.0
  %5352 = vmatpush.msra.mxu0 0.0
  %5353 = vmatpush.msra.mxu0 0.0
  %5354 = vmatpush.msra.mxu0 0.0
  %5355 = vmatpush.msra.mxu0 0.0
  %5356 = vmatpush.msra.mxu0 0.0
  %5357 = vmatpush.msra.mxu0 0.0
  %5358 = vmatpush.msra.mxu0 0.0
  %5359 = vmatpush.msra.mxu0 0.0
  %5360 = vmatpush.msra.mxu0 0.0
  %5361 = vmatpush.msra.mxu0 0.0
  %5362 = vmatpush.msra.mxu0 0.0
  %5363 = vmatpush.msra.mxu0 0.0
  %5364 = vmatpush.msra.mxu0 %v5344
  %5365 = vmatmul.f32.gmra.mxu0 %v5347
  %v5366 = vpop.f32.mrf.mxu0
  %v5367 = vadd.f32 0.0, %v5366
  %5368 = vdwg.mxu0
  %5369 = vrot.lane.b32.xlu0 %v2803, 72
  %v5370 = vpop.permute.xlu0 %5369
  %v5373 = vsel %vm121, %v5211, 0
  %5375 = vmatpush.msra.mxu0 0.0
  %5376 = vmatpush.msra.mxu0 0.0
  %5377 = vmatpush.msra.mxu0 0.0
  %5378 = vmatpush.msra.mxu0 0.0
  %5379 = vmatpush.msra.mxu0 0.0
  %5380 = vmatpush.msra.mxu0 0.0
  %5381 = vmatpush.msra.mxu0 0.0
  %5382 = vmatpush.msra.mxu0 0.0
  %5383 = vmatpush.msra.mxu0 0.0
  %5384 = vmatpush.msra.mxu0 0.0
  %5385 = vmatpush.msra.mxu0 0.0
  %5386 = vmatpush.msra.mxu0 0.0
  %5387 = vmatpush.msra.mxu0 0.0
  %5388 = vmatpush.msra.mxu0 0.0
  %5389 = vmatpush.msra.mxu0 0.0
  %5390 = vmatpush.msra.mxu0 %v5370
  %5391 = vmatmul.f32.gmra.mxu0 %v5373
  %v5392 = vpop.f32.mrf.mxu0
  %v5393 = vadd.f32 0.0, %v5392
  %5394 = vdwg.mxu0
  %5395 = vrot.lane.b32.xlu0 %v2806, 72
  %v5396 = vpop.permute.xlu0 %5395
  %v5399 = vsel %vm121, %v5212, 0
  %5401 = vmatpush.msra.mxu0 0.0
  %5402 = vmatpush.msra.mxu0 0.0
  %5403 = vmatpush.msra.mxu0 0.0
  %5404 = vmatpush.msra.mxu0 0.0
  %5405 = vmatpush.msra.mxu0 0.0
  %5406 = vmatpush.msra.mxu0 0.0
  %5407 = vmatpush.msra.mxu0 0.0
  %5408 = vmatpush.msra.mxu0 0.0
  %5409 = vmatpush.msra.mxu0 0.0
  %5410 = vmatpush.msra.mxu0 0.0
  %5411 = vmatpush.msra.mxu0 0.0
  %5412 = vmatpush.msra.mxu0 0.0
  %5413 = vmatpush.msra.mxu0 0.0
  %5414 = vmatpush.msra.mxu0 0.0
  %5415 = vmatpush.msra.mxu0 0.0
  %5416 = vmatpush.msra.mxu0 %v5396
  %5417 = vmatmul.f32.gmra.mxu0 %v5399
  %v5418 = vpop.f32.mrf.mxu0
  %v5419 = vadd.f32 0.0, %v5418
  %5420 = vdwg.mxu0
  %5429 = vrot.lane.b32.xlu0 %v5237, 88
  %v5430 = vpop.permute.xlu0 %5429
  %5431 = vrot.lane.b32.xlu0 %v5263, 88
  %v5432 = vpop.permute.xlu0 %5431
  %5433 = vrot.lane.b32.xlu0 %v5289, 88
  %v5434 = vpop.permute.xlu0 %5433
  %5435 = vrot.lane.b32.xlu0 %v5315, 88
  %v5436 = vpop.permute.xlu0 %5435
  %5437 = vrot.lane.b32.xlu0 %v5341, 88
  %v5438 = vpop.permute.xlu0 %5437
  %5439 = vrot.lane.b32.xlu0 %v5367, 88
  %v5440 = vpop.permute.xlu0 %5439
  %5441 = vrot.lane.b32.xlu0 %v5393, 88
  %v5442 = vpop.permute.xlu0 %5441
  %5443 = vrot.lane.b32.xlu0 %v5419, 88
  %v5444 = vpop.permute.xlu0 %5443
  %v5453 = vadd.f32 %v92, %v5430
  %v5454 = vadd.f32 %v95, %v5432
  %v5455 = vadd.f32 %v98, %v5434
  %v5456 = vadd.f32 %v101, %v5436
  %v5457 = vadd.f32 %v104, %v5438
  %v5458 = vadd.f32 %v107, %v5440
  %v5459 = vadd.f32 %v110, %v5442
  %v5460 = vadd.f32 %v113, %v5444
  %5469 = vrot.lane.b32.xlu0 %v3461, 64
  %v5470 = vpop.permute.xlu0 %5469
  %5471 = vrot.lane.b32.xlu0 %v3462, 64
  %v5472 = vpop.permute.xlu0 %5471
  %5473 = vrot.lane.b32.xlu0 %v3463, 64
  %v5474 = vpop.permute.xlu0 %5473
  %5475 = vrot.lane.b32.xlu0 %v3464, 64
  %v5476 = vpop.permute.xlu0 %5475
  %5477 = vrot.lane.b32.xlu0 %v3465, 64
  %v5478 = vpop.permute.xlu0 %5477
  %5479 = vrot.lane.b32.xlu0 %v3466, 64
  %v5480 = vpop.permute.xlu0 %5479
  %5481 = vrot.lane.b32.xlu0 %v3467, 64
  %v5482 = vpop.permute.xlu0 %5481
  %5483 = vrot.lane.b32.xlu0 %v3468, 64
  %v5484 = vpop.permute.xlu0 %5483
  %5501 = vrot.lane.b32.xlu0 %v4125, 64
  %v5502 = vpop.permute.xlu0 %5501
  %5503 = vrot.lane.b32.xlu0 %v4126, 64
  %v5504 = vpop.permute.xlu0 %5503
  %5505 = vrot.lane.b32.xlu0 %v4127, 64
  %v5506 = vpop.permute.xlu0 %5505
  %5507 = vrot.lane.b32.xlu0 %v4128, 64
  %v5508 = vpop.permute.xlu0 %5507
  %5509 = vrot.lane.b32.xlu0 %v4129, 64
  %v5510 = vpop.permute.xlu0 %5509
  %5511 = vrot.lane.b32.xlu0 %v4130, 64
  %v5512 = vpop.permute.xlu0 %5511
  %5513 = vrot.lane.b32.xlu0 %v4131, 64
  %v5514 = vpop.permute.xlu0 %5513
  %5515 = vrot.lane.b32.xlu0 %v4132, 64
  %v5516 = vpop.permute.xlu0 %5515
  %5533 = vrot.lane.b32.xlu0 %v4789, 64
  %v5534 = vpop.permute.xlu0 %5533
  %5535 = vrot.lane.b32.xlu0 %v4790, 64
  %v5536 = vpop.permute.xlu0 %5535
  %5537 = vrot.lane.b32.xlu0 %v4791, 64
  %v5538 = vpop.permute.xlu0 %5537
  %5539 = vrot.lane.b32.xlu0 %v4792, 64
  %v5540 = vpop.permute.xlu0 %5539
  %5541 = vrot.lane.b32.xlu0 %v4793, 64
  %v5542 = vpop.permute.xlu0 %5541
  %5543 = vrot.lane.b32.xlu0 %v4794, 64
  %v5544 = vpop.permute.xlu0 %5543
  %5545 = vrot.lane.b32.xlu0 %v4795, 64
  %v5546 = vpop.permute.xlu0 %5545
  %5547 = vrot.lane.b32.xlu0 %v4796, 64
  %v5548 = vpop.permute.xlu0 %5547
  %5565 = vrot.lane.b32.xlu0 %v5453, 64
  %v5566 = vpop.permute.xlu0 %5565
  %5567 = vrot.lane.b32.xlu0 %v5454, 64
  %v5568 = vpop.permute.xlu0 %5567
  %5569 = vrot.lane.b32.xlu0 %v5455, 64
  %v5570 = vpop.permute.xlu0 %5569
  %5571 = vrot.lane.b32.xlu0 %v5456, 64
  %v5572 = vpop.permute.xlu0 %5571
  %5573 = vrot.lane.b32.xlu0 %v5457, 64
  %v5574 = vpop.permute.xlu0 %5573
  %5575 = vrot.lane.b32.xlu0 %v5458, 64
  %v5576 = vpop.permute.xlu0 %5575
  %5577 = vrot.lane.b32.xlu0 %v5459, 64
  %v5578 = vpop.permute.xlu0 %5577
  %5579 = vrot.lane.b32.xlu0 %v5460, 64
  %v5580 = vpop.permute.xlu0 %5579
  %v5589 = vsel %vm121, %v5470, %v5502
  %v5590 = vsel %vm121, %v5472, %v5504
  %v5591 = vsel %vm121, %v5474, %v5506
  %v5592 = vsel %vm121, %v5476, %v5508
  %v5593 = vsel %vm121, %v5478, %v5510
  %v5594 = vsel %vm121, %v5480, %v5512
  %v5595 = vsel %vm121, %v5482, %v5514
  %v5596 = vsel %vm121, %v5484, %v5516
  %v5597 = vsel %vm49, %v5589, %v5534
  %v5598 = vsel %vm49, %v5590, %v5536
  %v5599 = vsel %vm49, %v5591, %v5538
  %v5600 = vsel %vm49, %v5592, %v5540
  %v5601 = vsel %vm49, %v5593, %v5542
  %v5602 = vsel %vm49, %v5594, %v5544
  %v5603 = vsel %vm49, %v5595, %v5546
  %v5604 = vsel %vm49, %v5596, %v5548
  %v5605 = vsel %vm2641, %v5597, %v5566
  %v5606 = vsel %vm2641, %v5598, %v5568
  %v5607 = vsel %vm2641, %v5599, %v5570
  %v5608 = vsel %vm2641, %v5600, %v5572
  %v5609 = vsel %vm2641, %v5601, %v5574
  %v5610 = vsel %vm2641, %v5602, %v5576
  %v5611 = vsel %vm2641, %v5603, %v5578
  %v5612 = vsel %vm2641, %v5604, %v5580
  %v5614 = vperm.slane %v2812, 0
  %v5617 = vsel %vm2653, %v5605, 0
  %v5620 = vsel %vm2653, %v5606, 0
  %v5623 = vsel %vm2653, %v5607, 0
  %v5626 = vsel %vm2653, %v5608, 0
  %v5629 = vsel %vm2653, %v5609, 0
  %v5632 = vsel %vm2653, %v5610, 0
  %v5635 = vsel %vm2653, %v5611, 0
  %v5638 = vsel %vm2653, %v5612, 0
  %5640 = vmatpush.msra.mxu0 0.0
  %5641 = vmatpush.msra.mxu0 0.0
  %5642 = vmatpush.msra.mxu0 0.0
  %5643 = vmatpush.msra.mxu0 0.0
  %5644 = vmatpush.msra.mxu0 0.0
  %5645 = vmatpush.msra.mxu0 0.0
  %5646 = vmatpush.msra.mxu0 0.0
  %5647 = vmatpush.msra.mxu0 0.0
  %5648 = vmatpush.msra.mxu0 0.0
  %5649 = vmatpush.msra.mxu0 0.0
  %5650 = vmatpush.msra.mxu0 0.0
  %5651 = vmatpush.msra.mxu0 0.0
  %5652 = vmatpush.msra.mxu0 %v2811
  %5653 = vmatpush.msra.mxu0 %v2810
  %5654 = vmatpush.msra.mxu0 %v2809
  %5655 = vmatpush.msra.mxu0 %v2808
  %5656 = vmatmul.f32.gmra.mxu0 %v5617
  %v5657 = vpop.f32.mrf.mxu0
  %v5658 = vadd.f32 %v5614, %v5657
  %5659 = vmatmul.f32.gmra.mxu0 %v5620
  %v5660 = vpop.f32.mrf.mxu0
  %v5661 = vadd.f32 %v5614, %v5660
  %5662 = vmatmul.f32.gmra.mxu0 %v5623
  %v5663 = vpop.f32.mrf.mxu0
  %v5664 = vadd.f32 %v5614, %v5663
  %5665 = vmatmul.f32.gmra.mxu0 %v5626
  %v5666 = vpop.f32.mrf.mxu0
  %v5667 = vadd.f32 %v5614, %v5666
  %5668 = vmatmul.f32.gmra.mxu0 %v5629
  %v5669 = vpop.f32.mrf.mxu0
  %v5670 = vadd.f32 %v5614, %v5669
  %5671 = vmatmul.f32.gmra.mxu0 %v5632
  %v5672 = vpop.f32.mrf.mxu0
  %v5673 = vadd.f32 %v5614, %v5672
  %5674 = vmatmul.f32.gmra.mxu0 %v5635
  %v5675 = vpop.f32.mrf.mxu0
  %v5676 = vadd.f32 %v5614, %v5675
  %5677 = vmatmul.f32.gmra.mxu0 %v5638
  %v5678 = vpop.f32.mrf.mxu0
  %v5679 = vadd.f32 %v5614, %v5678
  %5680 = vdwg.mxu0
  %v5681 = vmax.f32 %v5658, 0.0
  %v5682 = vmax.f32 %v5661, 0.0
  %v5683 = vmax.f32 %v5664, 0.0
  %v5684 = vmax.f32 %v5667, 0.0
  %v5685 = vmax.f32 %v5670, 0.0
  %v5686 = vmax.f32 %v5673, 0.0
  %v5687 = vmax.f32 %v5676, 0.0
  %v5688 = vmax.f32 %v5679, 0.0
  %v5689 = vadd.f32 %v5605, %v5681
  %v5690 = vadd.f32 %v5606, %v5682
  %v5691 = vadd.f32 %v5607, %v5683
  %v5692 = vadd.f32 %v5608, %v5684
  %v5693 = vadd.f32 %v5609, %v5685
  %v5694 = vadd.f32 %v5610, %v5686
  %v5695 = vadd.f32 %v5611, %v5687
  %v5696 = vadd.f32 %v5612, %v5688
  %5698 = vrot.lane.b32.xlu0 %v5690, 32
  %v5699 = vpop.permute.xlu0 %5698
  %5702 = vrot.lane.b32.xlu0 %v5691, 64
  %v5703 = vpop.permute.xlu0 %5702
  %5706 = vrot.lane.b32.xlu0 %v5692, 96
  %v5707 = vpop.permute.xlu0 %5706
  %5710 = vrot.lane.b32.xlu0 %v5694, 32
  %v5711 = vpop.permute.xlu0 %5710
  %5714 = vrot.lane.b32.xlu0 %v5695, 64
  %v5715 = vpop.permute.xlu0 %5714
  %5718 = vrot.lane.b32.xlu0 %v5696, 96
  %v5719 = vpop.permute.xlu0 %5718
  %v5721 = vsel %vm2653, %v5689, %v5699
  %vm5722 = vcmask 523264
  %v5723 = vsel %vm5722, %v5721, %v5703
  %vm5724 = vcmask 785408
  %v5725 = vsel %vm5724, %v5723, %v5707
  %v5726 = vsel %vm2653, %v5693, %v5711
  %v5727 = vsel %vm5722, %v5726, %v5715
  %v5728 = vsel %vm5724, %v5727, %v5719
  %5729 = vst [vmem:[%s10] sm:$0xff] %v5725
  %5730 = vst [vmem:[%s10 + $0x8] sm:$0xff] %v5728
  // Predicated region
  $region42: #{isab_forward.1} parent=0 // pred_check
    _
  $region43: #{isab_forward.1} parent=0 // pred_check_branch
    %5732 = sbr.rel (0) target = $region45
  $region44: #{isab_forward.1} parent=0 // pred_region
    _
  $region45: #{isab_forward.1} parent=0 // pred_fallthru
    _
  // Predicated region
  $region46: #{isab_forward.1} parent=0 // pred_check
    _
  $region47: #{isab_forward.1} parent=0 // pred_check_branch
    %5734 = sbr.rel (0) target = $region49
  $region48: #{isab_forward.1} parent=0 // pred_region
    _
  $region49: #{isab_forward.1} parent=0 // pred_fallthru
    _

</llo_original>
